<compile_context>
chip_gen: v7x
topology: tpu7x:2x2x1
jax: 0.10.0
libtpu: 0.0.40
codegen_flags: <defaults>
</compile_context>

<pallas_src>
import jax
import jax.numpy as jnp
from jax.experimental import pallas as pl
from jax.experimental.pallas import tpu as pltpu

HIDDEN = 512  # fixed by the module definition


def _regression_kernel(x_ref, w1_ref, b1_ref, w2_ref, b2_ref, w3_ref, b3_ref,
                       o_ref):
    # x_ref: (bm, in_c) in compute dtype (bf16).  Weights bf16, biases f32.
    x = x_ref[...]

    # Layer 1: Linear + ReLU   (Dropout = identity in eval mode)
    h1 = jnp.dot(x, w1_ref[...], preferred_element_type=jnp.float32)
    h1 = jnp.maximum(h1 + b1_ref[...], 0.0)

    # Layer 2: Linear + ReLU   (Dropout = identity in eval mode)
    h2 = jnp.dot(h1.astype(w2_ref.dtype), w2_ref[...],
                 preferred_element_type=jnp.float32)
    h2 = jnp.maximum(h2 + b2_ref[...], 0.0)

    # Layer 3: Linear (output columns are padded to a 128 multiple;
    # padded weight/bias columns are zero, sliced away in the wrapper)
    out = jnp.dot(h2.astype(w3_ref.dtype), w3_ref[...],
                  preferred_element_type=jnp.float32)
    o_ref[...] = (out + b3_ref[...]).astype(o_ref.dtype)


def regression_forward(x, params, *, bm=None, compute_dtype=jnp.bfloat16):
    """x: [B, in_c] float32.  params: dict of w1,b1,w2,b2,w3,b3 (f32,
    weights stored [in_features, out_features])."""
    B, in_c = x.shape
    out_c = params["w3"].shape[1]

    # Batch tile: large enough to fill the MXU; multiple of 8 for the
    # (8,128) sublane constraint.
    if bm is None:
        bm = min(256, B)
    bm = pl.cdiv(bm, 8) * 8
    B_pad = pl.cdiv(B, bm) * bm

    # Lane-dense output width.
    out_c_pad = pl.cdiv(out_c, 128) * 128

    # bf16 matmul operands; biases stay f32 (added post-accumulation).
    w1 = params["w1"].astype(compute_dtype)
    w2 = params["w2"].astype(compute_dtype)
    w3 = jnp.pad(params["w3"],
                 ((0, 0), (0, out_c_pad - out_c))).astype(compute_dtype)
    b1 = params["b1"].astype(jnp.float32)
    b2 = params["b2"].astype(jnp.float32)
    b3 = jnp.pad(params["b3"],
                 ((0, 0), (0, out_c_pad - out_c))).astype(jnp.float32)

    xp = x.astype(compute_dtype)
    if B_pad != B:
        xp = jnp.pad(xp, ((0, B_pad - B), (0, 0)))

    grid = (B_pad // bm,)

    # Grid-invariant (resident) weight / bias blocks.
    full = lambda shape: pl.BlockSpec(shape, lambda i: (0, 0))

    flops = 2 * B_pad * (in_c * HIDDEN + HIDDEN * HIDDEN + HIDDEN * out_c_pad)
    bytes_accessed = (
        xp.size * xp.dtype.itemsize
        + w1.size * w1.dtype.itemsize
        + w2.size * w2.dtype.itemsize
        + w3.size * w3.dtype.itemsize
        + (b1.size + b2.size + b3.size) * 4
        + B_pad * out_c_pad * 4)

    out = pl.pallas_call(
        _regression_kernel,
        out_shape=jax.ShapeDtypeStruct((B_pad, out_c_pad), jnp.float32),
        grid_spec=pltpu.PrefetchScalarGridSpec(
            num_scalar_prefetch=0,
            grid=grid,
            in_specs=[
                pl.BlockSpec((bm, in_c), lambda i: (i, 0)),   # x row tile
                full((in_c, HIDDEN)),                         # w1
                full((1, HIDDEN)),                            # b1
                full((HIDDEN, HIDDEN)),                       # w2
                full((1, HIDDEN)),                            # b2
                full((HIDDEN, out_c_pad)),                    # w3 (padded)
                full((1, out_c_pad)),                         # b3 (padded)
            ],
            out_specs=pl.BlockSpec((bm, out_c_pad), lambda i: (i, 0)),
        ),
        compiler_params=pltpu.CompilerParams(
            dimension_semantics=("parallel",)),
        cost_estimate=pl.CostEstimate(
            flops=flops, transcendentals=0, bytes_accessed=bytes_accessed),
    )(xp, w1, b1, w2, b2, w3, b3)

    return out[:B, :out_c]


def init_params(key, in_c, out_c):
    """Deterministic synthetic parameters (PyTorch-Linear-like uniform init),
    stored as [in_features, out_features]."""
    ks = jax.random.split(key, 6)

    def lin(kw, kb, fan_in, fan_out):
        bound = 1.0 / jnp.sqrt(fan_in)
        w = jax.random.uniform(kw, (fan_in, fan_out), jnp.float32, -bound, bound)
        b = jax.random.uniform(kb, (1, fan_out), jnp.float32, -bound, bound)
        return w, b

    w1, b1 = lin(ks[0], ks[1], in_c, HIDDEN)
    w2, b2 = lin(ks[2], ks[3], HIDDEN, HIDDEN)
    w3, b3 = lin(ks[4], ks[5], HIDDEN, out_c)
    return dict(w1=w1, b1=b1, w2=w2, b2=b2, w3=w3, b3=b3)


def reference_forward(x, p, compute_dtype=jnp.bfloat16):
    """Pure-JAX reference using the same bf16-operand / f32-accumulate casts."""
    w1 = p["w1"].astype(compute_dtype)
    w2 = p["w2"].astype(compute_dtype)
    w3 = p["w3"].astype(compute_dtype)
    h = jnp.dot(x.astype(compute_dtype), w1,
                preferred_element_type=jnp.float32) + p["b1"]
    h = jnp.maximum(h, 0.0)
    h = jnp.dot(h.astype(compute_dtype), w2,
                preferred_element_type=jnp.float32) + p["b2"]
    h = jnp.maximum(h, 0.0)
    return jnp.dot(h.astype(compute_dtype), w3,
                   preferred_element_type=jnp.float32) + p["b3"]


if __name__ == "__main__":
    key = jax.random.PRNGKey(0)
    kx, kx2, kp = jax.random.split(key, 3)

    B, in_c, out_c = 512, 128, 8
    x = jax.random.normal(kx, (B, in_c), jnp.float32)
    params = init_params(kp, in_c, out_c)

    # Even batch (grid of 2 x 256-row tiles).
    out = jax.block_until_ready(regression_forward(x, params))
    ref = reference_forward(x, params)
    assert out.shape == (B, out_c)
    assert jnp.allclose(out, ref, atol=1e-2, rtol=1e-2), "mismatch vs reference"

    # Ragged batch (exercises the pad-to-tile path, B not a multiple of bm).
    B2 = 300
    x2 = jax.random.normal(kx2, (B2, in_c), jnp.float32)
    out2 = jax.block_until_ready(regression_forward(x2, params))
    ref2 = reference_forward(x2, params)
    assert out2.shape == (B2, out_c)
    assert jnp.allclose(out2, ref2, atol=1e-2, rtol=1e-2), "ragged mismatch"

    print("KERNEL_OK")
</pallas_src>

<mosaic_0001>
module attributes {stable_mosaic.version = 11 : i64} {
  func.func @_regression_kernel(%arg0: i32, %arg1: memref<256x128xbf16, #tpu.memory_space<vmem>>, %arg2: memref<128x512xbf16, #tpu.memory_space<vmem>>, %arg3: memref<1x512xf32, #tpu.memory_space<vmem>>, %arg4: memref<512x512xbf16, #tpu.memory_space<vmem>>, %arg5: memref<1x512xf32, #tpu.memory_space<vmem>>, %arg6: memref<512x128xbf16, #tpu.memory_space<vmem>>, %arg7: memref<1x128xf32, #tpu.memory_space<vmem>>, %arg8: memref<256x128xf32, #tpu.memory_space<vmem>>) attributes {dimension_semantics = [#tpu.dimension_semantics<parallel>], iteration_bounds = array<i64: 2>, scalar_prefetch = 0 : i64, scratch_operands = 0 : i64, tpu.core_type = #tpu.core_type<tc>, window_params = [{transform_indices = @transform_0, window_bounds = array<i64: 256, 128>}, {pipeline_mode = #tpu.pipeline_mode<synchronous>, transform_indices = @transform_1, window_bounds = array<i64: 128, 512>}, {pipeline_mode = #tpu.pipeline_mode<synchronous>, transform_indices = @transform_2, window_bounds = array<i64: 1, 512>}, {pipeline_mode = #tpu.pipeline_mode<synchronous>, transform_indices = @transform_3, window_bounds = array<i64: 512, 512>}, {pipeline_mode = #tpu.pipeline_mode<synchronous>, transform_indices = @transform_4, window_bounds = array<i64: 1, 512>}, {pipeline_mode = #tpu.pipeline_mode<synchronous>, transform_indices = @transform_5, window_bounds = array<i64: 512, 128>}, {pipeline_mode = #tpu.pipeline_mode<synchronous>, transform_indices = @transform_6, window_bounds = array<i64: 1, 128>}, {transform_indices = @transform_7, window_bounds = array<i64: 256, 128>}]} {
    %c0 = arith.constant 0 : index
    %c0_0 = arith.constant 0 : index
    %0 = vector.load %arg1[%c0, %c0_0] : memref<256x128xbf16, #tpu.memory_space<vmem>>, vector<256x128xbf16>
    %c0_1 = arith.constant 0 : index
    %c0_2 = arith.constant 0 : index
    %1 = vector.load %arg2[%c0_1, %c0_2] : memref<128x512xbf16, #tpu.memory_space<vmem>>, vector<128x512xbf16>
    %cst = arith.constant dense<0.000000e+00> : vector<256x512xf32>
    %2 = tpu.matmul %0, %1, %cst {dimension_numbers = #tpu.dot_dimension_numbers<[1], [0], [0], [1], [0, 0, 1, 1], [], []>} : vector<256x128xbf16>, vector<128x512xbf16>, vector<256x512xf32> -> vector<256x512xf32>
    %c0_3 = arith.constant 0 : index
    %c0_4 = arith.constant 0 : index
    %3 = vector.load %arg3[%c0_3, %c0_4] : memref<1x512xf32, #tpu.memory_space<vmem>>, vector<1x512xf32>
    %4 = vector.broadcast %3 : vector<1x512xf32> to vector<256x512xf32>
    %5 = arith.addf %2, %4 : vector<256x512xf32>
    %cst_5 = arith.constant 0.000000e+00 : f32
    %6 = vector.broadcast %cst_5 : f32 to vector<256x512xf32>
    %7 = arith.maximumf %5, %6 : vector<256x512xf32>
    %8 = arith.truncf %7 : vector<256x512xf32> to vector<256x512xbf16>
    %c0_6 = arith.constant 0 : index
    %c0_7 = arith.constant 0 : index
    %9 = vector.load %arg4[%c0_6, %c0_7] : memref<512x512xbf16, #tpu.memory_space<vmem>>, vector<512x512xbf16>
    %cst_8 = arith.constant dense<0.000000e+00> : vector<256x512xf32>
    %10 = tpu.matmul %8, %9, %cst_8 {dimension_numbers = #tpu.dot_dimension_numbers<[1], [0], [0], [1], [0, 0, 1, 1], [], []>} : vector<256x512xbf16>, vector<512x512xbf16>, vector<256x512xf32> -> vector<256x512xf32>
    %c0_9 = arith.constant 0 : index
    %c0_10 = arith.constant 0 : index
    %11 = vector.load %arg5[%c0_9, %c0_10] : memref<1x512xf32, #tpu.memory_space<vmem>>, vector<1x512xf32>
    %12 = vector.broadcast %11 : vector<1x512xf32> to vector<256x512xf32>
    %13 = arith.addf %10, %12 : vector<256x512xf32>
    %cst_11 = arith.constant 0.000000e+00 : f32
    %14 = vector.broadcast %cst_11 : f32 to vector<256x512xf32>
    %15 = arith.maximumf %13, %14 : vector<256x512xf32>
    %16 = arith.truncf %15 : vector<256x512xf32> to vector<256x512xbf16>
    %c0_12 = arith.constant 0 : index
    %c0_13 = arith.constant 0 : index
    %17 = vector.load %arg6[%c0_12, %c0_13] : memref<512x128xbf16, #tpu.memory_space<vmem>>, vector<512x128xbf16>
    %cst_14 = arith.constant dense<0.000000e+00> : vector<256x128xf32>
    %18 = tpu.matmul %16, %17, %cst_14 {dimension_numbers = #tpu.dot_dimension_numbers<[1], [0], [0], [1], [0, 0, 1, 1], [], []>} : vector<256x512xbf16>, vector<512x128xbf16>, vector<256x128xf32> -> vector<256x128xf32>
    %c0_15 = arith.constant 0 : index
    %c0_16 = arith.constant 0 : index
    %19 = vector.load %arg7[%c0_15, %c0_16] : memref<1x128xf32, #tpu.memory_space<vmem>>, vector<1x128xf32>
    %20 = vector.broadcast %19 : vector<1x128xf32> to vector<256x128xf32>
    %21 = arith.addf %18, %20 : vector<256x128xf32>
    %c0_17 = arith.constant 0 : index
    %c0_18 = arith.constant 0 : index
    %22 = vector.load %arg8[%c0_17, %c0_18] : memref<256x128xf32, #tpu.memory_space<vmem>>, vector<256x128xf32>
    tpu.vector_store %arg8[%c0_17, %c0_18], %21 {strides = array<i32>} : memref<256x128xf32, #tpu.memory_space<vmem>>, vector<256x128xf32>,
    return
  }
  func.func @transform_0(%arg0: i32) -> (i32, i32) {
    %c0_i32 = arith.constant 0 : i32
    %c0_i32_0 = arith.constant 0 : i32
    return %arg0, %c0_i32 : i32, i32
  }
  func.func @transform_1(%arg0: i32) -> (i32, i32) {
    %c0_i32 = arith.constant 0 : i32
    %c0_i32_0 = arith.constant 0 : i32
    %c0_i32_1 = arith.constant 0 : i32
    return %c0_i32, %c0_i32_0 : i32, i32
  }
  func.func @transform_2(%arg0: i32) -> (i32, i32) {
    %c0_i32 = arith.constant 0 : i32
    %c0_i32_0 = arith.constant 0 : i32
    %c0_i32_1 = arith.constant 0 : i32
    return %c0_i32, %c0_i32_0 : i32, i32
  }
  func.func @transform_3(%arg0: i32) -> (i32, i32) {
    %c0_i32 = arith.constant 0 : i32
    %c0_i32_0 = arith.constant 0 : i32
    %c0_i32_1 = arith.constant 0 : i32
    return %c0_i32, %c0_i32_0 : i32, i32
  }
  func.func @transform_4(%arg0: i32) -> (i32, i32) {
    %c0_i32 = arith.constant 0 : i32
    %c0_i32_0 = arith.constant 0 : i32
    %c0_i32_1 = arith.constant 0 : i32
    return %c0_i32, %c0_i32_0 : i32, i32
  }
  func.func @transform_5(%arg0: i32) -> (i32, i32) {
    %c0_i32 = arith.constant 0 : i32
    %c0_i32_0 = arith.constant 0 : i32
    %c0_i32_1 = arith.constant 0 : i32
    return %c0_i32, %c0_i32_0 : i32, i32
  }
  func.func @transform_6(%arg0: i32) -> (i32, i32) {
    %c0_i32 = arith.constant 0 : i32
    %c0_i32_0 = arith.constant 0 : i32
    %c0_i32_1 = arith.constant 0 : i32
    return %c0_i32, %c0_i32_0 : i32, i32
  }
  func.func @transform_7(%arg0: i32) -> (i32, i32) {
    %c0_i32 = arith.constant 0 : i32
    %c0_i32_0 = arith.constant 0 : i32
    return %arg0, %c0_i32 : i32, i32
  }
}

</mosaic_0001>

<llo_original>
// kernel: tpu_custom_call.1
$region0: #{tpu_custom_call.1}
  #allocation0 [shape = 'u32[]', space=smem, size = 0x4, offset = 0x4, fixed_abs, tag = 'smem constant byte address 0x4 - core index']
  #allocation1 [shape = 'u32[144,128]{1,0:T(1,128)}', space=vmem, size = 0x12000, scoped, tag = 'internal scratch']
  %s0 = inlined_call_operand.hbm [shape: bf16[512,128], index: 0, kind: input, shape index: {}]
  %s1 = inlined_call_operand.hbm [shape: bf16[128,512], index: 1, kind: input, shape index: {}]
  %s2 = inlined_call_operand.vmem [shape: f32[1,512], index: 2, kind: input, shape index: {}]
  %s3 = inlined_call_operand.hbm [shape: bf16[512,512], index: 3, kind: input, shape index: {}]
  %s4 = inlined_call_operand.vmem [shape: f32[1,512], index: 4, kind: input, shape index: {}]
  %s5 = inlined_call_operand.hbm [shape: bf16[512,128], index: 5, kind: input, shape index: {}]
  %s6 = inlined_call_operand.vmem [shape: f32[1,128], index: 6, kind: input, shape index: {}]
  %s7 = inlined_call_operand.hbm [shape: f32[512,128], index: 7, kind: output, shape index: {}]
  %s8 = sld [smem:[#allocation0]]
  $region77: #{tpu_custom_call.1} parent=0
    _
  %s10 = ssub.s32 1, %s8
  %s11 = scalar_select 0, %s10, %s8
  $region1: #{tpu_custom_call.1} parent=0
    #allocation2 [shape = 'u8[131072]{0}', space=vmem, size = 0x20000, scoped, tag = 'input window, operand 0']
    #allocation3 [shape = 's32[2]{0}', space=sflag, size = 0x8, scoped, tag = 'scoped memory for tpu_custom_call.1']
    #allocation4 [shape = 's32[2]{0}', space=sflag, size = 0x8, scoped, tag = 'scoped memory for tpu_custom_call.1']
    #allocation5 [shape = 'u8[131072]{0}', space=vmem, size = 0x20000, scoped, tag = 'input window, operand 1, single buffered']
    #allocation6 [shape = 's32[1]{0}', space=sflag, size = 0x4, scoped, tag = 'scoped memory for tpu_custom_call.1']
    #allocation7 [shape = 'u8[524288]{0}', space=vmem, size = 0x80000, scoped, tag = 'input window, operand 3, single buffered']
    #allocation8 [shape = 'u8[131072]{0}', space=vmem, size = 0x20000, scoped, tag = 'input window, operand 5, single buffered']
    #allocation9 [shape = 's32[1]{0}', space=sflag, size = 0x4, scoped, tag = 'scoped memory for tpu_custom_call.1']
    #allocation10 [shape = 'u8[262144]{0}', space=vmem, size = 0x40000, scoped, tag = 'output window, operand 0']
    %12 = vsyncpa [#allocation3], 0
    %s13 = scalar_lea.sflag [#allocation3], 1
    %14 = vsyncpa %s13, 0
    %15 = vsyncpa [#allocation6], 0
    %16 = vsyncpa [#allocation9], 0
    %17 = vsyncpa [#allocation4], 0
    %s18 = scalar_lea.sflag [#allocation4], 1
    %19 = vsyncpa %s18, 0
    loop: start=0, step=1, limit=4
    $region2: #{tpu_custom_call.1} parent=1 // loop_pre_header
      _
    $region3: #{tpu_custom_call.1} parent=1 // loop_header
      %s21 = sphi 0, %s25
      %p22 = scmp.ge.s32.totalorder %s21, 4
      %s31 = sphi 0, %s33
      %s34 = sphi 0, %s31
      %s35 = sphi 0, %s34
      %s51 = sphi 0, %s35
      %s55 = sphi 0, %s55
      %s57 = sphi 0, %s55
      %s58 = sphi 0, %s57
      %s72 = sphi 0, %s58
      %s76 = sphi 0, %s76
      %s78 = sphi 0, %s76
      %s79 = sphi 0, %s78
      %s93 = sphi 0, %s79
      %s97 = sphi 0, %s97
      %s99 = sphi 0, %s97
      %s100 = sphi 0, %s99
      %s114 = sphi 0, %s100
      %s118 = sphi 0, %s118
      %s120 = sphi 0, %s118
      %s121 = sphi 0, %s120
      %s135 = sphi 0, %s121
      %s139 = sphi 0, %s139
      %s141 = sphi 0, %s139
      %s142 = sphi 0, %s141
      %s156 = sphi 0, %s142
      %s160 = sphi 0, %s160
      %s162 = sphi 0, %s160
      %s163 = sphi 0, %s162
      %s177 = sphi 0, %s163
      %s183 = sphi 0, %s185
      %s186 = sphi 0, %s183
      %s187 = sphi 0, %s186
      %s203 = sphi 0, %s187
    $region4: #{tpu_custom_call.1} parent=1 // loop_header_branch
      %24 = sbr.rel (%p22) target = $region8
    $region5: #{tpu_custom_call.1} parent=1 // loop_body
      %s26 = ssub.s32 %s21, 1
      %s27 = ssub.s32 %s21, 2
      %s28 = sadd.s32 %s21, 1
      %s29 = ssub.s32 %s21, %s28
      %p30 = scmp.eq.s32.totalorder %s29, 0
      %s32 = sadd.s32 %s31, 1
      %s33 = scalar_select %p30, %s31, %s32
      %p36 = pneg %p30
      %p37 = scmp.eq.s32.totalorder %s21, 1
      %p38 = por %p36, %p37
      %p39 = scmp.ne.s32.totalorder %s31, %s34
      %p40 = scmp.eq.s32.totalorder %s21, 0
      %p41 = por %p39, %p40
      %p42 = scmp.ne.s32.totalorder %s31, %s34
      %p43 = scmp.eq.s32.totalorder %s26, 1
      %p44 = por %p42, %p43
      %p45 = scmp.ne.s32.totalorder %s34, %s35
      %p46 = scmp.eq.s32.totalorder %s26, 0
      %p47 = por %p45, %p46
      %p48 = scmp.ne.s32.totalorder %s34, %s35
      %p49 = scmp.eq.s32.totalorder %s27, 1
      %p50 = por %p48, %p49
      %p52 = scmp.ne.s32.totalorder %s35, %s51
      %p53 = scmp.eq.s32.totalorder %s27, 0
      %p54 = por %p52, %p53
      %s56 = sadd.s32 %s55, 1
      %p59 = scmp.eq.s32.totalorder %s21, 1
      %p60 = scmp.ne.s32.totalorder %s55, %s57
      %p61 = scmp.eq.s32.totalorder %s21, 0
      %p62 = por %p60, %p61
      %p63 = scmp.ne.s32.totalorder %s55, %s57
      %p64 = scmp.eq.s32.totalorder %s26, 1
      %p65 = por %p63, %p64
      %p66 = scmp.ne.s32.totalorder %s57, %s58
      %p67 = scmp.eq.s32.totalorder %s26, 0
      %p68 = por %p66, %p67
      %p69 = scmp.ne.s32.totalorder %s57, %s58
      %p70 = scmp.eq.s32.totalorder %s27, 1
      %p71 = por %p69, %p70
      %p73 = scmp.ne.s32.totalorder %s58, %s72
      %p74 = scmp.eq.s32.totalorder %s27, 0
      %p75 = por %p73, %p74
      %s77 = sadd.s32 %s76, 1
      %p80 = scmp.eq.s32.totalorder %s21, 1
      %p81 = scmp.ne.s32.totalorder %s76, %s78
      %p82 = scmp.eq.s32.totalorder %s21, 0
      %p83 = por %p81, %p82
      %p84 = scmp.ne.s32.totalorder %s76, %s78
      %p85 = scmp.eq.s32.totalorder %s26, 1
      %p86 = por %p84, %p85
      %p87 = scmp.ne.s32.totalorder %s78, %s79
      %p88 = scmp.eq.s32.totalorder %s26, 0
      %p89 = por %p87, %p88
      %p90 = scmp.ne.s32.totalorder %s78, %s79
      %p91 = scmp.eq.s32.totalorder %s27, 1
      %p92 = por %p90, %p91
      %p94 = scmp.ne.s32.totalorder %s79, %s93
      %p95 = scmp.eq.s32.totalorder %s27, 0
      %p96 = por %p94, %p95
      %s98 = sadd.s32 %s97, 1
      %p101 = scmp.eq.s32.totalorder %s21, 1
      %p102 = scmp.ne.s32.totalorder %s97, %s99
      %p103 = scmp.eq.s32.totalorder %s21, 0
      %p104 = por %p102, %p103
      %p105 = scmp.ne.s32.totalorder %s97, %s99
      %p106 = scmp.eq.s32.totalorder %s26, 1
      %p107 = por %p105, %p106
      %p108 = scmp.ne.s32.totalorder %s99, %s100
      %p109 = scmp.eq.s32.totalorder %s26, 0
      %p110 = por %p108, %p109
      %p111 = scmp.ne.s32.totalorder %s99, %s100
      %p112 = scmp.eq.s32.totalorder %s27, 1
      %p113 = por %p111, %p112
      %p115 = scmp.ne.s32.totalorder %s100, %s114
      %p116 = scmp.eq.s32.totalorder %s27, 0
      %p117 = por %p115, %p116
      %s119 = sadd.s32 %s118, 1
      %p122 = scmp.eq.s32.totalorder %s21, 1
      %p123 = scmp.ne.s32.totalorder %s118, %s120
      %p124 = scmp.eq.s32.totalorder %s21, 0
      %p125 = por %p123, %p124
      %p126 = scmp.ne.s32.totalorder %s118, %s120
      %p127 = scmp.eq.s32.totalorder %s26, 1
      %p128 = por %p126, %p127
      %p129 = scmp.ne.s32.totalorder %s120, %s121
      %p130 = scmp.eq.s32.totalorder %s26, 0
      %p131 = por %p129, %p130
      %p132 = scmp.ne.s32.totalorder %s120, %s121
      %p133 = scmp.eq.s32.totalorder %s27, 1
      %p134 = por %p132, %p133
      %p136 = scmp.ne.s32.totalorder %s121, %s135
      %p137 = scmp.eq.s32.totalorder %s27, 0
      %p138 = por %p136, %p137
      %s140 = sadd.s32 %s139, 1
      %p143 = scmp.eq.s32.totalorder %s21, 1
      %p144 = scmp.ne.s32.totalorder %s139, %s141
      %p145 = scmp.eq.s32.totalorder %s21, 0
      %p146 = por %p144, %p145
      %p147 = scmp.ne.s32.totalorder %s139, %s141
      %p148 = scmp.eq.s32.totalorder %s26, 1
      %p149 = por %p147, %p148
      %p150 = scmp.ne.s32.totalorder %s141, %s142
      %p151 = scmp.eq.s32.totalorder %s26, 0
      %p152 = por %p150, %p151
      %p153 = scmp.ne.s32.totalorder %s141, %s142
      %p154 = scmp.eq.s32.totalorder %s27, 1
      %p155 = por %p153, %p154
      %p157 = scmp.ne.s32.totalorder %s142, %s156
      %p158 = scmp.eq.s32.totalorder %s27, 0
      %p159 = por %p157, %p158
      %s161 = sadd.s32 %s160, 1
      %p164 = scmp.eq.s32.totalorder %s21, 1
      %p165 = scmp.ne.s32.totalorder %s160, %s162
      %p166 = scmp.eq.s32.totalorder %s21, 0
      %p167 = por %p165, %p166
      %p168 = scmp.ne.s32.totalorder %s160, %s162
      %p169 = scmp.eq.s32.totalorder %s26, 1
      %p170 = por %p168, %p169
      %p171 = scmp.ne.s32.totalorder %s162, %s163
      %p172 = scmp.eq.s32.totalorder %s26, 0
      %p173 = por %p171, %p172
      %p174 = scmp.ne.s32.totalorder %s162, %s163
      %p175 = scmp.eq.s32.totalorder %s27, 1
      %p176 = por %p174, %p175
      %p178 = scmp.ne.s32.totalorder %s163, %s177
      %p179 = scmp.eq.s32.totalorder %s27, 0
      %p180 = por %p178, %p179
      %s181 = ssub.s32 %s21, %s28
      %p182 = scmp.eq.s32.totalorder %s181, 0
      %s184 = sadd.s32 %s183, 1
      %s185 = scalar_select %p182, %s183, %s184
      %p188 = pneg %p182
      %p189 = scmp.eq.s32.totalorder %s21, 1
      %p190 = por %p188, %p189
      %p191 = scmp.ne.s32.totalorder %s183, %s186
      %p192 = scmp.eq.s32.totalorder %s21, 0
      %p193 = por %p191, %p192
      %p194 = scmp.ne.s32.totalorder %s183, %s186
      %p195 = scmp.eq.s32.totalorder %s26, 1
      %p196 = por %p194, %p195
      %p197 = scmp.ne.s32.totalorder %s186, %s187
      %p198 = scmp.eq.s32.totalorder %s26, 0
      %p199 = por %p197, %p198
      %p200 = scmp.ne.s32.totalorder %s186, %s187
      %p201 = scmp.eq.s32.totalorder %s27, 1
      %p202 = por %p200, %p201
      %p204 = scmp.ne.s32.totalorder %s187, %s203
      %p205 = scmp.eq.s32.totalorder %s27, 0
      %p206 = por %p204, %p205
      %p207 = scmp.le.s32.totalorder 1, %s21
      %p208 = scmp.lt.s32.totalorder %s21, 3
      %p209 = pnand %p207, %p208
      %p210 = pneg %p209
      // Predicated region
      $region9: #{tpu_custom_call.1} parent=5 // pred_check
        _
      $region10: #{tpu_custom_call.1} parent=5 // pred_check_branch
        %212 = sbr.rel (%p209) target = $region12
      $region11: #{tpu_custom_call.1} parent=5 // pred_region
        %s213 = ssub.s32 %s21, 1
        // Predicated region
        $region13: #{tpu_custom_call.1} parent=11 // pred_check
          %p214 = pneg %p68
        $region14: #{tpu_custom_call.1} parent=11 // pred_check_branch
          %216 = sbr.rel (%p214) target = $region16
        $region15: #{tpu_custom_call.1} parent=11 // pred_region
          %s218 = ssub.s32 4096, 4096
          %219 = vsyncadd [#allocation6], %s218
          %s220 = sshll.u32 [#allocation5], 4
          %s221 = int_to_ptr.vmem [resolvable:$true] %s220
          %226 = dma.hbm_to_vmem [thread:$0]  %s1, 4096, %s221, [#allocation6], 256, 256, 16
        $region16: #{tpu_custom_call.1} parent=11 // pred_fallthru
          _
        // Predicated region
        $region17: #{tpu_custom_call.1} parent=11 // pred_check
          %p227 = pneg %p89
        $region18: #{tpu_custom_call.1} parent=11 // pred_check_branch
          %229 = sbr.rel (%p227) target = $region20
        $region19: #{tpu_custom_call.1} parent=11 // pred_region
          _
        $region20: #{tpu_custom_call.1} parent=11 // pred_fallthru
          _
        // Predicated region
        $region21: #{tpu_custom_call.1} parent=11 // pred_check
          %p230 = pneg %p110
        $region22: #{tpu_custom_call.1} parent=11 // pred_check_branch
          %232 = sbr.rel (%p230) target = $region24
        $region23: #{tpu_custom_call.1} parent=11 // pred_region
          %s234 = ssub.s32 16384, 16384
          %235 = vsyncadd [#allocation6], %s234
          %s236 = sshll.u32 [#allocation7], 4
          %s237 = int_to_ptr.vmem [resolvable:$true] %s236
          %242 = dma.hbm_to_vmem [thread:$0]  %s3, 16384, %s237, [#allocation6], 256, 256, 16
        $region24: #{tpu_custom_call.1} parent=11 // pred_fallthru
          _
        // Predicated region
        $region25: #{tpu_custom_call.1} parent=11 // pred_check
          %p243 = pneg %p131
        $region26: #{tpu_custom_call.1} parent=11 // pred_check_branch
          %245 = sbr.rel (%p243) target = $region28
        $region27: #{tpu_custom_call.1} parent=11 // pred_region
          _
        $region28: #{tpu_custom_call.1} parent=11 // pred_fallthru
          _
        // Predicated region
        $region29: #{tpu_custom_call.1} parent=11 // pred_check
          %p246 = pneg %p152
        $region30: #{tpu_custom_call.1} parent=11 // pred_check_branch
          %248 = sbr.rel (%p246) target = $region32
        $region31: #{tpu_custom_call.1} parent=11 // pred_region
          %s250 = ssub.s32 4096, 4096
          %251 = vsyncadd [#allocation9], %s250
          %s252 = sshll.u32 [#allocation8], 4
          %s253 = int_to_ptr.vmem [resolvable:$true] %s252
          %258 = dma.hbm_to_vmem [thread:$0]  %s5, 4096, %s253, [#allocation9], 64, 64, 4
        $region32: #{tpu_custom_call.1} parent=11 // pred_fallthru
          _
        // Predicated region
        $region33: #{tpu_custom_call.1} parent=11 // pred_check
          %p259 = pneg %p173
        $region34: #{tpu_custom_call.1} parent=11 // pred_check_branch
          %261 = sbr.rel (%p259) target = $region36
        $region35: #{tpu_custom_call.1} parent=11 // pred_region
          _
        $region36: #{tpu_custom_call.1} parent=11 // pred_fallthru
          _
      $region12: #{tpu_custom_call.1} parent=5 // pred_fallthru
        _
      %p262 = scmp.lt.s32.totalorder %s21, 2
      // Predicated region
      $region37: #{tpu_custom_call.1} parent=5 // pred_check
        %p263 = pneg %p262
      $region38: #{tpu_custom_call.1} parent=5 // pred_check_branch
        %265 = sbr.rel (%p263) target = $region40
      $region39: #{tpu_custom_call.1} parent=5 // pred_region
        // Predicated region
        $region41: #{tpu_custom_call.1} parent=39 // pred_check
          %p266 = pneg %p41
        $region42: #{tpu_custom_call.1} parent=39 // pred_check_branch
          %268 = sbr.rel (%p266) target = $region44
        $region43: #{tpu_custom_call.1} parent=39 // pred_region
          %s269 = sand.u32 %s31, 1
          %s270 = scalar_lea.sflag [#allocation3], %s269
          %s271 = sand.u32 %s31, 1
          %s272 = smul.addr %s271, 128
          %s273 = scalar_lea.vmem [#allocation2], %s272
          %s274 = smul.u32 32, %s21
          %s276 = ssub.s32 2048, 2048
          %277 = vsyncadd %s270, %s276
          %s278 = smul.addr %s274, 64
          %s279 = scalar_lea.hbm %s0, %s278
          %s280 = sshll.u32 %s273, 4
          %s281 = int_to_ptr.vmem [resolvable:$true] %s280
          %286 = dma.hbm_to_vmem [thread:$0]  %s279, 2048, %s281, %s270, 64, 64, 4
        $region44: #{tpu_custom_call.1} parent=39 // pred_fallthru
          _
      $region40: #{tpu_custom_call.1} parent=5 // pred_fallthru
        _
      %p287 = scmp.le.s32.totalorder 1, %s21
      %p288 = scmp.lt.s32.totalorder %s21, 3
      %p289 = pnand %p287, %p288
      %p290 = pneg %p289
      // Predicated region
      $region45: #{tpu_custom_call.1} parent=5 // pred_check
        _
      $region46: #{tpu_custom_call.1} parent=5 // pred_check_branch
        %292 = sbr.rel (%p289) target = $region48
      $region47: #{tpu_custom_call.1} parent=5 // pred_region
        %s293 = ssub.s32 %s21, 1
        %s294 = sand.u32 %s34, 1
        %s295 = scalar_lea.sflag [#allocation3], %s294
        %s296 = sand.u32 %s34, 1
        %s297 = smul.addr %s296, 128
        %s298 = scalar_lea.vmem [#allocation2], %s297
        // Predicated region
        $region49: #{tpu_custom_call.1} parent=47 // pred_check
          %p299 = pneg %p47
        $region50: #{tpu_custom_call.1} parent=47 // pred_check_branch
          %301 = sbr.rel (%p299) target = $region52
        $region51: #{tpu_custom_call.1} parent=47 // pred_region
          %302 = dma.done %s295, 2048
        $region52: #{tpu_custom_call.1} parent=47 // pred_fallthru
          _
        // Predicated region
        $region53: #{tpu_custom_call.1} parent=47 // pred_check
          %p303 = pneg %p68
        $region54: #{tpu_custom_call.1} parent=47 // pred_check_branch
          %305 = sbr.rel (%p303) target = $region56
        $region55: #{tpu_custom_call.1} parent=47 // pred_region
          %306 = dma.done [#allocation6], 4096
        $region56: #{tpu_custom_call.1} parent=47 // pred_fallthru
          _
        // Predicated region
        $region57: #{tpu_custom_call.1} parent=47 // pred_check
          %p307 = pneg %p110
        $region58: #{tpu_custom_call.1} parent=47 // pred_check_branch
          %309 = sbr.rel (%p307) target = $region60
        $region59: #{tpu_custom_call.1} parent=47 // pred_region
          %310 = dma.done [#allocation6], 16384
        $region60: #{tpu_custom_call.1} parent=47 // pred_fallthru
          _
        // Predicated region
        $region61: #{tpu_custom_call.1} parent=47 // pred_check
          %p311 = pneg %p152
        $region62: #{tpu_custom_call.1} parent=47 // pred_check_branch
          %313 = sbr.rel (%p311) target = $region64
        $region63: #{tpu_custom_call.1} parent=47 // pred_region
          %314 = dma.done [#allocation9], 4096
        $region64: #{tpu_custom_call.1} parent=47 // pred_fallthru
          _
        %s315 = sand.u32 %s34, 1
        %s316 = scalar_lea.sflag [#allocation3], %s315
        %s317 = sand.u32 %s34, 1
        %s318 = smul.addr %s317, 128
        %s319 = scalar_lea.vmem [#allocation2], %s318
        %p320 = pneg %p47
        %p321 = pneg %p44
        %p322 = pneg %p68
        %p323 = pneg %p65
        %p324 = pneg %p89
        %p325 = pneg %p86
        %p326 = pneg %p110
        %p327 = pneg %p107
        %p328 = pneg %p131
        %p329 = pneg %p128
        %p330 = pneg %p152
        %p331 = pneg %p149
        %p332 = pneg %p173
        %p333 = pneg %p170
        %p334 = pneg %p199
        %p335 = pneg %p196
        %s336 = sand.u32 %s186, 1
        %s337 = scalar_lea.sflag [#allocation4], %s336
        %s338 = sand.u32 %s186, 1
        %s339 = smul.addr %s338, 256
        %s340 = scalar_lea.vmem [#allocation10], %s339
        %s341 = smul.u32 32, %s26
        %s342 = smul.u32 32, %s26
        %v344 = vld [vmem:[%s298] sm:$0xf]
        %v345 = vld [vmem:[%s298 + $0x4] sm:$0xf]
        %v346 = vld [vmem:[%s298 + $0x8] sm:$0xf]
        %v347 = vld [vmem:[%s298 + $0xc] sm:$0xf]
        %v348 = vld [vmem:[%s298 + $0x10] sm:$0xf]
        %v349 = vld [vmem:[%s298 + $0x14] sm:$0xf]
        %v350 = vld [vmem:[%s298 + $0x18] sm:$0xf]
        %v351 = vld [vmem:[%s298 + $0x1c] sm:$0xf]
        %v352 = vld [vmem:[%s298 + $0x20] sm:$0xf]
        %v353 = vld [vmem:[%s298 + $0x24] sm:$0xf]
        %v354 = vld [vmem:[%s298 + $0x28] sm:$0xf]
        %v355 = vld [vmem:[%s298 + $0x2c] sm:$0xf]
        %v356 = vld [vmem:[%s298 + $0x30] sm:$0xf]
        %v357 = vld [vmem:[%s298 + $0x34] sm:$0xf]
        %v358 = vld [vmem:[%s298 + $0x38] sm:$0xf]
        %v359 = vld [vmem:[%s298 + $0x3c] sm:$0xf]
        %v360 = vld [vmem:[%s298 + $0x40] sm:$0xf]
        %v361 = vld [vmem:[%s298 + $0x44] sm:$0xf]
        %v362 = vld [vmem:[%s298 + $0x48] sm:$0xf]
        %v363 = vld [vmem:[%s298 + $0x4c] sm:$0xf]
        %v364 = vld [vmem:[%s298 + $0x50] sm:$0xf]
        %v365 = vld [vmem:[%s298 + $0x54] sm:$0xf]
        %v366 = vld [vmem:[%s298 + $0x58] sm:$0xf]
        %v367 = vld [vmem:[%s298 + $0x5c] sm:$0xf]
        %v368 = vld [vmem:[%s298 + $0x60] sm:$0xf]
        %v369 = vld [vmem:[%s298 + $0x64] sm:$0xf]
        %v370 = vld [vmem:[%s298 + $0x68] sm:$0xf]
        %v371 = vld [vmem:[%s298 + $0x6c] sm:$0xf]
        %v372 = vld [vmem:[%s298 + $0x70] sm:$0xf]
        %v373 = vld [vmem:[%s298 + $0x74] sm:$0xf]
        %v374 = vld [vmem:[%s298 + $0x78] sm:$0xf]
        %v375 = vld [vmem:[%s298 + $0x7c] sm:$0xf]
        %v376 = vld [vmem:[#allocation5] sm:$0xff]
        %v377 = vld [vmem:[#allocation5 + $0x8] sm:$0xff]
        %v378 = vld [vmem:[#allocation5 + $0x10] sm:$0xff]
        %v379 = vld [vmem:[#allocation5 + $0x18] sm:$0xff]
        %v380 = vld [vmem:[#allocation5 + $0x20] sm:$0xff]
        %v381 = vld [vmem:[#allocation5 + $0x28] sm:$0xff]
        %v382 = vld [vmem:[#allocation5 + $0x30] sm:$0xff]
        %v383 = vld [vmem:[#allocation5 + $0x38] sm:$0xff]
        %v384 = vld [vmem:[#allocation5 + $0x40] sm:$0xff]
        %v385 = vld [vmem:[#allocation5 + $0x48] sm:$0xff]
        %v386 = vld [vmem:[#allocation5 + $0x50] sm:$0xff]
        %v387 = vld [vmem:[#allocation5 + $0x58] sm:$0xff]
        %v388 = vld [vmem:[#allocation5 + $0x60] sm:$0xff]
        %v389 = vld [vmem:[#allocation5 + $0x68] sm:$0xff]
        %v390 = vld [vmem:[#allocation5 + $0x70] sm:$0xff]
        %v391 = vld [vmem:[#allocation5 + $0x78] sm:$0xff]
        %v392 = vld [vmem:[#allocation5 + $0x80] sm:$0xff]
        %v393 = vld [vmem:[#allocation5 + $0x88] sm:$0xff]
        %v394 = vld [vmem:[#allocation5 + $0x90] sm:$0xff]
        %v395 = vld [vmem:[#allocation5 + $0x98] sm:$0xff]
        %v396 = vld [vmem:[#allocation5 + $0xa0] sm:$0xff]
        %v397 = vld [vmem:[#allocation5 + $0xa8] sm:$0xff]
        %v398 = vld [vmem:[#allocation5 + $0xb0] sm:$0xff]
        %v399 = vld [vmem:[#allocation5 + $0xb8] sm:$0xff]
        %v400 = vld [vmem:[#allocation5 + $0xc0] sm:$0xff]
        %v401 = vld [vmem:[#allocation5 + $0xc8] sm:$0xff]
        %v402 = vld [vmem:[#allocation5 + $0xd0] sm:$0xff]
        %v403 = vld [vmem:[#allocation5 + $0xd8] sm:$0xff]
        %v404 = vld [vmem:[#allocation5 + $0xe0] sm:$0xff]
        %v405 = vld [vmem:[#allocation5 + $0xe8] sm:$0xff]
        %v406 = vld [vmem:[#allocation5 + $0xf0] sm:$0xff]
        %v407 = vld [vmem:[#allocation5 + $0xf8] sm:$0xff]
        %v408 = vld [vmem:[%s2] sm:$0xf]
        %v410 = vlaneseq
        %v411 = vshrl.u32 %v410, 7
        %v412 = vsub.s32 0, %v411
        %v413 = vrot.slane %v408, %v412
        %v414 = vlaneseq
        %v415 = vshrl.u32 %v414, 7
        %v416 = vsub.s32 1, %v415
        %v417 = vrot.slane %v408, %v416
        %v418 = vlaneseq
        %v419 = vshrl.u32 %v418, 7
        %v420 = vsub.s32 2, %v419
        %v421 = vrot.slane %v408, %v420
        %v422 = vlaneseq
        %v423 = vshrl.u32 %v422, 7
        %v424 = vsub.s32 3, %v423
        %v425 = vrot.slane %v408, %v424
        %v462 = vunpack.c.l.b16 %v344
        %v463 = vunpack.c.l.b16 %v345
        %v464 = vunpack.c.l.b16 %v346
        %v465 = vunpack.c.l.b16 %v347
        %v466 = vunpack.c.l.b16 %v348
        %v467 = vunpack.c.l.b16 %v349
        %v468 = vunpack.c.l.b16 %v350
        %v469 = vunpack.c.l.b16 %v351
        %v470 = vunpack.c.l.b16 %v352
        %v471 = vunpack.c.l.b16 %v353
        %v472 = vunpack.c.l.b16 %v354
        %v473 = vunpack.c.l.b16 %v355
        %v474 = vunpack.c.l.b16 %v356
        %v475 = vunpack.c.l.b16 %v357
        %v476 = vunpack.c.l.b16 %v358
        %v477 = vunpack.c.l.b16 %v359
        %v478 = vunpack.c.l.b16 %v360
        %v479 = vunpack.c.l.b16 %v361
        %v480 = vunpack.c.l.b16 %v362
        %v481 = vunpack.c.l.b16 %v363
        %v482 = vunpack.c.l.b16 %v364
        %v483 = vunpack.c.l.b16 %v365
        %v484 = vunpack.c.l.b16 %v366
        %v485 = vunpack.c.l.b16 %v367
        %v486 = vunpack.c.l.b16 %v368
        %v487 = vunpack.c.l.b16 %v369
        %v488 = vunpack.c.l.b16 %v370
        %v489 = vunpack.c.l.b16 %v371
        %v490 = vunpack.c.l.b16 %v372
        %v491 = vunpack.c.l.b16 %v373
        %v492 = vunpack.c.l.b16 %v374
        %v493 = vunpack.c.l.b16 %v375
        %v494 = vpack.c.b16 %v463, %v462
        %v495 = vpack.c.b16 %v465, %v464
        %v496 = vpack.c.b16 %v467, %v466
        %v497 = vpack.c.b16 %v469, %v468
        %v498 = vpack.c.b16 %v471, %v470
        %v499 = vpack.c.b16 %v473, %v472
        %v500 = vpack.c.b16 %v475, %v474
        %v501 = vpack.c.b16 %v477, %v476
        %v502 = vpack.c.b16 %v479, %v478
        %v503 = vpack.c.b16 %v481, %v480
        %v504 = vpack.c.b16 %v483, %v482
        %v505 = vpack.c.b16 %v485, %v484
        %v506 = vpack.c.b16 %v487, %v486
        %v507 = vpack.c.b16 %v489, %v488
        %v508 = vpack.c.b16 %v491, %v490
        %v509 = vpack.c.b16 %v493, %v492
        %v558 = vunpack.c.l.b16 %v376
        %v559 = vunpack.c.h.b16 %v376
        %v560 = vunpack.c.l.b16 %v377
        %v561 = vunpack.c.h.b16 %v377
        %v562 = vunpack.c.l.b16 %v378
        %v563 = vunpack.c.h.b16 %v378
        %v564 = vunpack.c.l.b16 %v379
        %v565 = vunpack.c.h.b16 %v379
        %v566 = vunpack.c.l.b16 %v380
        %v567 = vunpack.c.h.b16 %v380
        %v568 = vunpack.c.l.b16 %v381
        %v569 = vunpack.c.h.b16 %v381
        %v570 = vunpack.c.l.b16 %v382
        %v571 = vunpack.c.h.b16 %v382
        %v572 = vunpack.c.l.b16 %v383
        %v573 = vunpack.c.h.b16 %v383
        %v574 = vunpack.c.l.b16 %v384
        %v575 = vunpack.c.h.b16 %v384
        %v576 = vunpack.c.l.b16 %v385
        %v577 = vunpack.c.h.b16 %v385
        %v578 = vunpack.c.l.b16 %v386
        %v579 = vunpack.c.h.b16 %v386
        %v580 = vunpack.c.l.b16 %v387
        %v581 = vunpack.c.h.b16 %v387
        %v582 = vunpack.c.l.b16 %v388
        %v583 = vunpack.c.h.b16 %v388
        %v584 = vunpack.c.l.b16 %v389
        %v585 = vunpack.c.h.b16 %v389
        %v586 = vunpack.c.l.b16 %v390
        %v587 = vunpack.c.h.b16 %v390
        %v588 = vunpack.c.l.b16 %v391
        %v589 = vunpack.c.h.b16 %v391
        %v590 = vunpack.c.l.b16 %v392
        %v591 = vunpack.c.h.b16 %v392
        %v592 = vunpack.c.l.b16 %v393
        %v593 = vunpack.c.h.b16 %v393
        %v594 = vunpack.c.l.b16 %v394
        %v595 = vunpack.c.h.b16 %v394
        %v596 = vunpack.c.l.b16 %v395
        %v597 = vunpack.c.h.b16 %v395
        %v598 = vunpack.c.l.b16 %v396
        %v599 = vunpack.c.h.b16 %v396
        %v600 = vunpack.c.l.b16 %v397
        %v601 = vunpack.c.h.b16 %v397
        %v602 = vunpack.c.l.b16 %v398
        %v603 = vunpack.c.h.b16 %v398
        %v604 = vunpack.c.l.b16 %v399
        %v605 = vunpack.c.h.b16 %v399
        %v606 = vunpack.c.l.b16 %v400
        %v607 = vunpack.c.h.b16 %v400
        %v608 = vunpack.c.l.b16 %v401
        %v609 = vunpack.c.h.b16 %v401
        %v610 = vunpack.c.l.b16 %v402
        %v611 = vunpack.c.h.b16 %v402
        %v612 = vunpack.c.l.b16 %v403
        %v613 = vunpack.c.h.b16 %v403
        %v614 = vunpack.c.l.b16 %v404
        %v615 = vunpack.c.h.b16 %v404
        %v616 = vunpack.c.l.b16 %v405
        %v617 = vunpack.c.h.b16 %v405
        %v618 = vunpack.c.l.b16 %v406
        %v619 = vunpack.c.h.b16 %v406
        %v620 = vunpack.c.l.b16 %v407
        %v621 = vunpack.c.h.b16 %v407
        %v622 = vpack.c.b16 %v562, %v558
        %v623 = vpack.c.b16 %v563, %v559
        %v624 = vpack.c.b16 %v564, %v560
        %v625 = vpack.c.b16 %v565, %v561
        %v626 = vpack.c.b16 %v570, %v566
        %v627 = vpack.c.b16 %v571, %v567
        %v628 = vpack.c.b16 %v572, %v568
        %v629 = vpack.c.b16 %v573, %v569
        %v630 = vpack.c.b16 %v578, %v574
        %v631 = vpack.c.b16 %v579, %v575
        %v632 = vpack.c.b16 %v580, %v576
        %v633 = vpack.c.b16 %v581, %v577
        %v634 = vpack.c.b16 %v586, %v582
        %v635 = vpack.c.b16 %v587, %v583
        %v636 = vpack.c.b16 %v588, %v584
        %v637 = vpack.c.b16 %v589, %v585
        %v638 = vpack.c.b16 %v594, %v590
        %v639 = vpack.c.b16 %v595, %v591
        %v640 = vpack.c.b16 %v596, %v592
        %v641 = vpack.c.b16 %v597, %v593
        %v642 = vpack.c.b16 %v602, %v598
        %v643 = vpack.c.b16 %v603, %v599
        %v644 = vpack.c.b16 %v604, %v600
        %v645 = vpack.c.b16 %v605, %v601
        %v646 = vpack.c.b16 %v610, %v606
        %v647 = vpack.c.b16 %v611, %v607
        %v648 = vpack.c.b16 %v612, %v608
        %v649 = vpack.c.b16 %v613, %v609
        %v650 = vpack.c.b16 %v618, %v614
        %v651 = vpack.c.b16 %v619, %v615
        %v652 = vpack.c.b16 %v620, %v616
        %v653 = vpack.c.b16 %v621, %v617
        %686 = vmatprep.subr.bf16.mxu0 %v623
        %687 = vmatpush1.bf16.msra.mxu0 %v622
        %688 = vmatprep.subr.bf16.mxu0 %v627
        %689 = vmatpush1.bf16.msra.mxu0 %v626
        %690 = vmatprep.subr.bf16.mxu0 %v631
        %691 = vmatpush1.bf16.msra.mxu0 %v630
        %692 = vmatprep.subr.bf16.mxu0 %v635
        %693 = vmatpush1.bf16.msra.mxu0 %v634
        %694 = vmatprep.subr.bf16.mxu0 %v639
        %695 = vmatpush1.bf16.msra.mxu0 %v638
        %696 = vmatprep.subr.bf16.mxu0 %v643
        %697 = vmatpush1.bf16.msra.mxu0 %v642
        %698 = vmatprep.subr.bf16.mxu0 %v647
        %699 = vmatpush1.bf16.msra.mxu0 %v646
        %700 = vmatprep.subr.bf16.mxu0 %v651
        %701 = vmatpush1.bf16.msra.mxu0 %v650
        %702 = vmatprep.subr.bf16.mxu0 0
        %703 = vmatpush1.bf16.msra.mxu0 0
        %704 = vmatprep.subr.bf16.mxu0 0
        %705 = vmatpush1.bf16.msra.mxu0 0
        %706 = vmatprep.subr.bf16.mxu0 0
        %707 = vmatpush1.bf16.msra.mxu0 0
        %708 = vmatprep.subr.bf16.mxu0 0
        %709 = vmatpush1.bf16.msra.mxu0 0
        %710 = vmatprep.subr.bf16.mxu0 0
        %711 = vmatpush1.bf16.msra.mxu0 0
        %712 = vmatprep.subr.bf16.mxu0 0
        %713 = vmatpush1.bf16.msra.mxu0 0
        %714 = vmatprep.subr.bf16.mxu0 0
        %715 = vmatpush1.bf16.msra.mxu0 0
        %716 = vmatprep.subr.bf16.mxu0 0
        %717 = vmatpush1.bf16.msra.mxu0 0
        %718 = vmatprep.mubr.bf16.mxu0 0
        %719 = vmatmul.mubr.bf16.gmra.mrb[0].mxu0 %v494
        %v720 = vpop.f32.mrb[0].mxu0
        %v721 = vadd.f32 %v413, %v720
        %v722 = vpop.f32.mrb[0].mxu0
        %v723 = vadd.f32 %v417, %v722
        %v724 = vpop.f32.mrb[0].mxu0
        %v725 = vadd.f32 %v413, %v724
        %v726 = vpop.f32.mrb[0].mxu0
        %v727 = vadd.f32 %v417, %v726
        %728 = vmatprep.mubr.bf16.mxu0 0
        %729 = vmatmul.mubr.bf16.gmra.mrb[0].mxu0 %v495
        %v730 = vpop.f32.mrb[0].mxu0
        %v731 = vadd.f32 %v413, %v730
        %v732 = vpop.f32.mrb[0].mxu0
        %v733 = vadd.f32 %v417, %v732
        %v734 = vpop.f32.mrb[0].mxu0
        %v735 = vadd.f32 %v413, %v734
        %v736 = vpop.f32.mrb[0].mxu0
        %v737 = vadd.f32 %v417, %v736
        %738 = vmatprep.mubr.bf16.mxu0 0
        %739 = vmatmul.mubr.bf16.gmra.mrb[0].mxu0 %v496
        %v740 = vpop.f32.mrb[0].mxu0
        %v741 = vadd.f32 %v413, %v740
        %v742 = vpop.f32.mrb[0].mxu0
        %v743 = vadd.f32 %v417, %v742
        %v744 = vpop.f32.mrb[0].mxu0
        %v745 = vadd.f32 %v413, %v744
        %v746 = vpop.f32.mrb[0].mxu0
        %v747 = vadd.f32 %v417, %v746
        %748 = vmatprep.mubr.bf16.mxu0 0
        %749 = vmatmul.mubr.bf16.gmra.mrb[0].mxu0 %v497
        %v750 = vpop.f32.mrb[0].mxu0
        %v751 = vadd.f32 %v413, %v750
        %v752 = vpop.f32.mrb[0].mxu0
        %v753 = vadd.f32 %v417, %v752
        %v754 = vpop.f32.mrb[0].mxu0
        %v755 = vadd.f32 %v413, %v754
        %v756 = vpop.f32.mrb[0].mxu0
        %v757 = vadd.f32 %v417, %v756
        %758 = vmatprep.mubr.bf16.mxu0 0
        %759 = vmatmul.mubr.bf16.gmra.mrb[0].mxu0 %v498
        %v760 = vpop.f32.mrb[0].mxu0
        %v761 = vadd.f32 %v413, %v760
        %v762 = vpop.f32.mrb[0].mxu0
        %v763 = vadd.f32 %v417, %v762
        %v764 = vpop.f32.mrb[0].mxu0
        %v765 = vadd.f32 %v413, %v764
        %v766 = vpop.f32.mrb[0].mxu0
        %v767 = vadd.f32 %v417, %v766
        %768 = vmatprep.mubr.bf16.mxu0 0
        %769 = vmatmul.mubr.bf16.gmra.mrb[0].mxu0 %v499
        %v770 = vpop.f32.mrb[0].mxu0
        %v771 = vadd.f32 %v413, %v770
        %v772 = vpop.f32.mrb[0].mxu0
        %v773 = vadd.f32 %v417, %v772
        %v774 = vpop.f32.mrb[0].mxu0
        %v775 = vadd.f32 %v413, %v774
        %v776 = vpop.f32.mrb[0].mxu0
        %v777 = vadd.f32 %v417, %v776
        %778 = vmatprep.mubr.bf16.mxu0 0
        %779 = vmatmul.mubr.bf16.gmra.mrb[0].mxu0 %v500
        %v780 = vpop.f32.mrb[0].mxu0
        %v781 = vadd.f32 %v413, %v780
        %v782 = vpop.f32.mrb[0].mxu0
        %v783 = vadd.f32 %v417, %v782
        %v784 = vpop.f32.mrb[0].mxu0
        %v785 = vadd.f32 %v413, %v784
        %v786 = vpop.f32.mrb[0].mxu0
        %v787 = vadd.f32 %v417, %v786
        %788 = vmatprep.mubr.bf16.mxu0 0
        %789 = vmatmul.mubr.bf16.gmra.mrb[0].mxu0 %v501
        %v790 = vpop.f32.mrb[0].mxu0
        %v791 = vadd.f32 %v413, %v790
        %v792 = vpop.f32.mrb[0].mxu0
        %v793 = vadd.f32 %v417, %v792
        %v794 = vpop.f32.mrb[0].mxu0
        %v795 = vadd.f32 %v413, %v794
        %v796 = vpop.f32.mrb[0].mxu0
        %v797 = vadd.f32 %v417, %v796
        %798 = vmatprep.mubr.bf16.mxu0 0
        %799 = vmatmul.mubr.bf16.gmra.mrb[0].mxu0 %v502
        %v800 = vpop.f32.mrb[0].mxu0
        %v801 = vadd.f32 %v413, %v800
        %v802 = vpop.f32.mrb[0].mxu0
        %v803 = vadd.f32 %v417, %v802
        %v804 = vpop.f32.mrb[0].mxu0
        %v805 = vadd.f32 %v413, %v804
        %v806 = vpop.f32.mrb[0].mxu0
        %v807 = vadd.f32 %v417, %v806
        %808 = vmatprep.mubr.bf16.mxu0 0
        %809 = vmatmul.mubr.bf16.gmra.mrb[0].mxu0 %v503
        %v810 = vpop.f32.mrb[0].mxu0
        %v811 = vadd.f32 %v413, %v810
        %v812 = vpop.f32.mrb[0].mxu0
        %v813 = vadd.f32 %v417, %v812
        %v814 = vpop.f32.mrb[0].mxu0
        %v815 = vadd.f32 %v413, %v814
        %v816 = vpop.f32.mrb[0].mxu0
        %v817 = vadd.f32 %v417, %v816
        %818 = vmatprep.mubr.bf16.mxu0 0
        %819 = vmatmul.mubr.bf16.gmra.mrb[0].mxu0 %v504
        %v820 = vpop.f32.mrb[0].mxu0
        %v821 = vadd.f32 %v413, %v820
        %v822 = vpop.f32.mrb[0].mxu0
        %v823 = vadd.f32 %v417, %v822
        %v824 = vpop.f32.mrb[0].mxu0
        %v825 = vadd.f32 %v413, %v824
        %v826 = vpop.f32.mrb[0].mxu0
        %v827 = vadd.f32 %v417, %v826
        %828 = vmatprep.mubr.bf16.mxu0 0
        %829 = vmatmul.mubr.bf16.gmra.mrb[0].mxu0 %v505
        %v830 = vpop.f32.mrb[0].mxu0
        %v831 = vadd.f32 %v413, %v830
        %v832 = vpop.f32.mrb[0].mxu0
        %v833 = vadd.f32 %v417, %v832
        %v834 = vpop.f32.mrb[0].mxu0
        %v835 = vadd.f32 %v413, %v834
        %v836 = vpop.f32.mrb[0].mxu0
        %v837 = vadd.f32 %v417, %v836
        %838 = vmatprep.mubr.bf16.mxu0 0
        %839 = vmatmul.mubr.bf16.gmra.mrb[0].mxu0 %v506
        %v840 = vpop.f32.mrb[0].mxu0
        %v841 = vadd.f32 %v413, %v840
        %v842 = vpop.f32.mrb[0].mxu0
        %v843 = vadd.f32 %v417, %v842
        %v844 = vpop.f32.mrb[0].mxu0
        %v845 = vadd.f32 %v413, %v844
        %v846 = vpop.f32.mrb[0].mxu0
        %v847 = vadd.f32 %v417, %v846
        %848 = vmatprep.mubr.bf16.mxu0 0
        %849 = vmatmul.mubr.bf16.gmra.mrb[0].mxu0 %v507
        %v850 = vpop.f32.mrb[0].mxu0
        %v851 = vadd.f32 %v413, %v850
        %v852 = vpop.f32.mrb[0].mxu0
        %v853 = vadd.f32 %v417, %v852
        %v854 = vpop.f32.mrb[0].mxu0
        %v855 = vadd.f32 %v413, %v854
        %v856 = vpop.f32.mrb[0].mxu0
        %v857 = vadd.f32 %v417, %v856
        %858 = vmatprep.mubr.bf16.mxu0 0
        %859 = vmatmul.mubr.bf16.gmra.mrb[0].mxu0 %v508
        %v860 = vpop.f32.mrb[0].mxu0
        %v861 = vadd.f32 %v413, %v860
        %v862 = vpop.f32.mrb[0].mxu0
        %v863 = vadd.f32 %v417, %v862
        %v864 = vpop.f32.mrb[0].mxu0
        %v865 = vadd.f32 %v413, %v864
        %v866 = vpop.f32.mrb[0].mxu0
        %v867 = vadd.f32 %v417, %v866
        %868 = vmatprep.mubr.bf16.mxu0 0
        %869 = vmatmul.mubr.bf16.gmra.mrb[0].mxu0 %v509
        %v870 = vpop.f32.mrb[0].mxu0
        %v871 = vadd.f32 %v413, %v870
        %v872 = vpop.f32.mrb[0].mxu0
        %v873 = vadd.f32 %v417, %v872
        %v874 = vpop.f32.mrb[0].mxu0
        %v875 = vadd.f32 %v413, %v874
        %v876 = vpop.f32.mrb[0].mxu0
        %v877 = vadd.f32 %v417, %v876
        %878 = vdwg.mxu0
        %879 = vmatprep.subr.bf16.mxu0 %v625
        %880 = vmatpush1.bf16.msra.mxu0 %v624
        %881 = vmatprep.subr.bf16.mxu0 %v629
        %882 = vmatpush1.bf16.msra.mxu0 %v628
        %883 = vmatprep.subr.bf16.mxu0 %v633
        %884 = vmatpush1.bf16.msra.mxu0 %v632
        %885 = vmatprep.subr.bf16.mxu0 %v637
        %886 = vmatpush1.bf16.msra.mxu0 %v636
        %887 = vmatprep.subr.bf16.mxu0 %v641
        %888 = vmatpush1.bf16.msra.mxu0 %v640
        %889 = vmatprep.subr.bf16.mxu0 %v645
        %890 = vmatpush1.bf16.msra.mxu0 %v644
        %891 = vmatprep.subr.bf16.mxu0 %v649
        %892 = vmatpush1.bf16.msra.mxu0 %v648
        %893 = vmatprep.subr.bf16.mxu0 %v653
        %894 = vmatpush1.bf16.msra.mxu0 %v652
        %895 = vmatprep.subr.bf16.mxu0 0
        %896 = vmatpush1.bf16.msra.mxu0 0
        %897 = vmatprep.subr.bf16.mxu0 0
        %898 = vmatpush1.bf16.msra.mxu0 0
        %899 = vmatprep.subr.bf16.mxu0 0
        %900 = vmatpush1.bf16.msra.mxu0 0
        %901 = vmatprep.subr.bf16.mxu0 0
        %902 = vmatpush1.bf16.msra.mxu0 0
        %903 = vmatprep.subr.bf16.mxu0 0
        %904 = vmatpush1.bf16.msra.mxu0 0
        %905 = vmatprep.subr.bf16.mxu0 0
        %906 = vmatpush1.bf16.msra.mxu0 0
        %907 = vmatprep.subr.bf16.mxu0 0
        %908 = vmatpush1.bf16.msra.mxu0 0
        %909 = vmatprep.subr.bf16.mxu0 0
        %910 = vmatpush1.bf16.msra.mxu0 0
        %911 = vmatprep.mubr.bf16.mxu0 0
        %912 = vmatmul.mubr.bf16.gmra.mrb[0].mxu0 %v494
        %v913 = vpop.f32.mrb[0].mxu0
        %v914 = vadd.f32 %v421, %v913
        %v915 = vpop.f32.mrb[0].mxu0
        %v916 = vadd.f32 %v425, %v915
        %v917 = vpop.f32.mrb[0].mxu0
        %v918 = vadd.f32 %v421, %v917
        %v919 = vpop.f32.mrb[0].mxu0
        %v920 = vadd.f32 %v425, %v919
        %921 = vmatprep.mubr.bf16.mxu0 0
        %922 = vmatmul.mubr.bf16.gmra.mrb[0].mxu0 %v495
        %v923 = vpop.f32.mrb[0].mxu0
        %v924 = vadd.f32 %v421, %v923
        %v925 = vpop.f32.mrb[0].mxu0
        %v926 = vadd.f32 %v425, %v925
        %v927 = vpop.f32.mrb[0].mxu0
        %v928 = vadd.f32 %v421, %v927
        %v929 = vpop.f32.mrb[0].mxu0
        %v930 = vadd.f32 %v425, %v929
        %931 = vmatprep.mubr.bf16.mxu0 0
        %932 = vmatmul.mubr.bf16.gmra.mrb[0].mxu0 %v496
        %v933 = vpop.f32.mrb[0].mxu0
        %v934 = vadd.f32 %v421, %v933
        %v935 = vpop.f32.mrb[0].mxu0
        %v936 = vadd.f32 %v425, %v935
        %v937 = vpop.f32.mrb[0].mxu0
        %v938 = vadd.f32 %v421, %v937
        %v939 = vpop.f32.mrb[0].mxu0
        %v940 = vadd.f32 %v425, %v939
        %941 = vmatprep.mubr.bf16.mxu0 0
        %942 = vmatmul.mubr.bf16.gmra.mrb[0].mxu0 %v497
        %v943 = vpop.f32.mrb[0].mxu0
        %v944 = vadd.f32 %v421, %v943
        %v945 = vpop.f32.mrb[0].mxu0
        %v946 = vadd.f32 %v425, %v945
        %v947 = vpop.f32.mrb[0].mxu0
        %v948 = vadd.f32 %v421, %v947
        %v949 = vpop.f32.mrb[0].mxu0
        %v950 = vadd.f32 %v425, %v949
        %951 = vmatprep.mubr.bf16.mxu0 0
        %952 = vmatmul.mubr.bf16.gmra.mrb[0].mxu0 %v498
        %v953 = vpop.f32.mrb[0].mxu0
        %v954 = vadd.f32 %v421, %v953
        %v955 = vpop.f32.mrb[0].mxu0
        %v956 = vadd.f32 %v425, %v955
        %v957 = vpop.f32.mrb[0].mxu0
        %v958 = vadd.f32 %v421, %v957
        %v959 = vpop.f32.mrb[0].mxu0
        %v960 = vadd.f32 %v425, %v959
        %961 = vmatprep.mubr.bf16.mxu0 0
        %962 = vmatmul.mubr.bf16.gmra.mrb[0].mxu0 %v499
        %v963 = vpop.f32.mrb[0].mxu0
        %v964 = vadd.f32 %v421, %v963
        %v965 = vpop.f32.mrb[0].mxu0
        %v966 = vadd.f32 %v425, %v965
        %v967 = vpop.f32.mrb[0].mxu0
        %v968 = vadd.f32 %v421, %v967
        %v969 = vpop.f32.mrb[0].mxu0
        %v970 = vadd.f32 %v425, %v969
        %971 = vmatprep.mubr.bf16.mxu0 0
        %972 = vmatmul.mubr.bf16.gmra.mrb[0].mxu0 %v500
        %v973 = vpop.f32.mrb[0].mxu0
        %v974 = vadd.f32 %v421, %v973
        %v975 = vpop.f32.mrb[0].mxu0
        %v976 = vadd.f32 %v425, %v975
        %v977 = vpop.f32.mrb[0].mxu0
        %v978 = vadd.f32 %v421, %v977
        %v979 = vpop.f32.mrb[0].mxu0
        %v980 = vadd.f32 %v425, %v979
        %981 = vmatprep.mubr.bf16.mxu0 0
        %982 = vmatmul.mubr.bf16.gmra.mrb[0].mxu0 %v501
        %v983 = vpop.f32.mrb[0].mxu0
        %v984 = vadd.f32 %v421, %v983
        %v985 = vpop.f32.mrb[0].mxu0
        %v986 = vadd.f32 %v425, %v985
        %v987 = vpop.f32.mrb[0].mxu0
        %v988 = vadd.f32 %v421, %v987
        %v989 = vpop.f32.mrb[0].mxu0
        %v990 = vadd.f32 %v425, %v989
        %991 = vmatprep.mubr.bf16.mxu0 0
        %992 = vmatmul.mubr.bf16.gmra.mrb[0].mxu0 %v502
        %v993 = vpop.f32.mrb[0].mxu0
        %v994 = vadd.f32 %v421, %v993
        %v995 = vpop.f32.mrb[0].mxu0
        %v996 = vadd.f32 %v425, %v995
        %v997 = vpop.f32.mrb[0].mxu0
        %v998 = vadd.f32 %v421, %v997
        %v999 = vpop.f32.mrb[0].mxu0
        %v1000 = vadd.f32 %v425, %v999
        %1001 = vmatprep.mubr.bf16.mxu0 0
        %1002 = vmatmul.mubr.bf16.gmra.mrb[0].mxu0 %v503
        %v1003 = vpop.f32.mrb[0].mxu0
        %v1004 = vadd.f32 %v421, %v1003
        %v1005 = vpop.f32.mrb[0].mxu0
        %v1006 = vadd.f32 %v425, %v1005
        %v1007 = vpop.f32.mrb[0].mxu0
        %v1008 = vadd.f32 %v421, %v1007
        %v1009 = vpop.f32.mrb[0].mxu0
        %v1010 = vadd.f32 %v425, %v1009
        %1011 = vmatprep.mubr.bf16.mxu0 0
        %1012 = vmatmul.mubr.bf16.gmra.mrb[0].mxu0 %v504
        %v1013 = vpop.f32.mrb[0].mxu0
        %v1014 = vadd.f32 %v421, %v1013
        %v1015 = vpop.f32.mrb[0].mxu0
        %v1016 = vadd.f32 %v425, %v1015
        %v1017 = vpop.f32.mrb[0].mxu0
        %v1018 = vadd.f32 %v421, %v1017
        %v1019 = vpop.f32.mrb[0].mxu0
        %v1020 = vadd.f32 %v425, %v1019
        %1021 = vmatprep.mubr.bf16.mxu0 0
        %1022 = vmatmul.mubr.bf16.gmra.mrb[0].mxu0 %v505
        %v1023 = vpop.f32.mrb[0].mxu0
        %v1024 = vadd.f32 %v421, %v1023
        %v1025 = vpop.f32.mrb[0].mxu0
        %v1026 = vadd.f32 %v425, %v1025
        %v1027 = vpop.f32.mrb[0].mxu0
        %v1028 = vadd.f32 %v421, %v1027
        %v1029 = vpop.f32.mrb[0].mxu0
        %v1030 = vadd.f32 %v425, %v1029
        %1031 = vmatprep.mubr.bf16.mxu0 0
        %1032 = vmatmul.mubr.bf16.gmra.mrb[0].mxu0 %v506
        %v1033 = vpop.f32.mrb[0].mxu0
        %v1034 = vadd.f32 %v421, %v1033
        %v1035 = vpop.f32.mrb[0].mxu0
        %v1036 = vadd.f32 %v425, %v1035
        %v1037 = vpop.f32.mrb[0].mxu0
        %v1038 = vadd.f32 %v421, %v1037
        %v1039 = vpop.f32.mrb[0].mxu0
        %v1040 = vadd.f32 %v425, %v1039
        %1041 = vmatprep.mubr.bf16.mxu0 0
        %1042 = vmatmul.mubr.bf16.gmra.mrb[0].mxu0 %v507
        %v1043 = vpop.f32.mrb[0].mxu0
        %v1044 = vadd.f32 %v421, %v1043
        %v1045 = vpop.f32.mrb[0].mxu0
        %v1046 = vadd.f32 %v425, %v1045
        %v1047 = vpop.f32.mrb[0].mxu0
        %v1048 = vadd.f32 %v421, %v1047
        %v1049 = vpop.f32.mrb[0].mxu0
        %v1050 = vadd.f32 %v425, %v1049
        %1051 = vmatprep.mubr.bf16.mxu0 0
        %1052 = vmatmul.mubr.bf16.gmra.mrb[0].mxu0 %v508
        %v1053 = vpop.f32.mrb[0].mxu0
        %v1054 = vadd.f32 %v421, %v1053
        %v1055 = vpop.f32.mrb[0].mxu0
        %v1056 = vadd.f32 %v425, %v1055
        %v1057 = vpop.f32.mrb[0].mxu0
        %v1058 = vadd.f32 %v421, %v1057
        %v1059 = vpop.f32.mrb[0].mxu0
        %v1060 = vadd.f32 %v425, %v1059
        %1061 = vmatprep.mubr.bf16.mxu0 0
        %1062 = vmatmul.mubr.bf16.gmra.mrb[0].mxu0 %v509
        %v1063 = vpop.f32.mrb[0].mxu0
        %v1064 = vadd.f32 %v421, %v1063
        %v1065 = vpop.f32.mrb[0].mxu0
        %v1066 = vadd.f32 %v425, %v1065
        %v1067 = vpop.f32.mrb[0].mxu0
        %v1068 = vadd.f32 %v421, %v1067
        %v1069 = vpop.f32.mrb[0].mxu0
        %v1070 = vadd.f32 %v425, %v1069
        %1071 = vdwg.mxu0
        %v1072 = vmax.f32 %v721, 0.0
        %v1073 = vmax.f32 %v723, 0.0
        %v1074 = vmax.f32 %v914, 0.0
        %v1075 = vmax.f32 %v916, 0.0
        %v1076 = vmax.f32 %v725, 0.0
        %v1077 = vmax.f32 %v727, 0.0
        %v1078 = vmax.f32 %v918, 0.0
        %v1079 = vmax.f32 %v920, 0.0
        %v1080 = vmax.f32 %v731, 0.0
        %v1081 = vmax.f32 %v733, 0.0
        %v1082 = vmax.f32 %v924, 0.0
        %v1083 = vmax.f32 %v926, 0.0
        %v1084 = vmax.f32 %v735, 0.0
        %v1085 = vmax.f32 %v737, 0.0
        %v1086 = vmax.f32 %v928, 0.0
        %v1087 = vmax.f32 %v930, 0.0
        %v1088 = vmax.f32 %v741, 0.0
        %v1089 = vmax.f32 %v743, 0.0
        %v1090 = vmax.f32 %v934, 0.0
        %v1091 = vmax.f32 %v936, 0.0
        %v1092 = vmax.f32 %v745, 0.0
        %v1093 = vmax.f32 %v747, 0.0
        %v1094 = vmax.f32 %v938, 0.0
        %v1095 = vmax.f32 %v940, 0.0
        %v1096 = vmax.f32 %v751, 0.0
        %v1097 = vmax.f32 %v753, 0.0
        %v1098 = vmax.f32 %v944, 0.0
        %v1099 = vmax.f32 %v946, 0.0
        %v1100 = vmax.f32 %v755, 0.0
        %v1101 = vmax.f32 %v757, 0.0
        %v1102 = vmax.f32 %v948, 0.0
        %v1103 = vmax.f32 %v950, 0.0
        %v1104 = vmax.f32 %v761, 0.0
        %v1105 = vmax.f32 %v763, 0.0
        %v1106 = vmax.f32 %v954, 0.0
        %v1107 = vmax.f32 %v956, 0.0
        %v1108 = vmax.f32 %v765, 0.0
        %v1109 = vmax.f32 %v767, 0.0
        %v1110 = vmax.f32 %v958, 0.0
        %v1111 = vmax.f32 %v960, 0.0
        %v1112 = vmax.f32 %v771, 0.0
        %v1113 = vmax.f32 %v773, 0.0
        %v1114 = vmax.f32 %v964, 0.0
        %v1115 = vmax.f32 %v966, 0.0
        %v1116 = vmax.f32 %v775, 0.0
        %v1117 = vmax.f32 %v777, 0.0
        %v1118 = vmax.f32 %v968, 0.0
        %v1119 = vmax.f32 %v970, 0.0
        %v1120 = vmax.f32 %v781, 0.0
        %v1121 = vmax.f32 %v783, 0.0
        %v1122 = vmax.f32 %v974, 0.0
        %v1123 = vmax.f32 %v976, 0.0
        %v1124 = vmax.f32 %v785, 0.0
        %v1125 = vmax.f32 %v787, 0.0
        %v1126 = vmax.f32 %v978, 0.0
        %v1127 = vmax.f32 %v980, 0.0
        %v1128 = vmax.f32 %v791, 0.0
        %v1129 = vmax.f32 %v793, 0.0
        %v1130 = vmax.f32 %v984, 0.0
        %v1131 = vmax.f32 %v986, 0.0
        %v1132 = vmax.f32 %v795, 0.0
        %v1133 = vmax.f32 %v797, 0.0
        %v1134 = vmax.f32 %v988, 0.0
        %v1135 = vmax.f32 %v990, 0.0
        %v1136 = vmax.f32 %v801, 0.0
        %v1137 = vmax.f32 %v803, 0.0
        %v1138 = vmax.f32 %v994, 0.0
        %v1139 = vmax.f32 %v996, 0.0
        %v1140 = vmax.f32 %v805, 0.0
        %v1141 = vmax.f32 %v807, 0.0
        %v1142 = vmax.f32 %v998, 0.0
        %v1143 = vmax.f32 %v1000, 0.0
        %v1144 = vmax.f32 %v811, 0.0
        %v1145 = vmax.f32 %v813, 0.0
        %v1146 = vmax.f32 %v1004, 0.0
        %v1147 = vmax.f32 %v1006, 0.0
        %v1148 = vmax.f32 %v815, 0.0
        %v1149 = vmax.f32 %v817, 0.0
        %v1150 = vmax.f32 %v1008, 0.0
        %v1151 = vmax.f32 %v1010, 0.0
        %v1152 = vmax.f32 %v821, 0.0
        %v1153 = vmax.f32 %v823, 0.0
        %v1154 = vmax.f32 %v1014, 0.0
        %v1155 = vmax.f32 %v1016, 0.0
        %v1156 = vmax.f32 %v825, 0.0
        %v1157 = vmax.f32 %v827, 0.0
        %v1158 = vmax.f32 %v1018, 0.0
        %v1159 = vmax.f32 %v1020, 0.0
        %v1160 = vmax.f32 %v831, 0.0
        %v1161 = vmax.f32 %v833, 0.0
        %v1162 = vmax.f32 %v1024, 0.0
        %v1163 = vmax.f32 %v1026, 0.0
        %v1164 = vmax.f32 %v835, 0.0
        %v1165 = vmax.f32 %v837, 0.0
        %v1166 = vmax.f32 %v1028, 0.0
        %v1167 = vmax.f32 %v1030, 0.0
        %v1168 = vmax.f32 %v841, 0.0
        %v1169 = vmax.f32 %v843, 0.0
        %v1170 = vmax.f32 %v1034, 0.0
        %v1171 = vmax.f32 %v1036, 0.0
        %v1172 = vmax.f32 %v845, 0.0
        %v1173 = vmax.f32 %v847, 0.0
        %v1174 = vmax.f32 %v1038, 0.0
        %v1175 = vmax.f32 %v1040, 0.0
        %v1176 = vmax.f32 %v851, 0.0
        %v1177 = vmax.f32 %v853, 0.0
        %v1178 = vmax.f32 %v1044, 0.0
        %v1179 = vmax.f32 %v1046, 0.0
        %v1180 = vmax.f32 %v855, 0.0
        %v1181 = vmax.f32 %v857, 0.0
        %v1182 = vmax.f32 %v1048, 0.0
        %v1183 = vmax.f32 %v1050, 0.0
        %v1184 = vmax.f32 %v861, 0.0
        %v1185 = vmax.f32 %v863, 0.0
        %v1186 = vmax.f32 %v1054, 0.0
        %v1187 = vmax.f32 %v1056, 0.0
        %v1188 = vmax.f32 %v865, 0.0
        %v1189 = vmax.f32 %v867, 0.0
        %v1190 = vmax.f32 %v1058, 0.0
        %v1191 = vmax.f32 %v1060, 0.0
        %v1192 = vmax.f32 %v871, 0.0
        %v1193 = vmax.f32 %v873, 0.0
        %v1194 = vmax.f32 %v1064, 0.0
        %v1195 = vmax.f32 %v1066, 0.0
        %v1196 = vmax.f32 %v875, 0.0
        %v1197 = vmax.f32 %v877, 0.0
        %v1198 = vmax.f32 %v1068, 0.0
        %v1199 = vmax.f32 %v1070, 0.0
        %v1200 = vpack.c.bf16 %v1076, %v1072
        %v1201 = vpack.c.bf16 %v1077, %v1073
        %v1202 = vpack.c.bf16 %v1078, %v1074
        %v1203 = vpack.c.bf16 %v1079, %v1075
        %v1204 = vpack.c.bf16 %v1084, %v1080
        %v1205 = vpack.c.bf16 %v1085, %v1081
        %v1206 = vpack.c.bf16 %v1086, %v1082
        %v1207 = vpack.c.bf16 %v1087, %v1083
        %v1208 = vpack.c.bf16 %v1092, %v1088
        %v1209 = vpack.c.bf16 %v1093, %v1089
        %v1210 = vpack.c.bf16 %v1094, %v1090
        %v1211 = vpack.c.bf16 %v1095, %v1091
        %v1212 = vpack.c.bf16 %v1100, %v1096
        %v1213 = vpack.c.bf16 %v1101, %v1097
        %v1214 = vpack.c.bf16 %v1102, %v1098
        %v1215 = vpack.c.bf16 %v1103, %v1099
        %v1216 = vpack.c.bf16 %v1108, %v1104
        %v1217 = vpack.c.bf16 %v1109, %v1105
        %v1218 = vpack.c.bf16 %v1110, %v1106
        %v1219 = vpack.c.bf16 %v1111, %v1107
        %v1220 = vpack.c.bf16 %v1116, %v1112
        %v1221 = vpack.c.bf16 %v1117, %v1113
        %v1222 = vpack.c.bf16 %v1118, %v1114
        %v1223 = vpack.c.bf16 %v1119, %v1115
        %v1224 = vpack.c.bf16 %v1124, %v1120
        %v1225 = vpack.c.bf16 %v1125, %v1121
        %v1226 = vpack.c.bf16 %v1126, %v1122
        %v1227 = vpack.c.bf16 %v1127, %v1123
        %v1228 = vpack.c.bf16 %v1132, %v1128
        %v1229 = vpack.c.bf16 %v1133, %v1129
        %v1230 = vpack.c.bf16 %v1134, %v1130
        %v1231 = vpack.c.bf16 %v1135, %v1131
        %v1232 = vpack.c.bf16 %v1140, %v1136
        %v1233 = vpack.c.bf16 %v1141, %v1137
        %v1234 = vpack.c.bf16 %v1142, %v1138
        %v1235 = vpack.c.bf16 %v1143, %v1139
        %v1236 = vpack.c.bf16 %v1148, %v1144
        %v1237 = vpack.c.bf16 %v1149, %v1145
        %v1238 = vpack.c.bf16 %v1150, %v1146
        %v1239 = vpack.c.bf16 %v1151, %v1147
        %v1240 = vpack.c.bf16 %v1156, %v1152
        %v1241 = vpack.c.bf16 %v1157, %v1153
        %v1242 = vpack.c.bf16 %v1158, %v1154
        %v1243 = vpack.c.bf16 %v1159, %v1155
        %v1244 = vpack.c.bf16 %v1164, %v1160
        %v1245 = vpack.c.bf16 %v1165, %v1161
        %v1246 = vpack.c.bf16 %v1166, %v1162
        %v1247 = vpack.c.bf16 %v1167, %v1163
        %v1248 = vpack.c.bf16 %v1172, %v1168
        %v1249 = vpack.c.bf16 %v1173, %v1169
        %v1250 = vpack.c.bf16 %v1174, %v1170
        %v1251 = vpack.c.bf16 %v1175, %v1171
        %v1252 = vpack.c.bf16 %v1180, %v1176
        %v1253 = vpack.c.bf16 %v1181, %v1177
        %v1254 = vpack.c.bf16 %v1182, %v1178
        %v1255 = vpack.c.bf16 %v1183, %v1179
        %v1256 = vpack.c.bf16 %v1188, %v1184
        %v1257 = vpack.c.bf16 %v1189, %v1185
        %v1258 = vpack.c.bf16 %v1190, %v1186
        %v1259 = vpack.c.bf16 %v1191, %v1187
        %v1260 = vpack.c.bf16 %v1196, %v1192
        %v1261 = vpack.c.bf16 %v1197, %v1193
        %v1262 = vpack.c.bf16 %v1198, %v1194
        %v1263 = vpack.c.bf16 %v1199, %v1195
        %v1264 = vld [vmem:[#allocation7] sm:$0xff]
        %v1265 = vld [vmem:[#allocation7 + $0x8] sm:$0xff]
        %v1266 = vld [vmem:[#allocation7 + $0x10] sm:$0xff]
        %v1267 = vld [vmem:[#allocation7 + $0x18] sm:$0xff]
        %v1268 = vld [vmem:[#allocation7 + $0x20] sm:$0xff]
        %v1269 = vld [vmem:[#allocation7 + $0x28] sm:$0xff]
        %v1270 = vld [vmem:[#allocation7 + $0x30] sm:$0xff]
        %v1271 = vld [vmem:[#allocation7 + $0x38] sm:$0xff]
        %v1272 = vld [vmem:[#allocation7 + $0x40] sm:$0xff]
        %v1273 = vld [vmem:[#allocation7 + $0x48] sm:$0xff]
        %v1274 = vld [vmem:[#allocation7 + $0x50] sm:$0xff]
        %v1275 = vld [vmem:[#allocation7 + $0x58] sm:$0xff]
        %v1276 = vld [vmem:[#allocation7 + $0x60] sm:$0xff]
        %v1277 = vld [vmem:[#allocation7 + $0x68] sm:$0xff]
        %v1278 = vld [vmem:[#allocation7 + $0x70] sm:$0xff]
        %v1279 = vld [vmem:[#allocation7 + $0x78] sm:$0xff]
        %v1280 = vld [vmem:[#allocation7 + $0x80] sm:$0xff]
        %v1281 = vld [vmem:[#allocation7 + $0x88] sm:$0xff]
        %v1282 = vld [vmem:[#allocation7 + $0x90] sm:$0xff]
        %v1283 = vld [vmem:[#allocation7 + $0x98] sm:$0xff]
        %v1284 = vld [vmem:[#allocation7 + $0xa0] sm:$0xff]
        %v1285 = vld [vmem:[#allocation7 + $0xa8] sm:$0xff]
        %v1286 = vld [vmem:[#allocation7 + $0xb0] sm:$0xff]
        %v1287 = vld [vmem:[#allocation7 + $0xb8] sm:$0xff]
        %v1288 = vld [vmem:[#allocation7 + $0xc0] sm:$0xff]
        %v1289 = vld [vmem:[#allocation7 + $0xc8] sm:$0xff]
        %v1290 = vld [vmem:[#allocation7 + $0xd0] sm:$0xff]
        %v1291 = vld [vmem:[#allocation7 + $0xd8] sm:$0xff]
        %v1292 = vld [vmem:[#allocation7 + $0xe0] sm:$0xff]
        %v1293 = vld [vmem:[#allocation7 + $0xe8] sm:$0xff]
        %v1294 = vld [vmem:[#allocation7 + $0xf0] sm:$0xff]
        %v1295 = vld [vmem:[#allocation7 + $0xf8] sm:$0xff]
        %v1296 = vld [vmem:[#allocation7 + $0x100] sm:$0xff]
        %v1297 = vld [vmem:[#allocation7 + $0x108] sm:$0xff]
        %v1298 = vld [vmem:[#allocation7 + $0x110] sm:$0xff]
        %v1299 = vld [vmem:[#allocation7 + $0x118] sm:$0xff]
        %v1300 = vld [vmem:[#allocation7 + $0x120] sm:$0xff]
        %v1301 = vld [vmem:[#allocation7 + $0x128] sm:$0xff]
        %v1302 = vld [vmem:[#allocation7 + $0x130] sm:$0xff]
        %v1303 = vld [vmem:[#allocation7 + $0x138] sm:$0xff]
        %v1304 = vld [vmem:[#allocation7 + $0x140] sm:$0xff]
        %v1305 = vld [vmem:[#allocation7 + $0x148] sm:$0xff]
        %v1306 = vld [vmem:[#allocation7 + $0x150] sm:$0xff]
        %v1307 = vld [vmem:[#allocation7 + $0x158] sm:$0xff]
        %v1308 = vld [vmem:[#allocation7 + $0x160] sm:$0xff]
        %v1309 = vld [vmem:[#allocation7 + $0x168] sm:$0xff]
        %v1310 = vld [vmem:[#allocation7 + $0x170] sm:$0xff]
        %v1311 = vld [vmem:[#allocation7 + $0x178] sm:$0xff]
        %v1312 = vld [vmem:[#allocation7 + $0x180] sm:$0xff]
        %v1313 = vld [vmem:[#allocation7 + $0x188] sm:$0xff]
        %v1314 = vld [vmem:[#allocation7 + $0x190] sm:$0xff]
        %v1315 = vld [vmem:[#allocation7 + $0x198] sm:$0xff]
        %v1316 = vld [vmem:[#allocation7 + $0x1a0] sm:$0xff]
        %v1317 = vld [vmem:[#allocation7 + $0x1a8] sm:$0xff]
        %v1318 = vld [vmem:[#allocation7 + $0x1b0] sm:$0xff]
        %v1319 = vld [vmem:[#allocation7 + $0x1b8] sm:$0xff]
        %v1320 = vld [vmem:[#allocation7 + $0x1c0] sm:$0xff]
        %v1321 = vld [vmem:[#allocation7 + $0x1c8] sm:$0xff]
        %v1322 = vld [vmem:[#allocation7 + $0x1d0] sm:$0xff]
        %v1323 = vld [vmem:[#allocation7 + $0x1d8] sm:$0xff]
        %v1324 = vld [vmem:[#allocation7 + $0x1e0] sm:$0xff]
        %v1325 = vld [vmem:[#allocation7 + $0x1e8] sm:$0xff]
        %v1326 = vld [vmem:[#allocation7 + $0x1f0] sm:$0xff]
        %v1327 = vld [vmem:[#allocation7 + $0x1f8] sm:$0xff]
        %v1328 = vld [vmem:[#allocation7 + $0x200] sm:$0xff]
        %v1329 = vld [vmem:[#allocation7 + $0x208] sm:$0xff]
        %v1330 = vld [vmem:[#allocation7 + $0x210] sm:$0xff]
        %v1331 = vld [vmem:[#allocation7 + $0x218] sm:$0xff]
        %v1332 = vld [vmem:[#allocation7 + $0x220] sm:$0xff]
        %v1333 = vld [vmem:[#allocation7 + $0x228] sm:$0xff]
        %v1334 = vld [vmem:[#allocation7 + $0x230] sm:$0xff]
        %v1335 = vld [vmem:[#allocation7 + $0x238] sm:$0xff]
        %v1336 = vld [vmem:[#allocation7 + $0x240] sm:$0xff]
        %v1337 = vld [vmem:[#allocation7 + $0x248] sm:$0xff]
        %v1338 = vld [vmem:[#allocation7 + $0x250] sm:$0xff]
        %v1339 = vld [vmem:[#allocation7 + $0x258] sm:$0xff]
        %v1340 = vld [vmem:[#allocation7 + $0x260] sm:$0xff]
        %v1341 = vld [vmem:[#allocation7 + $0x268] sm:$0xff]
        %v1342 = vld [vmem:[#allocation7 + $0x270] sm:$0xff]
        %v1343 = vld [vmem:[#allocation7 + $0x278] sm:$0xff]
        %v1344 = vld [vmem:[#allocation7 + $0x280] sm:$0xff]
        %v1345 = vld [vmem:[#allocation7 + $0x288] sm:$0xff]
        %v1346 = vld [vmem:[#allocation7 + $0x290] sm:$0xff]
        %v1347 = vld [vmem:[#allocation7 + $0x298] sm:$0xff]
        %v1348 = vld [vmem:[#allocation7 + $0x2a0] sm:$0xff]
        %v1349 = vld [vmem:[#allocation7 + $0x2a8] sm:$0xff]
        %v1350 = vld [vmem:[#allocation7 + $0x2b0] sm:$0xff]
        %v1351 = vld [vmem:[#allocation7 + $0x2b8] sm:$0xff]
        %v1352 = vld [vmem:[#allocation7 + $0x2c0] sm:$0xff]
        %v1353 = vld [vmem:[#allocation7 + $0x2c8] sm:$0xff]
        %v1354 = vld [vmem:[#allocation7 + $0x2d0] sm:$0xff]
        %v1355 = vld [vmem:[#allocation7 + $0x2d8] sm:$0xff]
        %v1356 = vld [vmem:[#allocation7 + $0x2e0] sm:$0xff]
        %v1357 = vld [vmem:[#allocation7 + $0x2e8] sm:$0xff]
        %v1358 = vld [vmem:[#allocation7 + $0x2f0] sm:$0xff]
        %v1359 = vld [vmem:[#allocation7 + $0x2f8] sm:$0xff]
        %v1360 = vld [vmem:[#allocation7 + $0x300] sm:$0xff]
        %v1361 = vld [vmem:[#allocation7 + $0x308] sm:$0xff]
        %v1362 = vld [vmem:[#allocation7 + $0x310] sm:$0xff]
        %v1363 = vld [vmem:[#allocation7 + $0x318] sm:$0xff]
        %v1364 = vld [vmem:[#allocation7 + $0x320] sm:$0xff]
        %v1365 = vld [vmem:[#allocation7 + $0x328] sm:$0xff]
        %v1366 = vld [vmem:[#allocation7 + $0x330] sm:$0xff]
        %v1367 = vld [vmem:[#allocation7 + $0x338] sm:$0xff]
        %v1368 = vld [vmem:[#allocation7 + $0x340] sm:$0xff]
        %v1369 = vld [vmem:[#allocation7 + $0x348] sm:$0xff]
        %v1370 = vld [vmem:[#allocation7 + $0x350] sm:$0xff]
        %v1371 = vld [vmem:[#allocation7 + $0x358] sm:$0xff]
        %v1372 = vld [vmem:[#allocation7 + $0x360] sm:$0xff]
        %v1373 = vld [vmem:[#allocation7 + $0x368] sm:$0xff]
        %v1374 = vld [vmem:[#allocation7 + $0x370] sm:$0xff]
        %v1375 = vld [vmem:[#allocation7 + $0x378] sm:$0xff]
        %v1376 = vld [vmem:[#allocation7 + $0x380] sm:$0xff]
        %v1377 = vld [vmem:[#allocation7 + $0x388] sm:$0xff]
        %v1378 = vld [vmem:[#allocation7 + $0x390] sm:$0xff]
        %v1379 = vld [vmem:[#allocation7 + $0x398] sm:$0xff]
        %v1380 = vld [vmem:[#allocation7 + $0x3a0] sm:$0xff]
        %v1381 = vld [vmem:[#allocation7 + $0x3a8] sm:$0xff]
        %v1382 = vld [vmem:[#allocation7 + $0x3b0] sm:$0xff]
        %v1383 = vld [vmem:[#allocation7 + $0x3b8] sm:$0xff]
        %v1384 = vld [vmem:[#allocation7 + $0x3c0] sm:$0xff]
        %v1385 = vld [vmem:[#allocation7 + $0x3c8] sm:$0xff]
        %v1386 = vld [vmem:[#allocation7 + $0x3d0] sm:$0xff]
        %v1387 = vld [vmem:[#allocation7 + $0x3d8] sm:$0xff]
        %v1388 = vld [vmem:[#allocation7 + $0x3e0] sm:$0xff]
        %v1389 = vld [vmem:[#allocation7 + $0x3e8] sm:$0xff]
        %v1390 = vld [vmem:[#allocation7 + $0x3f0] sm:$0xff]
        %v1391 = vld [vmem:[#allocation7 + $0x3f8] sm:$0xff]
        %v1392 = vld [vmem:[%s4] sm:$0xf]
        %v1394 = vlaneseq
        %v1395 = vshrl.u32 %v1394, 7
        %v1396 = vsub.s32 0, %v1395
        %v1397 = vrot.slane %v1392, %v1396
        %v1398 = vlaneseq
        %v1399 = vshrl.u32 %v1398, 7
        %v1400 = vsub.s32 1, %v1399
        %v1401 = vrot.slane %v1392, %v1400
        %v1402 = vlaneseq
        %v1403 = vshrl.u32 %v1402, 7
        %v1404 = vsub.s32 2, %v1403
        %v1405 = vrot.slane %v1392, %v1404
        %v1406 = vlaneseq
        %v1407 = vshrl.u32 %v1406, 7
        %v1408 = vsub.s32 3, %v1407
        %v1409 = vrot.slane %v1392, %v1408
        %v1542 = vunpack.c.l.b16 %v1264
        %v1543 = vunpack.c.h.b16 %v1264
        %v1544 = vunpack.c.l.b16 %v1265
        %v1545 = vunpack.c.h.b16 %v1265
        %v1546 = vunpack.c.l.b16 %v1266
        %v1547 = vunpack.c.h.b16 %v1266
        %v1548 = vunpack.c.l.b16 %v1267
        %v1549 = vunpack.c.h.b16 %v1267
        %v1550 = vunpack.c.l.b16 %v1268
        %v1551 = vunpack.c.h.b16 %v1268
        %v1552 = vunpack.c.l.b16 %v1269
        %v1553 = vunpack.c.h.b16 %v1269
        %v1554 = vunpack.c.l.b16 %v1270
        %v1555 = vunpack.c.h.b16 %v1270
        %v1556 = vunpack.c.l.b16 %v1271
        %v1557 = vunpack.c.h.b16 %v1271
        %v1558 = vunpack.c.l.b16 %v1272
        %v1559 = vunpack.c.h.b16 %v1272
        %v1560 = vunpack.c.l.b16 %v1273
        %v1561 = vunpack.c.h.b16 %v1273
        %v1562 = vunpack.c.l.b16 %v1274
        %v1563 = vunpack.c.h.b16 %v1274
        %v1564 = vunpack.c.l.b16 %v1275
        %v1565 = vunpack.c.h.b16 %v1275
        %v1566 = vunpack.c.l.b16 %v1276
        %v1567 = vunpack.c.h.b16 %v1276
        %v1568 = vunpack.c.l.b16 %v1277
        %v1569 = vunpack.c.h.b16 %v1277
        %v1570 = vunpack.c.l.b16 %v1278
        %v1571 = vunpack.c.h.b16 %v1278
        %v1572 = vunpack.c.l.b16 %v1279
        %v1573 = vunpack.c.h.b16 %v1279
        %v1574 = vunpack.c.l.b16 %v1280
        %v1575 = vunpack.c.h.b16 %v1280
        %v1576 = vunpack.c.l.b16 %v1281
        %v1577 = vunpack.c.h.b16 %v1281
        %v1578 = vunpack.c.l.b16 %v1282
        %v1579 = vunpack.c.h.b16 %v1282
        %v1580 = vunpack.c.l.b16 %v1283
        %v1581 = vunpack.c.h.b16 %v1283
        %v1582 = vunpack.c.l.b16 %v1284
        %v1583 = vunpack.c.h.b16 %v1284
        %v1584 = vunpack.c.l.b16 %v1285
        %v1585 = vunpack.c.h.b16 %v1285
        %v1586 = vunpack.c.l.b16 %v1286
        %v1587 = vunpack.c.h.b16 %v1286
        %v1588 = vunpack.c.l.b16 %v1287
        %v1589 = vunpack.c.h.b16 %v1287
        %v1590 = vunpack.c.l.b16 %v1288
        %v1591 = vunpack.c.h.b16 %v1288
        %v1592 = vunpack.c.l.b16 %v1289
        %v1593 = vunpack.c.h.b16 %v1289
        %v1594 = vunpack.c.l.b16 %v1290
        %v1595 = vunpack.c.h.b16 %v1290
        %v1596 = vunpack.c.l.b16 %v1291
        %v1597 = vunpack.c.h.b16 %v1291
        %v1598 = vunpack.c.l.b16 %v1292
        %v1599 = vunpack.c.h.b16 %v1292
        %v1600 = vunpack.c.l.b16 %v1293
        %v1601 = vunpack.c.h.b16 %v1293
        %v1602 = vunpack.c.l.b16 %v1294
        %v1603 = vunpack.c.h.b16 %v1294
        %v1604 = vunpack.c.l.b16 %v1295
        %v1605 = vunpack.c.h.b16 %v1295
        %v1606 = vunpack.c.l.b16 %v1296
        %v1607 = vunpack.c.h.b16 %v1296
        %v1608 = vunpack.c.l.b16 %v1297
        %v1609 = vunpack.c.h.b16 %v1297
        %v1610 = vunpack.c.l.b16 %v1298
        %v1611 = vunpack.c.h.b16 %v1298
        %v1612 = vunpack.c.l.b16 %v1299
        %v1613 = vunpack.c.h.b16 %v1299
        %v1614 = vunpack.c.l.b16 %v1300
        %v1615 = vunpack.c.h.b16 %v1300
        %v1616 = vunpack.c.l.b16 %v1301
        %v1617 = vunpack.c.h.b16 %v1301
        %v1618 = vunpack.c.l.b16 %v1302
        %v1619 = vunpack.c.h.b16 %v1302
        %v1620 = vunpack.c.l.b16 %v1303
        %v1621 = vunpack.c.h.b16 %v1303
        %v1622 = vunpack.c.l.b16 %v1304
        %v1623 = vunpack.c.h.b16 %v1304
        %v1624 = vunpack.c.l.b16 %v1305
        %v1625 = vunpack.c.h.b16 %v1305
        %v1626 = vunpack.c.l.b16 %v1306
        %v1627 = vunpack.c.h.b16 %v1306
        %v1628 = vunpack.c.l.b16 %v1307
        %v1629 = vunpack.c.h.b16 %v1307
        %v1630 = vunpack.c.l.b16 %v1308
        %v1631 = vunpack.c.h.b16 %v1308
        %v1632 = vunpack.c.l.b16 %v1309
        %v1633 = vunpack.c.h.b16 %v1309
        %v1634 = vunpack.c.l.b16 %v1310
        %v1635 = vunpack.c.h.b16 %v1310
        %v1636 = vunpack.c.l.b16 %v1311
        %v1637 = vunpack.c.h.b16 %v1311
        %v1638 = vunpack.c.l.b16 %v1312
        %v1639 = vunpack.c.h.b16 %v1312
        %v1640 = vunpack.c.l.b16 %v1313
        %v1641 = vunpack.c.h.b16 %v1313
        %v1642 = vunpack.c.l.b16 %v1314
        %v1643 = vunpack.c.h.b16 %v1314
        %v1644 = vunpack.c.l.b16 %v1315
        %v1645 = vunpack.c.h.b16 %v1315
        %v1646 = vunpack.c.l.b16 %v1316
        %v1647 = vunpack.c.h.b16 %v1316
        %v1648 = vunpack.c.l.b16 %v1317
        %v1649 = vunpack.c.h.b16 %v1317
        %v1650 = vunpack.c.l.b16 %v1318
        %v1651 = vunpack.c.h.b16 %v1318
        %v1652 = vunpack.c.l.b16 %v1319
        %v1653 = vunpack.c.h.b16 %v1319
        %v1654 = vunpack.c.l.b16 %v1320
        %v1655 = vunpack.c.h.b16 %v1320
        %v1656 = vunpack.c.l.b16 %v1321
        %v1657 = vunpack.c.h.b16 %v1321
        %v1658 = vunpack.c.l.b16 %v1322
        %v1659 = vunpack.c.h.b16 %v1322
        %v1660 = vunpack.c.l.b16 %v1323
        %v1661 = vunpack.c.h.b16 %v1323
        %v1662 = vunpack.c.l.b16 %v1324
        %v1663 = vunpack.c.h.b16 %v1324
        %v1664 = vunpack.c.l.b16 %v1325
        %v1665 = vunpack.c.h.b16 %v1325
        %v1666 = vunpack.c.l.b16 %v1326
        %v1667 = vunpack.c.h.b16 %v1326
        %v1668 = vunpack.c.l.b16 %v1327
        %v1669 = vunpack.c.h.b16 %v1327
        %v1670 = vunpack.c.l.b16 %v1328
        %v1671 = vunpack.c.h.b16 %v1328
        %v1672 = vunpack.c.l.b16 %v1329
        %v1673 = vunpack.c.h.b16 %v1329
        %v1674 = vunpack.c.l.b16 %v1330
        %v1675 = vunpack.c.h.b16 %v1330
        %v1676 = vunpack.c.l.b16 %v1331
        %v1677 = vunpack.c.h.b16 %v1331
        %v1678 = vunpack.c.l.b16 %v1332
        %v1679 = vunpack.c.h.b16 %v1332
        %v1680 = vunpack.c.l.b16 %v1333
        %v1681 = vunpack.c.h.b16 %v1333
        %v1682 = vunpack.c.l.b16 %v1334
        %v1683 = vunpack.c.h.b16 %v1334
        %v1684 = vunpack.c.l.b16 %v1335
        %v1685 = vunpack.c.h.b16 %v1335
        %v1686 = vunpack.c.l.b16 %v1336
        %v1687 = vunpack.c.h.b16 %v1336
        %v1688 = vunpack.c.l.b16 %v1337
        %v1689 = vunpack.c.h.b16 %v1337
        %v1690 = vunpack.c.l.b16 %v1338
        %v1691 = vunpack.c.h.b16 %v1338
        %v1692 = vunpack.c.l.b16 %v1339
        %v1693 = vunpack.c.h.b16 %v1339
        %v1694 = vunpack.c.l.b16 %v1340
        %v1695 = vunpack.c.h.b16 %v1340
        %v1696 = vunpack.c.l.b16 %v1341
        %v1697 = vunpack.c.h.b16 %v1341
        %v1698 = vunpack.c.l.b16 %v1342
        %v1699 = vunpack.c.h.b16 %v1342
        %v1700 = vunpack.c.l.b16 %v1343
        %v1701 = vunpack.c.h.b16 %v1343
        %v1702 = vunpack.c.l.b16 %v1344
        %v1703 = vunpack.c.h.b16 %v1344
        %v1704 = vunpack.c.l.b16 %v1345
        %v1705 = vunpack.c.h.b16 %v1345
        %v1706 = vunpack.c.l.b16 %v1346
        %v1707 = vunpack.c.h.b16 %v1346
        %v1708 = vunpack.c.l.b16 %v1347
        %v1709 = vunpack.c.h.b16 %v1347
        %v1710 = vunpack.c.l.b16 %v1348
        %v1711 = vunpack.c.h.b16 %v1348
        %v1712 = vunpack.c.l.b16 %v1349
        %v1713 = vunpack.c.h.b16 %v1349
        %v1714 = vunpack.c.l.b16 %v1350
        %v1715 = vunpack.c.h.b16 %v1350
        %v1716 = vunpack.c.l.b16 %v1351
        %v1717 = vunpack.c.h.b16 %v1351
        %v1718 = vunpack.c.l.b16 %v1352
        %v1719 = vunpack.c.h.b16 %v1352
        %v1720 = vunpack.c.l.b16 %v1353
        %v1721 = vunpack.c.h.b16 %v1353
        %v1722 = vunpack.c.l.b16 %v1354
        %v1723 = vunpack.c.h.b16 %v1354
        %v1724 = vunpack.c.l.b16 %v1355
        %v1725 = vunpack.c.h.b16 %v1355
        %v1726 = vunpack.c.l.b16 %v1356
        %v1727 = vunpack.c.h.b16 %v1356
        %v1728 = vunpack.c.l.b16 %v1357
        %v1729 = vunpack.c.h.b16 %v1357
        %v1730 = vunpack.c.l.b16 %v1358
        %v1731 = vunpack.c.h.b16 %v1358
        %v1732 = vunpack.c.l.b16 %v1359
        %v1733 = vunpack.c.h.b16 %v1359
        %v1734 = vunpack.c.l.b16 %v1360
        %v1735 = vunpack.c.h.b16 %v1360
        %v1736 = vunpack.c.l.b16 %v1361
        %v1737 = vunpack.c.h.b16 %v1361
        %v1738 = vunpack.c.l.b16 %v1362
        %v1739 = vunpack.c.h.b16 %v1362
        %v1740 = vunpack.c.l.b16 %v1363
        %v1741 = vunpack.c.h.b16 %v1363
        %v1742 = vunpack.c.l.b16 %v1364
        %v1743 = vunpack.c.h.b16 %v1364
        %v1744 = vunpack.c.l.b16 %v1365
        %v1745 = vunpack.c.h.b16 %v1365
        %v1746 = vunpack.c.l.b16 %v1366
        %v1747 = vunpack.c.h.b16 %v1366
        %v1748 = vunpack.c.l.b16 %v1367
        %v1749 = vunpack.c.h.b16 %v1367
        %v1750 = vunpack.c.l.b16 %v1368
        %v1751 = vunpack.c.h.b16 %v1368
        %v1752 = vunpack.c.l.b16 %v1369
        %v1753 = vunpack.c.h.b16 %v1369
        %v1754 = vunpack.c.l.b16 %v1370
        %v1755 = vunpack.c.h.b16 %v1370
        %v1756 = vunpack.c.l.b16 %v1371
        %v1757 = vunpack.c.h.b16 %v1371
        %v1758 = vunpack.c.l.b16 %v1372
        %v1759 = vunpack.c.h.b16 %v1372
        %v1760 = vunpack.c.l.b16 %v1373
        %v1761 = vunpack.c.h.b16 %v1373
        %v1762 = vunpack.c.l.b16 %v1374
        %v1763 = vunpack.c.h.b16 %v1374
        %v1764 = vunpack.c.l.b16 %v1375
        %v1765 = vunpack.c.h.b16 %v1375
        %v1766 = vunpack.c.l.b16 %v1376
        %v1767 = vunpack.c.h.b16 %v1376
        %v1768 = vunpack.c.l.b16 %v1377
        %v1769 = vunpack.c.h.b16 %v1377
        %v1770 = vunpack.c.l.b16 %v1378
        %v1771 = vunpack.c.h.b16 %v1378
        %v1772 = vunpack.c.l.b16 %v1379
        %v1773 = vunpack.c.h.b16 %v1379
        %v1774 = vunpack.c.l.b16 %v1380
        %v1775 = vunpack.c.h.b16 %v1380
        %v1776 = vunpack.c.l.b16 %v1381
        %v1777 = vunpack.c.h.b16 %v1381
        %v1778 = vunpack.c.l.b16 %v1382
        %v1779 = vunpack.c.h.b16 %v1382
        %v1780 = vunpack.c.l.b16 %v1383
        %v1781 = vunpack.c.h.b16 %v1383
        %v1782 = vunpack.c.l.b16 %v1384
        %v1783 = vunpack.c.h.b16 %v1384
        %v1784 = vunpack.c.l.b16 %v1385
        %v1785 = vunpack.c.h.b16 %v1385
        %v1786 = vunpack.c.l.b16 %v1386
        %v1787 = vunpack.c.h.b16 %v1386
        %v1788 = vunpack.c.l.b16 %v1387
        %v1789 = vunpack.c.h.b16 %v1387
        %v1790 = vunpack.c.l.b16 %v1388
        %v1791 = vunpack.c.h.b16 %v1388
        %v1792 = vunpack.c.l.b16 %v1389
        %v1793 = vunpack.c.h.b16 %v1389
        %v1794 = vunpack.c.l.b16 %v1390
        %v1795 = vunpack.c.h.b16 %v1390
        %v1796 = vunpack.c.l.b16 %v1391
        %v1797 = vunpack.c.h.b16 %v1391
        %v1798 = vpack.c.b16 %v1546, %v1542
        %v1799 = vpack.c.b16 %v1547, %v1543
        %v1800 = vpack.c.b16 %v1548, %v1544
        %v1801 = vpack.c.b16 %v1549, %v1545
        %v1802 = vpack.c.b16 %v1554, %v1550
        %v1803 = vpack.c.b16 %v1555, %v1551
        %v1804 = vpack.c.b16 %v1556, %v1552
        %v1805 = vpack.c.b16 %v1557, %v1553
        %v1806 = vpack.c.b16 %v1562, %v1558
        %v1807 = vpack.c.b16 %v1563, %v1559
        %v1808 = vpack.c.b16 %v1564, %v1560
        %v1809 = vpack.c.b16 %v1565, %v1561
        %v1810 = vpack.c.b16 %v1570, %v1566
        %v1811 = vpack.c.b16 %v1571, %v1567
        %v1812 = vpack.c.b16 %v1572, %v1568
        %v1813 = vpack.c.b16 %v1573, %v1569
        %v1814 = vpack.c.b16 %v1578, %v1574
        %v1815 = vpack.c.b16 %v1579, %v1575
        %v1816 = vpack.c.b16 %v1580, %v1576
        %v1817 = vpack.c.b16 %v1581, %v1577
        %v1818 = vpack.c.b16 %v1586, %v1582
        %v1819 = vpack.c.b16 %v1587, %v1583
        %v1820 = vpack.c.b16 %v1588, %v1584
        %v1821 = vpack.c.b16 %v1589, %v1585
        %v1822 = vpack.c.b16 %v1594, %v1590
        %v1823 = vpack.c.b16 %v1595, %v1591
        %v1824 = vpack.c.b16 %v1596, %v1592
        %v1825 = vpack.c.b16 %v1597, %v1593
        %v1826 = vpack.c.b16 %v1602, %v1598
        %v1827 = vpack.c.b16 %v1603, %v1599
        %v1828 = vpack.c.b16 %v1604, %v1600
        %v1829 = vpack.c.b16 %v1605, %v1601
        %v1830 = vpack.c.b16 %v1610, %v1606
        %v1831 = vpack.c.b16 %v1611, %v1607
        %v1832 = vpack.c.b16 %v1612, %v1608
        %v1833 = vpack.c.b16 %v1613, %v1609
        %v1834 = vpack.c.b16 %v1618, %v1614
        %v1835 = vpack.c.b16 %v1619, %v1615
        %v1836 = vpack.c.b16 %v1620, %v1616
        %v1837 = vpack.c.b16 %v1621, %v1617
        %v1838 = vpack.c.b16 %v1626, %v1622
        %v1839 = vpack.c.b16 %v1627, %v1623
        %v1840 = vpack.c.b16 %v1628, %v1624
        %v1841 = vpack.c.b16 %v1629, %v1625
        %v1842 = vpack.c.b16 %v1634, %v1630
        %v1843 = vpack.c.b16 %v1635, %v1631
        %v1844 = vpack.c.b16 %v1636, %v1632
        %v1845 = vpack.c.b16 %v1637, %v1633
        %v1846 = vpack.c.b16 %v1642, %v1638
        %v1847 = vpack.c.b16 %v1643, %v1639
        %v1848 = vpack.c.b16 %v1644, %v1640
        %v1849 = vpack.c.b16 %v1645, %v1641
        %v1850 = vpack.c.b16 %v1650, %v1646
        %v1851 = vpack.c.b16 %v1651, %v1647
        %v1852 = vpack.c.b16 %v1652, %v1648
        %v1853 = vpack.c.b16 %v1653, %v1649
        %v1854 = vpack.c.b16 %v1658, %v1654
        %v1855 = vpack.c.b16 %v1659, %v1655
        %v1856 = vpack.c.b16 %v1660, %v1656
        %v1857 = vpack.c.b16 %v1661, %v1657
        %v1858 = vpack.c.b16 %v1666, %v1662
        %v1859 = vpack.c.b16 %v1667, %v1663
        %v1860 = vpack.c.b16 %v1668, %v1664
        %v1861 = vpack.c.b16 %v1669, %v1665
        %v1862 = vpack.c.b16 %v1674, %v1670
        %v1863 = vpack.c.b16 %v1675, %v1671
        %v1864 = vpack.c.b16 %v1676, %v1672
        %v1865 = vpack.c.b16 %v1677, %v1673
        %v1866 = vpack.c.b16 %v1682, %v1678
        %v1867 = vpack.c.b16 %v1683, %v1679
        %v1868 = vpack.c.b16 %v1684, %v1680
        %v1869 = vpack.c.b16 %v1685, %v1681
        %v1870 = vpack.c.b16 %v1690, %v1686
        %v1871 = vpack.c.b16 %v1691, %v1687
        %v1872 = vpack.c.b16 %v1692, %v1688
        %v1873 = vpack.c.b16 %v1693, %v1689
        %v1874 = vpack.c.b16 %v1698, %v1694
        %v1875 = vpack.c.b16 %v1699, %v1695
        %v1876 = vpack.c.b16 %v1700, %v1696
        %v1877 = vpack.c.b16 %v1701, %v1697
        %v1878 = vpack.c.b16 %v1706, %v1702
        %v1879 = vpack.c.b16 %v1707, %v1703
        %v1880 = vpack.c.b16 %v1708, %v1704
        %v1881 = vpack.c.b16 %v1709, %v1705
        %v1882 = vpack.c.b16 %v1714, %v1710
        %v1883 = vpack.c.b16 %v1715, %v1711
        %v1884 = vpack.c.b16 %v1716, %v1712
        %v1885 = vpack.c.b16 %v1717, %v1713
        %v1886 = vpack.c.b16 %v1722, %v1718
        %v1887 = vpack.c.b16 %v1723, %v1719
        %v1888 = vpack.c.b16 %v1724, %v1720
        %v1889 = vpack.c.b16 %v1725, %v1721
        %v1890 = vpack.c.b16 %v1730, %v1726
        %v1891 = vpack.c.b16 %v1731, %v1727
        %v1892 = vpack.c.b16 %v1732, %v1728
        %v1893 = vpack.c.b16 %v1733, %v1729
        %v1894 = vpack.c.b16 %v1738, %v1734
        %v1895 = vpack.c.b16 %v1739, %v1735
        %v1896 = vpack.c.b16 %v1740, %v1736
        %v1897 = vpack.c.b16 %v1741, %v1737
        %v1898 = vpack.c.b16 %v1746, %v1742
        %v1899 = vpack.c.b16 %v1747, %v1743
        %v1900 = vpack.c.b16 %v1748, %v1744
        %v1901 = vpack.c.b16 %v1749, %v1745
        %v1902 = vpack.c.b16 %v1754, %v1750
        %v1903 = vpack.c.b16 %v1755, %v1751
        %v1904 = vpack.c.b16 %v1756, %v1752
        %v1905 = vpack.c.b16 %v1757, %v1753
        %v1906 = vpack.c.b16 %v1762, %v1758
        %v1907 = vpack.c.b16 %v1763, %v1759
        %v1908 = vpack.c.b16 %v1764, %v1760
        %v1909 = vpack.c.b16 %v1765, %v1761
        %v1910 = vpack.c.b16 %v1770, %v1766
        %v1911 = vpack.c.b16 %v1771, %v1767
        %v1912 = vpack.c.b16 %v1772, %v1768
        %v1913 = vpack.c.b16 %v1773, %v1769
        %v1914 = vpack.c.b16 %v1778, %v1774
        %v1915 = vpack.c.b16 %v1779, %v1775
        %v1916 = vpack.c.b16 %v1780, %v1776
        %v1917 = vpack.c.b16 %v1781, %v1777
        %v1918 = vpack.c.b16 %v1786, %v1782
        %v1919 = vpack.c.b16 %v1787, %v1783
        %v1920 = vpack.c.b16 %v1788, %v1784
        %v1921 = vpack.c.b16 %v1789, %v1785
        %v1922 = vpack.c.b16 %v1794, %v1790
        %v1923 = vpack.c.b16 %v1795, %v1791
        %v1924 = vpack.c.b16 %v1796, %v1792
        %v1925 = vpack.c.b16 %v1797, %v1793
        %2054 = vmatprep.subr.bf16.mxu0 %v1799
        %2055 = vmatpush1.bf16.msra.mxu0 %v1798
        %2056 = vmatprep.subr.bf16.mxu0 %v1803
        %2057 = vmatpush1.bf16.msra.mxu0 %v1802
        %2058 = vmatprep.subr.bf16.mxu0 %v1807
        %2059 = vmatpush1.bf16.msra.mxu0 %v1806
        %2060 = vmatprep.subr.bf16.mxu0 %v1811
        %2061 = vmatpush1.bf16.msra.mxu0 %v1810
        %2062 = vmatprep.subr.bf16.mxu0 %v1815
        %2063 = vmatpush1.bf16.msra.mxu0 %v1814
        %2064 = vmatprep.subr.bf16.mxu0 %v1819
        %2065 = vmatpush1.bf16.msra.mxu0 %v1818
        %2066 = vmatprep.subr.bf16.mxu0 %v1823
        %2067 = vmatpush1.bf16.msra.mxu0 %v1822
        %2068 = vmatprep.subr.bf16.mxu0 %v1827
        %2069 = vmatpush1.bf16.msra.mxu0 %v1826
        %2070 = vmatprep.subr.bf16.mxu0 %v1831
        %2071 = vmatpush1.bf16.msra.mxu0 %v1830
        %2072 = vmatprep.subr.bf16.mxu0 %v1835
        %2073 = vmatpush1.bf16.msra.mxu0 %v1834
        %2074 = vmatprep.subr.bf16.mxu0 %v1839
        %2075 = vmatpush1.bf16.msra.mxu0 %v1838
        %2076 = vmatprep.subr.bf16.mxu0 %v1843
        %2077 = vmatpush1.bf16.msra.mxu0 %v1842
        %2078 = vmatprep.subr.bf16.mxu0 %v1847
        %2079 = vmatpush1.bf16.msra.mxu0 %v1846
        %2080 = vmatprep.subr.bf16.mxu0 %v1851
        %2081 = vmatpush1.bf16.msra.mxu0 %v1850
        %2082 = vmatprep.subr.bf16.mxu0 %v1855
        %2083 = vmatpush1.bf16.msra.mxu0 %v1854
        %2084 = vmatprep.subr.bf16.mxu0 %v1859
        %2085 = vmatpush1.bf16.msra.mxu0 %v1858
        %2086 = vmatprep.mubr.bf16.mxu0 %v1201
        %2087 = vmatmul.mubr.bf16.gmra.mrb[0].mxu0 %v1200
        %v2088 = vpop.f32.mrb[0].mxu0
        %v2089 = vadd.f32 %v1397, %v2088
        %v2090 = vpop.f32.mrb[0].mxu0
        %v2091 = vadd.f32 %v1401, %v2090
        %v2092 = vpop.f32.mrb[0].mxu0
        %v2093 = vadd.f32 %v1397, %v2092
        %v2094 = vpop.f32.mrb[0].mxu0
        %v2095 = vadd.f32 %v1401, %v2094
        %2096 = vmatprep.mubr.bf16.mxu0 %v1205
        %2097 = vmatmul.mubr.bf16.gmra.mrb[0].mxu0 %v1204
        %v2098 = vpop.f32.mrb[0].mxu0
        %v2099 = vadd.f32 %v1397, %v2098
        %v2100 = vpop.f32.mrb[0].mxu0
        %v2101 = vadd.f32 %v1401, %v2100
        %v2102 = vpop.f32.mrb[0].mxu0
        %v2103 = vadd.f32 %v1397, %v2102
        %v2104 = vpop.f32.mrb[0].mxu0
        %v2105 = vadd.f32 %v1401, %v2104
        %2106 = vmatprep.mubr.bf16.mxu0 %v1209
        %2107 = vmatmul.mubr.bf16.gmra.mrb[0].mxu0 %v1208
        %v2108 = vpop.f32.mrb[0].mxu0
        %v2109 = vadd.f32 %v1397, %v2108
        %v2110 = vpop.f32.mrb[0].mxu0
        %v2111 = vadd.f32 %v1401, %v2110
        %v2112 = vpop.f32.mrb[0].mxu0
        %v2113 = vadd.f32 %v1397, %v2112
        %v2114 = vpop.f32.mrb[0].mxu0
        %v2115 = vadd.f32 %v1401, %v2114
        %2116 = vmatprep.mubr.bf16.mxu0 %v1213
        %2117 = vmatmul.mubr.bf16.gmra.mrb[0].mxu0 %v1212
        %v2118 = vpop.f32.mrb[0].mxu0
        %v2119 = vadd.f32 %v1397, %v2118
        %v2120 = vpop.f32.mrb[0].mxu0
        %v2121 = vadd.f32 %v1401, %v2120
        %v2122 = vpop.f32.mrb[0].mxu0
        %v2123 = vadd.f32 %v1397, %v2122
        %v2124 = vpop.f32.mrb[0].mxu0
        %v2125 = vadd.f32 %v1401, %v2124
        %2126 = vmatprep.mubr.bf16.mxu0 %v1217
        %2127 = vmatmul.mubr.bf16.gmra.mrb[0].mxu0 %v1216
        %v2128 = vpop.f32.mrb[0].mxu0
        %v2129 = vadd.f32 %v1397, %v2128
        %v2130 = vpop.f32.mrb[0].mxu0
        %v2131 = vadd.f32 %v1401, %v2130
        %v2132 = vpop.f32.mrb[0].mxu0
        %v2133 = vadd.f32 %v1397, %v2132
        %v2134 = vpop.f32.mrb[0].mxu0
        %v2135 = vadd.f32 %v1401, %v2134
        %2136 = vmatprep.mubr.bf16.mxu0 %v1221
        %2137 = vmatmul.mubr.bf16.gmra.mrb[0].mxu0 %v1220
        %v2138 = vpop.f32.mrb[0].mxu0
        %v2139 = vadd.f32 %v1397, %v2138
        %v2140 = vpop.f32.mrb[0].mxu0
        %v2141 = vadd.f32 %v1401, %v2140
        %v2142 = vpop.f32.mrb[0].mxu0
        %v2143 = vadd.f32 %v1397, %v2142
        %v2144 = vpop.f32.mrb[0].mxu0
        %v2145 = vadd.f32 %v1401, %v2144
        %2146 = vmatprep.mubr.bf16.mxu0 %v1225
        %2147 = vmatmul.mubr.bf16.gmra.mrb[0].mxu0 %v1224
        %v2148 = vpop.f32.mrb[0].mxu0
        %v2149 = vadd.f32 %v1397, %v2148
        %v2150 = vpop.f32.mrb[0].mxu0
        %v2151 = vadd.f32 %v1401, %v2150
        %v2152 = vpop.f32.mrb[0].mxu0
        %v2153 = vadd.f32 %v1397, %v2152
        %v2154 = vpop.f32.mrb[0].mxu0
        %v2155 = vadd.f32 %v1401, %v2154
        %2156 = vmatprep.mubr.bf16.mxu0 %v1229
        %2157 = vmatmul.mubr.bf16.gmra.mrb[0].mxu0 %v1228
        %v2158 = vpop.f32.mrb[0].mxu0
        %v2159 = vadd.f32 %v1397, %v2158
        %v2160 = vpop.f32.mrb[0].mxu0
        %v2161 = vadd.f32 %v1401, %v2160
        %v2162 = vpop.f32.mrb[0].mxu0
        %v2163 = vadd.f32 %v1397, %v2162
        %v2164 = vpop.f32.mrb[0].mxu0
        %v2165 = vadd.f32 %v1401, %v2164
        %2166 = vmatprep.mubr.bf16.mxu0 %v1233
        %2167 = vmatmul.mubr.bf16.gmra.mrb[0].mxu0 %v1232
        %v2168 = vpop.f32.mrb[0].mxu0
        %v2169 = vadd.f32 %v1397, %v2168
        %v2170 = vpop.f32.mrb[0].mxu0
        %v2171 = vadd.f32 %v1401, %v2170
        %v2172 = vpop.f32.mrb[0].mxu0
        %v2173 = vadd.f32 %v1397, %v2172
        %v2174 = vpop.f32.mrb[0].mxu0
        %v2175 = vadd.f32 %v1401, %v2174
        %2176 = vmatprep.mubr.bf16.mxu0 %v1237
        %2177 = vmatmul.mubr.bf16.gmra.mrb[0].mxu0 %v1236
        %v2178 = vpop.f32.mrb[0].mxu0
        %v2179 = vadd.f32 %v1397, %v2178
        %v2180 = vpop.f32.mrb[0].mxu0
        %v2181 = vadd.f32 %v1401, %v2180
        %v2182 = vpop.f32.mrb[0].mxu0
        %v2183 = vadd.f32 %v1397, %v2182
        %v2184 = vpop.f32.mrb[0].mxu0
        %v2185 = vadd.f32 %v1401, %v2184
        %2186 = vmatprep.mubr.bf16.mxu0 %v1241
        %2187 = vmatmul.mubr.bf16.gmra.mrb[0].mxu0 %v1240
        %v2188 = vpop.f32.mrb[0].mxu0
        %v2189 = vadd.f32 %v1397, %v2188
        %v2190 = vpop.f32.mrb[0].mxu0
        %v2191 = vadd.f32 %v1401, %v2190
        %v2192 = vpop.f32.mrb[0].mxu0
        %v2193 = vadd.f32 %v1397, %v2192
        %v2194 = vpop.f32.mrb[0].mxu0
        %v2195 = vadd.f32 %v1401, %v2194
        %2196 = vmatprep.mubr.bf16.mxu0 %v1245
        %2197 = vmatmul.mubr.bf16.gmra.mrb[0].mxu0 %v1244
        %v2198 = vpop.f32.mrb[0].mxu0
        %v2199 = vadd.f32 %v1397, %v2198
        %v2200 = vpop.f32.mrb[0].mxu0
        %v2201 = vadd.f32 %v1401, %v2200
        %v2202 = vpop.f32.mrb[0].mxu0
        %v2203 = vadd.f32 %v1397, %v2202
        %v2204 = vpop.f32.mrb[0].mxu0
        %v2205 = vadd.f32 %v1401, %v2204
        %2206 = vmatprep.mubr.bf16.mxu0 %v1249
        %2207 = vmatmul.mubr.bf16.gmra.mrb[0].mxu0 %v1248
        %v2208 = vpop.f32.mrb[0].mxu0
        %v2209 = vadd.f32 %v1397, %v2208
        %v2210 = vpop.f32.mrb[0].mxu0
        %v2211 = vadd.f32 %v1401, %v2210
        %v2212 = vpop.f32.mrb[0].mxu0
        %v2213 = vadd.f32 %v1397, %v2212
        %v2214 = vpop.f32.mrb[0].mxu0
        %v2215 = vadd.f32 %v1401, %v2214
        %2216 = vmatprep.mubr.bf16.mxu0 %v1253
        %2217 = vmatmul.mubr.bf16.gmra.mrb[0].mxu0 %v1252
        %v2218 = vpop.f32.mrb[0].mxu0
        %v2219 = vadd.f32 %v1397, %v2218
        %v2220 = vpop.f32.mrb[0].mxu0
        %v2221 = vadd.f32 %v1401, %v2220
        %v2222 = vpop.f32.mrb[0].mxu0
        %v2223 = vadd.f32 %v1397, %v2222
        %v2224 = vpop.f32.mrb[0].mxu0
        %v2225 = vadd.f32 %v1401, %v2224
        %2226 = vmatprep.mubr.bf16.mxu0 %v1257
        %2227 = vmatmul.mubr.bf16.gmra.mrb[0].mxu0 %v1256
        %v2228 = vpop.f32.mrb[0].mxu0
        %v2229 = vadd.f32 %v1397, %v2228
        %v2230 = vpop.f32.mrb[0].mxu0
        %v2231 = vadd.f32 %v1401, %v2230
        %v2232 = vpop.f32.mrb[0].mxu0
        %v2233 = vadd.f32 %v1397, %v2232
        %v2234 = vpop.f32.mrb[0].mxu0
        %v2235 = vadd.f32 %v1401, %v2234
        %2236 = vmatprep.mubr.bf16.mxu0 %v1261
        %2237 = vmatmul.mubr.bf16.gmra.mrb[0].mxu0 %v1260
        %v2238 = vpop.f32.mrb[0].mxu0
        %v2239 = vadd.f32 %v1397, %v2238
        %v2240 = vpop.f32.mrb[0].mxu0
        %v2241 = vadd.f32 %v1401, %v2240
        %v2242 = vpop.f32.mrb[0].mxu0
        %v2243 = vadd.f32 %v1397, %v2242
        %v2244 = vpop.f32.mrb[0].mxu0
        %v2245 = vadd.f32 %v1401, %v2244
        %2246 = vdwg.mxu0
        %2247 = vmatprep.subr.bf16.mxu0 %v1863
        %2248 = vmatpush1.bf16.msra.mxu0 %v1862
        %2249 = vmatprep.subr.bf16.mxu0 %v1867
        %2250 = vmatpush1.bf16.msra.mxu0 %v1866
        %2251 = vmatprep.subr.bf16.mxu0 %v1871
        %2252 = vmatpush1.bf16.msra.mxu0 %v1870
        %2253 = vmatprep.subr.bf16.mxu0 %v1875
        %2254 = vmatpush1.bf16.msra.mxu0 %v1874
        %2255 = vmatprep.subr.bf16.mxu0 %v1879
        %2256 = vmatpush1.bf16.msra.mxu0 %v1878
        %2257 = vmatprep.subr.bf16.mxu0 %v1883
        %2258 = vmatpush1.bf16.msra.mxu0 %v1882
        %2259 = vmatprep.subr.bf16.mxu0 %v1887
        %2260 = vmatpush1.bf16.msra.mxu0 %v1886
        %2261 = vmatprep.subr.bf16.mxu0 %v1891
        %2262 = vmatpush1.bf16.msra.mxu0 %v1890
        %2263 = vmatprep.subr.bf16.mxu0 %v1895
        %2264 = vmatpush1.bf16.msra.mxu0 %v1894
        %2265 = vmatprep.subr.bf16.mxu0 %v1899
        %2266 = vmatpush1.bf16.msra.mxu0 %v1898
        %2267 = vmatprep.subr.bf16.mxu0 %v1903
        %2268 = vmatpush1.bf16.msra.mxu0 %v1902
        %2269 = vmatprep.subr.bf16.mxu0 %v1907
        %2270 = vmatpush1.bf16.msra.mxu0 %v1906
        %2271 = vmatprep.subr.bf16.mxu0 %v1911
        %2272 = vmatpush1.bf16.msra.mxu0 %v1910
        %2273 = vmatprep.subr.bf16.mxu0 %v1915
        %2274 = vmatpush1.bf16.msra.mxu0 %v1914
        %2275 = vmatprep.subr.bf16.mxu0 %v1919
        %2276 = vmatpush1.bf16.msra.mxu0 %v1918
        %2277 = vmatprep.subr.bf16.mxu0 %v1923
        %2278 = vmatpush1.bf16.msra.mxu0 %v1922
        %2279 = vmatprep.mubr.bf16.mxu0 %v1203
        %2280 = vmatmul.mubr.bf16.gmra.mrb[0].mxu0 %v1202
        %v2281 = vpop.f32.mrb[0].mxu0
        %v2282 = vadd.f32 %v2089, %v2281
        %v2283 = vpop.f32.mrb[0].mxu0
        %v2284 = vadd.f32 %v2091, %v2283
        %v2285 = vpop.f32.mrb[0].mxu0
        %v2286 = vadd.f32 %v2093, %v2285
        %v2287 = vpop.f32.mrb[0].mxu0
        %v2288 = vadd.f32 %v2095, %v2287
        %2289 = vmatprep.mubr.bf16.mxu0 %v1207
        %2290 = vmatmul.mubr.bf16.gmra.mrb[0].mxu0 %v1206
        %v2291 = vpop.f32.mrb[0].mxu0
        %v2292 = vadd.f32 %v2099, %v2291
        %v2293 = vpop.f32.mrb[0].mxu0
        %v2294 = vadd.f32 %v2101, %v2293
        %v2295 = vpop.f32.mrb[0].mxu0
        %v2296 = vadd.f32 %v2103, %v2295
        %v2297 = vpop.f32.mrb[0].mxu0
        %v2298 = vadd.f32 %v2105, %v2297
        %2299 = vmatprep.mubr.bf16.mxu0 %v1211
        %2300 = vmatmul.mubr.bf16.gmra.mrb[0].mxu0 %v1210
        %v2301 = vpop.f32.mrb[0].mxu0
        %v2302 = vadd.f32 %v2109, %v2301
        %v2303 = vpop.f32.mrb[0].mxu0
        %v2304 = vadd.f32 %v2111, %v2303
        %v2305 = vpop.f32.mrb[0].mxu0
        %v2306 = vadd.f32 %v2113, %v2305
        %v2307 = vpop.f32.mrb[0].mxu0
        %v2308 = vadd.f32 %v2115, %v2307
        %2309 = vmatprep.mubr.bf16.mxu0 %v1215
        %2310 = vmatmul.mubr.bf16.gmra.mrb[0].mxu0 %v1214
        %v2311 = vpop.f32.mrb[0].mxu0
        %v2312 = vadd.f32 %v2119, %v2311
        %v2313 = vpop.f32.mrb[0].mxu0
        %v2314 = vadd.f32 %v2121, %v2313
        %v2315 = vpop.f32.mrb[0].mxu0
        %v2316 = vadd.f32 %v2123, %v2315
        %v2317 = vpop.f32.mrb[0].mxu0
        %v2318 = vadd.f32 %v2125, %v2317
        %2319 = vmatprep.mubr.bf16.mxu0 %v1219
        %2320 = vmatmul.mubr.bf16.gmra.mrb[0].mxu0 %v1218
        %v2321 = vpop.f32.mrb[0].mxu0
        %v2322 = vadd.f32 %v2129, %v2321
        %v2323 = vpop.f32.mrb[0].mxu0
        %v2324 = vadd.f32 %v2131, %v2323
        %v2325 = vpop.f32.mrb[0].mxu0
        %v2326 = vadd.f32 %v2133, %v2325
        %v2327 = vpop.f32.mrb[0].mxu0
        %v2328 = vadd.f32 %v2135, %v2327
        %2329 = vmatprep.mubr.bf16.mxu0 %v1223
        %2330 = vmatmul.mubr.bf16.gmra.mrb[0].mxu0 %v1222
        %v2331 = vpop.f32.mrb[0].mxu0
        %v2332 = vadd.f32 %v2139, %v2331
        %v2333 = vpop.f32.mrb[0].mxu0
        %v2334 = vadd.f32 %v2141, %v2333
        %v2335 = vpop.f32.mrb[0].mxu0
        %v2336 = vadd.f32 %v2143, %v2335
        %v2337 = vpop.f32.mrb[0].mxu0
        %v2338 = vadd.f32 %v2145, %v2337
        %2339 = vmatprep.mubr.bf16.mxu0 %v1227
        %2340 = vmatmul.mubr.bf16.gmra.mrb[0].mxu0 %v1226
        %v2341 = vpop.f32.mrb[0].mxu0
        %v2342 = vadd.f32 %v2149, %v2341
        %v2343 = vpop.f32.mrb[0].mxu0
        %v2344 = vadd.f32 %v2151, %v2343
        %v2345 = vpop.f32.mrb[0].mxu0
        %v2346 = vadd.f32 %v2153, %v2345
        %v2347 = vpop.f32.mrb[0].mxu0
        %v2348 = vadd.f32 %v2155, %v2347
        %2349 = vmatprep.mubr.bf16.mxu0 %v1231
        %2350 = vmatmul.mubr.bf16.gmra.mrb[0].mxu0 %v1230
        %v2351 = vpop.f32.mrb[0].mxu0
        %v2352 = vadd.f32 %v2159, %v2351
        %v2353 = vpop.f32.mrb[0].mxu0
        %v2354 = vadd.f32 %v2161, %v2353
        %v2355 = vpop.f32.mrb[0].mxu0
        %v2356 = vadd.f32 %v2163, %v2355
        %v2357 = vpop.f32.mrb[0].mxu0
        %v2358 = vadd.f32 %v2165, %v2357
        %2359 = vmatprep.mubr.bf16.mxu0 %v1235
        %2360 = vmatmul.mubr.bf16.gmra.mrb[0].mxu0 %v1234
        %v2361 = vpop.f32.mrb[0].mxu0
        %v2362 = vadd.f32 %v2169, %v2361
        %v2363 = vpop.f32.mrb[0].mxu0
        %v2364 = vadd.f32 %v2171, %v2363
        %v2365 = vpop.f32.mrb[0].mxu0
        %v2366 = vadd.f32 %v2173, %v2365
        %v2367 = vpop.f32.mrb[0].mxu0
        %v2368 = vadd.f32 %v2175, %v2367
        %2369 = vmatprep.mubr.bf16.mxu0 %v1239
        %2370 = vmatmul.mubr.bf16.gmra.mrb[0].mxu0 %v1238
        %v2371 = vpop.f32.mrb[0].mxu0
        %v2372 = vadd.f32 %v2179, %v2371
        %v2373 = vpop.f32.mrb[0].mxu0
        %v2374 = vadd.f32 %v2181, %v2373
        %v2375 = vpop.f32.mrb[0].mxu0
        %v2376 = vadd.f32 %v2183, %v2375
        %v2377 = vpop.f32.mrb[0].mxu0
        %v2378 = vadd.f32 %v2185, %v2377
        %2379 = vmatprep.mubr.bf16.mxu0 %v1243
        %2380 = vmatmul.mubr.bf16.gmra.mrb[0].mxu0 %v1242
        %v2381 = vpop.f32.mrb[0].mxu0
        %v2382 = vadd.f32 %v2189, %v2381
        %v2383 = vpop.f32.mrb[0].mxu0
        %v2384 = vadd.f32 %v2191, %v2383
        %v2385 = vpop.f32.mrb[0].mxu0
        %v2386 = vadd.f32 %v2193, %v2385
        %v2387 = vpop.f32.mrb[0].mxu0
        %v2388 = vadd.f32 %v2195, %v2387
        %2389 = vmatprep.mubr.bf16.mxu0 %v1247
        %2390 = vmatmul.mubr.bf16.gmra.mrb[0].mxu0 %v1246
        %v2391 = vpop.f32.mrb[0].mxu0
        %v2392 = vadd.f32 %v2199, %v2391
        %v2393 = vpop.f32.mrb[0].mxu0
        %v2394 = vadd.f32 %v2201, %v2393
        %v2395 = vpop.f32.mrb[0].mxu0
        %v2396 = vadd.f32 %v2203, %v2395
        %v2397 = vpop.f32.mrb[0].mxu0
        %v2398 = vadd.f32 %v2205, %v2397
        %2399 = vmatprep.mubr.bf16.mxu0 %v1251
        %2400 = vmatmul.mubr.bf16.gmra.mrb[0].mxu0 %v1250
        %v2401 = vpop.f32.mrb[0].mxu0
        %v2402 = vadd.f32 %v2209, %v2401
        %v2403 = vpop.f32.mrb[0].mxu0
        %v2404 = vadd.f32 %v2211, %v2403
        %v2405 = vpop.f32.mrb[0].mxu0
        %v2406 = vadd.f32 %v2213, %v2405
        %v2407 = vpop.f32.mrb[0].mxu0
        %v2408 = vadd.f32 %v2215, %v2407
        %2409 = vmatprep.mubr.bf16.mxu0 %v1255
        %2410 = vmatmul.mubr.bf16.gmra.mrb[0].mxu0 %v1254
        %v2411 = vpop.f32.mrb[0].mxu0
        %v2412 = vadd.f32 %v2219, %v2411
        %v2413 = vpop.f32.mrb[0].mxu0
        %v2414 = vadd.f32 %v2221, %v2413
        %v2415 = vpop.f32.mrb[0].mxu0
        %v2416 = vadd.f32 %v2223, %v2415
        %v2417 = vpop.f32.mrb[0].mxu0
        %v2418 = vadd.f32 %v2225, %v2417
        %2419 = vmatprep.mubr.bf16.mxu0 %v1259
        %2420 = vmatmul.mubr.bf16.gmra.mrb[0].mxu0 %v1258
        %v2421 = vpop.f32.mrb[0].mxu0
        %v2422 = vadd.f32 %v2229, %v2421
        %v2423 = vpop.f32.mrb[0].mxu0
        %v2424 = vadd.f32 %v2231, %v2423
        %v2425 = vpop.f32.mrb[0].mxu0
        %v2426 = vadd.f32 %v2233, %v2425
        %v2427 = vpop.f32.mrb[0].mxu0
        %v2428 = vadd.f32 %v2235, %v2427
        %2429 = vmatprep.mubr.bf16.mxu0 %v1263
        %2430 = vmatmul.mubr.bf16.gmra.mrb[0].mxu0 %v1262
        %v2431 = vpop.f32.mrb[0].mxu0
        %v2432 = vadd.f32 %v2239, %v2431
        %v2433 = vpop.f32.mrb[0].mxu0
        %v2434 = vadd.f32 %v2241, %v2433
        %v2435 = vpop.f32.mrb[0].mxu0
        %v2436 = vadd.f32 %v2243, %v2435
        %v2437 = vpop.f32.mrb[0].mxu0
        %v2438 = vadd.f32 %v2245, %v2437
        %2439 = vdwg.mxu0
        %2440 = vmatprep.subr.bf16.mxu0 %v1801
        %2441 = vmatpush1.bf16.msra.mxu0 %v1800
        %2442 = vmatprep.subr.bf16.mxu0 %v1805
        %2443 = vmatpush1.bf16.msra.mxu0 %v1804
        %2444 = vmatprep.subr.bf16.mxu0 %v1809
        %2445 = vmatpush1.bf16.msra.mxu0 %v1808
        %2446 = vmatprep.subr.bf16.mxu0 %v1813
        %2447 = vmatpush1.bf16.msra.mxu0 %v1812
        %2448 = vmatprep.subr.bf16.mxu0 %v1817
        %2449 = vmatpush1.bf16.msra.mxu0 %v1816
        %2450 = vmatprep.subr.bf16.mxu0 %v1821
        %2451 = vmatpush1.bf16.msra.mxu0 %v1820
        %2452 = vmatprep.subr.bf16.mxu0 %v1825
        %2453 = vmatpush1.bf16.msra.mxu0 %v1824
        %2454 = vmatprep.subr.bf16.mxu0 %v1829
        %2455 = vmatpush1.bf16.msra.mxu0 %v1828
        %2456 = vmatprep.subr.bf16.mxu0 %v1833
        %2457 = vmatpush1.bf16.msra.mxu0 %v1832
        %2458 = vmatprep.subr.bf16.mxu0 %v1837
        %2459 = vmatpush1.bf16.msra.mxu0 %v1836
        %2460 = vmatprep.subr.bf16.mxu0 %v1841
        %2461 = vmatpush1.bf16.msra.mxu0 %v1840
        %2462 = vmatprep.subr.bf16.mxu0 %v1845
        %2463 = vmatpush1.bf16.msra.mxu0 %v1844
        %2464 = vmatprep.subr.bf16.mxu0 %v1849
        %2465 = vmatpush1.bf16.msra.mxu0 %v1848
        %2466 = vmatprep.subr.bf16.mxu0 %v1853
        %2467 = vmatpush1.bf16.msra.mxu0 %v1852
        %2468 = vmatprep.subr.bf16.mxu0 %v1857
        %2469 = vmatpush1.bf16.msra.mxu0 %v1856
        %2470 = vmatprep.subr.bf16.mxu0 %v1861
        %2471 = vmatpush1.bf16.msra.mxu0 %v1860
        %2472 = vmatprep.mubr.bf16.mxu0 %v1201
        %2473 = vmatmul.mubr.bf16.gmra.mrb[0].mxu0 %v1200
        %v2474 = vpop.f32.mrb[0].mxu0
        %v2475 = vadd.f32 %v1405, %v2474
        %v2476 = vpop.f32.mrb[0].mxu0
        %v2477 = vadd.f32 %v1409, %v2476
        %v2478 = vpop.f32.mrb[0].mxu0
        %v2479 = vadd.f32 %v1405, %v2478
        %v2480 = vpop.f32.mrb[0].mxu0
        %v2481 = vadd.f32 %v1409, %v2480
        %2482 = vmatprep.mubr.bf16.mxu0 %v1205
        %2483 = vmatmul.mubr.bf16.gmra.mrb[0].mxu0 %v1204
        %v2484 = vpop.f32.mrb[0].mxu0
        %v2485 = vadd.f32 %v1405, %v2484
        %v2486 = vpop.f32.mrb[0].mxu0
        %v2487 = vadd.f32 %v1409, %v2486
        %v2488 = vpop.f32.mrb[0].mxu0
        %v2489 = vadd.f32 %v1405, %v2488
        %v2490 = vpop.f32.mrb[0].mxu0
        %v2491 = vadd.f32 %v1409, %v2490
        %2492 = vmatprep.mubr.bf16.mxu0 %v1209
        %2493 = vmatmul.mubr.bf16.gmra.mrb[0].mxu0 %v1208
        %v2494 = vpop.f32.mrb[0].mxu0
        %v2495 = vadd.f32 %v1405, %v2494
        %v2496 = vpop.f32.mrb[0].mxu0
        %v2497 = vadd.f32 %v1409, %v2496
        %v2498 = vpop.f32.mrb[0].mxu0
        %v2499 = vadd.f32 %v1405, %v2498
        %v2500 = vpop.f32.mrb[0].mxu0
        %v2501 = vadd.f32 %v1409, %v2500
        %2502 = vmatprep.mubr.bf16.mxu0 %v1213
        %2503 = vmatmul.mubr.bf16.gmra.mrb[0].mxu0 %v1212
        %v2504 = vpop.f32.mrb[0].mxu0
        %v2505 = vadd.f32 %v1405, %v2504
        %v2506 = vpop.f32.mrb[0].mxu0
        %v2507 = vadd.f32 %v1409, %v2506
        %v2508 = vpop.f32.mrb[0].mxu0
        %v2509 = vadd.f32 %v1405, %v2508
        %v2510 = vpop.f32.mrb[0].mxu0
        %v2511 = vadd.f32 %v1409, %v2510
        %2512 = vmatprep.mubr.bf16.mxu0 %v1217
        %2513 = vmatmul.mubr.bf16.gmra.mrb[0].mxu0 %v1216
        %v2514 = vpop.f32.mrb[0].mxu0
        %v2515 = vadd.f32 %v1405, %v2514
        %v2516 = vpop.f32.mrb[0].mxu0
        %v2517 = vadd.f32 %v1409, %v2516
        %v2518 = vpop.f32.mrb[0].mxu0
        %v2519 = vadd.f32 %v1405, %v2518
        %v2520 = vpop.f32.mrb[0].mxu0
        %v2521 = vadd.f32 %v1409, %v2520
        %2522 = vmatprep.mubr.bf16.mxu0 %v1221
        %2523 = vmatmul.mubr.bf16.gmra.mrb[0].mxu0 %v1220
        %v2524 = vpop.f32.mrb[0].mxu0
        %v2525 = vadd.f32 %v1405, %v2524
        %v2526 = vpop.f32.mrb[0].mxu0
        %v2527 = vadd.f32 %v1409, %v2526
        %v2528 = vpop.f32.mrb[0].mxu0
        %v2529 = vadd.f32 %v1405, %v2528
        %v2530 = vpop.f32.mrb[0].mxu0
        %v2531 = vadd.f32 %v1409, %v2530
        %2532 = vmatprep.mubr.bf16.mxu0 %v1225
        %2533 = vmatmul.mubr.bf16.gmra.mrb[0].mxu0 %v1224
        %v2534 = vpop.f32.mrb[0].mxu0
        %v2535 = vadd.f32 %v1405, %v2534
        %v2536 = vpop.f32.mrb[0].mxu0
        %v2537 = vadd.f32 %v1409, %v2536
        %v2538 = vpop.f32.mrb[0].mxu0
        %v2539 = vadd.f32 %v1405, %v2538
        %v2540 = vpop.f32.mrb[0].mxu0
        %v2541 = vadd.f32 %v1409, %v2540
        %2542 = vmatprep.mubr.bf16.mxu0 %v1229
        %2543 = vmatmul.mubr.bf16.gmra.mrb[0].mxu0 %v1228
        %v2544 = vpop.f32.mrb[0].mxu0
        %v2545 = vadd.f32 %v1405, %v2544
        %v2546 = vpop.f32.mrb[0].mxu0
        %v2547 = vadd.f32 %v1409, %v2546
        %v2548 = vpop.f32.mrb[0].mxu0
        %v2549 = vadd.f32 %v1405, %v2548
        %v2550 = vpop.f32.mrb[0].mxu0
        %v2551 = vadd.f32 %v1409, %v2550
        %2552 = vmatprep.mubr.bf16.mxu0 %v1233
        %2553 = vmatmul.mubr.bf16.gmra.mrb[0].mxu0 %v1232
        %v2554 = vpop.f32.mrb[0].mxu0
        %v2555 = vadd.f32 %v1405, %v2554
        %v2556 = vpop.f32.mrb[0].mxu0
        %v2557 = vadd.f32 %v1409, %v2556
        %v2558 = vpop.f32.mrb[0].mxu0
        %v2559 = vadd.f32 %v1405, %v2558
        %v2560 = vpop.f32.mrb[0].mxu0
        %v2561 = vadd.f32 %v1409, %v2560
        %2562 = vmatprep.mubr.bf16.mxu0 %v1237
        %2563 = vmatmul.mubr.bf16.gmra.mrb[0].mxu0 %v1236
        %v2564 = vpop.f32.mrb[0].mxu0
        %v2565 = vadd.f32 %v1405, %v2564
        %v2566 = vpop.f32.mrb[0].mxu0
        %v2567 = vadd.f32 %v1409, %v2566
        %v2568 = vpop.f32.mrb[0].mxu0
        %v2569 = vadd.f32 %v1405, %v2568
        %v2570 = vpop.f32.mrb[0].mxu0
        %v2571 = vadd.f32 %v1409, %v2570
        %2572 = vmatprep.mubr.bf16.mxu0 %v1241
        %2573 = vmatmul.mubr.bf16.gmra.mrb[0].mxu0 %v1240
        %v2574 = vpop.f32.mrb[0].mxu0
        %v2575 = vadd.f32 %v1405, %v2574
        %v2576 = vpop.f32.mrb[0].mxu0
        %v2577 = vadd.f32 %v1409, %v2576
        %v2578 = vpop.f32.mrb[0].mxu0
        %v2579 = vadd.f32 %v1405, %v2578
        %v2580 = vpop.f32.mrb[0].mxu0
        %v2581 = vadd.f32 %v1409, %v2580
        %2582 = vmatprep.mubr.bf16.mxu0 %v1245
        %2583 = vmatmul.mubr.bf16.gmra.mrb[0].mxu0 %v1244
        %v2584 = vpop.f32.mrb[0].mxu0
        %v2585 = vadd.f32 %v1405, %v2584
        %v2586 = vpop.f32.mrb[0].mxu0
        %v2587 = vadd.f32 %v1409, %v2586
        %v2588 = vpop.f32.mrb[0].mxu0
        %v2589 = vadd.f32 %v1405, %v2588
        %v2590 = vpop.f32.mrb[0].mxu0
        %v2591 = vadd.f32 %v1409, %v2590
        %2592 = vmatprep.mubr.bf16.mxu0 %v1249
        %2593 = vmatmul.mubr.bf16.gmra.mrb[0].mxu0 %v1248
        %v2594 = vpop.f32.mrb[0].mxu0
        %v2595 = vadd.f32 %v1405, %v2594
        %v2596 = vpop.f32.mrb[0].mxu0
        %v2597 = vadd.f32 %v1409, %v2596
        %v2598 = vpop.f32.mrb[0].mxu0
        %v2599 = vadd.f32 %v1405, %v2598
        %v2600 = vpop.f32.mrb[0].mxu0
        %v2601 = vadd.f32 %v1409, %v2600
        %2602 = vmatprep.mubr.bf16.mxu0 %v1253
        %2603 = vmatmul.mubr.bf16.gmra.mrb[0].mxu0 %v1252
        %v2604 = vpop.f32.mrb[0].mxu0
        %v2605 = vadd.f32 %v1405, %v2604
        %v2606 = vpop.f32.mrb[0].mxu0
        %v2607 = vadd.f32 %v1409, %v2606
        %v2608 = vpop.f32.mrb[0].mxu0
        %v2609 = vadd.f32 %v1405, %v2608
        %v2610 = vpop.f32.mrb[0].mxu0
        %v2611 = vadd.f32 %v1409, %v2610
        %2612 = vmatprep.mubr.bf16.mxu0 %v1257
        %2613 = vmatmul.mubr.bf16.gmra.mrb[0].mxu0 %v1256
        %v2614 = vpop.f32.mrb[0].mxu0
        %v2615 = vadd.f32 %v1405, %v2614
        %v2616 = vpop.f32.mrb[0].mxu0
        %v2617 = vadd.f32 %v1409, %v2616
        %v2618 = vpop.f32.mrb[0].mxu0
        %v2619 = vadd.f32 %v1405, %v2618
        %v2620 = vpop.f32.mrb[0].mxu0
        %v2621 = vadd.f32 %v1409, %v2620
        %2622 = vmatprep.mubr.bf16.mxu0 %v1261
        %2623 = vmatmul.mubr.bf16.gmra.mrb[0].mxu0 %v1260
        %v2624 = vpop.f32.mrb[0].mxu0
        %v2625 = vadd.f32 %v1405, %v2624
        %v2626 = vpop.f32.mrb[0].mxu0
        %v2627 = vadd.f32 %v1409, %v2626
        %v2628 = vpop.f32.mrb[0].mxu0
        %v2629 = vadd.f32 %v1405, %v2628
        %v2630 = vpop.f32.mrb[0].mxu0
        %v2631 = vadd.f32 %v1409, %v2630
        %2632 = vdwg.mxu0
        %2633 = vmatprep.subr.bf16.mxu0 %v1865
        %2634 = vmatpush1.bf16.msra.mxu0 %v1864
        %2635 = vmatprep.subr.bf16.mxu0 %v1869
        %2636 = vmatpush1.bf16.msra.mxu0 %v1868
        %2637 = vmatprep.subr.bf16.mxu0 %v1873
        %2638 = vmatpush1.bf16.msra.mxu0 %v1872
        %2639 = vmatprep.subr.bf16.mxu0 %v1877
        %2640 = vmatpush1.bf16.msra.mxu0 %v1876
        %2641 = vmatprep.subr.bf16.mxu0 %v1881
        %2642 = vmatpush1.bf16.msra.mxu0 %v1880
        %2643 = vmatprep.subr.bf16.mxu0 %v1885
        %2644 = vmatpush1.bf16.msra.mxu0 %v1884
        %2645 = vmatprep.subr.bf16.mxu0 %v1889
        %2646 = vmatpush1.bf16.msra.mxu0 %v1888
        %2647 = vmatprep.subr.bf16.mxu0 %v1893
        %2648 = vmatpush1.bf16.msra.mxu0 %v1892
        %2649 = vmatprep.subr.bf16.mxu0 %v1897
        %2650 = vmatpush1.bf16.msra.mxu0 %v1896
        %2651 = vmatprep.subr.bf16.mxu0 %v1901
        %2652 = vmatpush1.bf16.msra.mxu0 %v1900
        %2653 = vmatprep.subr.bf16.mxu0 %v1905
        %2654 = vmatpush1.bf16.msra.mxu0 %v1904
        %2655 = vmatprep.subr.bf16.mxu0 %v1909
        %2656 = vmatpush1.bf16.msra.mxu0 %v1908
        %2657 = vmatprep.subr.bf16.mxu0 %v1913
        %2658 = vmatpush1.bf16.msra.mxu0 %v1912
        %2659 = vmatprep.subr.bf16.mxu0 %v1917
        %2660 = vmatpush1.bf16.msra.mxu0 %v1916
        %2661 = vmatprep.subr.bf16.mxu0 %v1921
        %2662 = vmatpush1.bf16.msra.mxu0 %v1920
        %2663 = vmatprep.subr.bf16.mxu0 %v1925
        %2664 = vmatpush1.bf16.msra.mxu0 %v1924
        %2665 = vmatprep.mubr.bf16.mxu0 %v1203
        %2666 = vmatmul.mubr.bf16.gmra.mrb[0].mxu0 %v1202
        %v2667 = vpop.f32.mrb[0].mxu0
        %v2668 = vadd.f32 %v2475, %v2667
        %v2669 = vpop.f32.mrb[0].mxu0
        %v2670 = vadd.f32 %v2477, %v2669
        %v2671 = vpop.f32.mrb[0].mxu0
        %v2672 = vadd.f32 %v2479, %v2671
        %v2673 = vpop.f32.mrb[0].mxu0
        %v2674 = vadd.f32 %v2481, %v2673
        %2675 = vmatprep.mubr.bf16.mxu0 %v1207
        %2676 = vmatmul.mubr.bf16.gmra.mrb[0].mxu0 %v1206
        %v2677 = vpop.f32.mrb[0].mxu0
        %v2678 = vadd.f32 %v2485, %v2677
        %v2679 = vpop.f32.mrb[0].mxu0
        %v2680 = vadd.f32 %v2487, %v2679
        %v2681 = vpop.f32.mrb[0].mxu0
        %v2682 = vadd.f32 %v2489, %v2681
        %v2683 = vpop.f32.mrb[0].mxu0
        %v2684 = vadd.f32 %v2491, %v2683
        %2685 = vmatprep.mubr.bf16.mxu0 %v1211
        %2686 = vmatmul.mubr.bf16.gmra.mrb[0].mxu0 %v1210
        %v2687 = vpop.f32.mrb[0].mxu0
        %v2688 = vadd.f32 %v2495, %v2687
        %v2689 = vpop.f32.mrb[0].mxu0
        %v2690 = vadd.f32 %v2497, %v2689
        %v2691 = vpop.f32.mrb[0].mxu0
        %v2692 = vadd.f32 %v2499, %v2691
        %v2693 = vpop.f32.mrb[0].mxu0
        %v2694 = vadd.f32 %v2501, %v2693
        %2695 = vmatprep.mubr.bf16.mxu0 %v1215
        %2696 = vmatmul.mubr.bf16.gmra.mrb[0].mxu0 %v1214
        %v2697 = vpop.f32.mrb[0].mxu0
        %v2698 = vadd.f32 %v2505, %v2697
        %v2699 = vpop.f32.mrb[0].mxu0
        %v2700 = vadd.f32 %v2507, %v2699
        %v2701 = vpop.f32.mrb[0].mxu0
        %v2702 = vadd.f32 %v2509, %v2701
        %v2703 = vpop.f32.mrb[0].mxu0
        %v2704 = vadd.f32 %v2511, %v2703
        %2705 = vmatprep.mubr.bf16.mxu0 %v1219
        %2706 = vmatmul.mubr.bf16.gmra.mrb[0].mxu0 %v1218
        %v2707 = vpop.f32.mrb[0].mxu0
        %v2708 = vadd.f32 %v2515, %v2707
        %v2709 = vpop.f32.mrb[0].mxu0
        %v2710 = vadd.f32 %v2517, %v2709
        %v2711 = vpop.f32.mrb[0].mxu0
        %v2712 = vadd.f32 %v2519, %v2711
        %v2713 = vpop.f32.mrb[0].mxu0
        %v2714 = vadd.f32 %v2521, %v2713
        %2715 = vmatprep.mubr.bf16.mxu0 %v1223
        %2716 = vmatmul.mubr.bf16.gmra.mrb[0].mxu0 %v1222
        %v2717 = vpop.f32.mrb[0].mxu0
        %v2718 = vadd.f32 %v2525, %v2717
        %v2719 = vpop.f32.mrb[0].mxu0
        %v2720 = vadd.f32 %v2527, %v2719
        %v2721 = vpop.f32.mrb[0].mxu0
        %v2722 = vadd.f32 %v2529, %v2721
        %v2723 = vpop.f32.mrb[0].mxu0
        %v2724 = vadd.f32 %v2531, %v2723
        %2725 = vmatprep.mubr.bf16.mxu0 %v1227
        %2726 = vmatmul.mubr.bf16.gmra.mrb[0].mxu0 %v1226
        %v2727 = vpop.f32.mrb[0].mxu0
        %v2728 = vadd.f32 %v2535, %v2727
        %v2729 = vpop.f32.mrb[0].mxu0
        %v2730 = vadd.f32 %v2537, %v2729
        %v2731 = vpop.f32.mrb[0].mxu0
        %v2732 = vadd.f32 %v2539, %v2731
        %v2733 = vpop.f32.mrb[0].mxu0
        %v2734 = vadd.f32 %v2541, %v2733
        %2735 = vmatprep.mubr.bf16.mxu0 %v1231
        %2736 = vmatmul.mubr.bf16.gmra.mrb[0].mxu0 %v1230
        %v2737 = vpop.f32.mrb[0].mxu0
        %v2738 = vadd.f32 %v2545, %v2737
        %v2739 = vpop.f32.mrb[0].mxu0
        %v2740 = vadd.f32 %v2547, %v2739
        %v2741 = vpop.f32.mrb[0].mxu0
        %v2742 = vadd.f32 %v2549, %v2741
        %v2743 = vpop.f32.mrb[0].mxu0
        %v2744 = vadd.f32 %v2551, %v2743
        %2745 = vmatprep.mubr.bf16.mxu0 %v1235
        %2746 = vmatmul.mubr.bf16.gmra.mrb[0].mxu0 %v1234
        %v2747 = vpop.f32.mrb[0].mxu0
        %v2748 = vadd.f32 %v2555, %v2747
        %v2749 = vpop.f32.mrb[0].mxu0
        %v2750 = vadd.f32 %v2557, %v2749
        %v2751 = vpop.f32.mrb[0].mxu0
        %v2752 = vadd.f32 %v2559, %v2751
        %v2753 = vpop.f32.mrb[0].mxu0
        %v2754 = vadd.f32 %v2561, %v2753
        %2755 = vmatprep.mubr.bf16.mxu0 %v1239
        %2756 = vmatmul.mubr.bf16.gmra.mrb[0].mxu0 %v1238
        %v2757 = vpop.f32.mrb[0].mxu0
        %v2758 = vadd.f32 %v2565, %v2757
        %v2759 = vpop.f32.mrb[0].mxu0
        %v2760 = vadd.f32 %v2567, %v2759
        %v2761 = vpop.f32.mrb[0].mxu0
        %v2762 = vadd.f32 %v2569, %v2761
        %v2763 = vpop.f32.mrb[0].mxu0
        %v2764 = vadd.f32 %v2571, %v2763
        %2765 = vmatprep.mubr.bf16.mxu0 %v1243
        %2766 = vmatmul.mubr.bf16.gmra.mrb[0].mxu0 %v1242
        %v2767 = vpop.f32.mrb[0].mxu0
        %v2768 = vadd.f32 %v2575, %v2767
        %v2769 = vpop.f32.mrb[0].mxu0
        %v2770 = vadd.f32 %v2577, %v2769
        %v2771 = vpop.f32.mrb[0].mxu0
        %v2772 = vadd.f32 %v2579, %v2771
        %v2773 = vpop.f32.mrb[0].mxu0
        %v2774 = vadd.f32 %v2581, %v2773
        %2775 = vmatprep.mubr.bf16.mxu0 %v1247
        %2776 = vmatmul.mubr.bf16.gmra.mrb[0].mxu0 %v1246
        %v2777 = vpop.f32.mrb[0].mxu0
        %v2778 = vadd.f32 %v2585, %v2777
        %v2779 = vpop.f32.mrb[0].mxu0
        %v2780 = vadd.f32 %v2587, %v2779
        %v2781 = vpop.f32.mrb[0].mxu0
        %v2782 = vadd.f32 %v2589, %v2781
        %v2783 = vpop.f32.mrb[0].mxu0
        %v2784 = vadd.f32 %v2591, %v2783
        %2785 = vmatprep.mubr.bf16.mxu0 %v1251
        %2786 = vmatmul.mubr.bf16.gmra.mrb[0].mxu0 %v1250
        %v2787 = vpop.f32.mrb[0].mxu0
        %v2788 = vadd.f32 %v2595, %v2787
        %v2789 = vpop.f32.mrb[0].mxu0
        %v2790 = vadd.f32 %v2597, %v2789
        %v2791 = vpop.f32.mrb[0].mxu0
        %v2792 = vadd.f32 %v2599, %v2791
        %v2793 = vpop.f32.mrb[0].mxu0
        %v2794 = vadd.f32 %v2601, %v2793
        %2795 = vmatprep.mubr.bf16.mxu0 %v1255
        %2796 = vmatmul.mubr.bf16.gmra.mrb[0].mxu0 %v1254
        %v2797 = vpop.f32.mrb[0].mxu0
        %v2798 = vadd.f32 %v2605, %v2797
        %v2799 = vpop.f32.mrb[0].mxu0
        %v2800 = vadd.f32 %v2607, %v2799
        %v2801 = vpop.f32.mrb[0].mxu0
        %v2802 = vadd.f32 %v2609, %v2801
        %v2803 = vpop.f32.mrb[0].mxu0
        %v2804 = vadd.f32 %v2611, %v2803
        %2805 = vmatprep.mubr.bf16.mxu0 %v1259
        %2806 = vmatmul.mubr.bf16.gmra.mrb[0].mxu0 %v1258
        %v2807 = vpop.f32.mrb[0].mxu0
        %v2808 = vadd.f32 %v2615, %v2807
        %v2809 = vpop.f32.mrb[0].mxu0
        %v2810 = vadd.f32 %v2617, %v2809
        %v2811 = vpop.f32.mrb[0].mxu0
        %v2812 = vadd.f32 %v2619, %v2811
        %v2813 = vpop.f32.mrb[0].mxu0
        %v2814 = vadd.f32 %v2621, %v2813
        %2815 = vmatprep.mubr.bf16.mxu0 %v1263
        %2816 = vmatmul.mubr.bf16.gmra.mrb[0].mxu0 %v1262
        %v2817 = vpop.f32.mrb[0].mxu0
        %v2818 = vadd.f32 %v2625, %v2817
        %v2819 = vpop.f32.mrb[0].mxu0
        %v2820 = vadd.f32 %v2627, %v2819
        %v2821 = vpop.f32.mrb[0].mxu0
        %v2822 = vadd.f32 %v2629, %v2821
        %v2823 = vpop.f32.mrb[0].mxu0
        %v2824 = vadd.f32 %v2631, %v2823
        %2825 = vdwg.mxu0
        %v2826 = vmax.f32 %v2282, 0.0
        %v2827 = vmax.f32 %v2284, 0.0
        %v2828 = vmax.f32 %v2668, 0.0
        %v2829 = vmax.f32 %v2670, 0.0
        %v2830 = vmax.f32 %v2286, 0.0
        %v2831 = vmax.f32 %v2288, 0.0
        %v2832 = vmax.f32 %v2672, 0.0
        %v2833 = vmax.f32 %v2674, 0.0
        %v2834 = vmax.f32 %v2292, 0.0
        %v2835 = vmax.f32 %v2294, 0.0
        %v2836 = vmax.f32 %v2678, 0.0
        %v2837 = vmax.f32 %v2680, 0.0
        %v2838 = vmax.f32 %v2296, 0.0
        %v2839 = vmax.f32 %v2298, 0.0
        %v2840 = vmax.f32 %v2682, 0.0
        %v2841 = vmax.f32 %v2684, 0.0
        %v2842 = vmax.f32 %v2302, 0.0
        %v2843 = vmax.f32 %v2304, 0.0
        %v2844 = vmax.f32 %v2688, 0.0
        %v2845 = vmax.f32 %v2690, 0.0
        %v2846 = vmax.f32 %v2306, 0.0
        %v2847 = vmax.f32 %v2308, 0.0
        %v2848 = vmax.f32 %v2692, 0.0
        %v2849 = vmax.f32 %v2694, 0.0
        %v2850 = vmax.f32 %v2312, 0.0
        %v2851 = vmax.f32 %v2314, 0.0
        %v2852 = vmax.f32 %v2698, 0.0
        %v2853 = vmax.f32 %v2700, 0.0
        %v2854 = vmax.f32 %v2316, 0.0
        %v2855 = vmax.f32 %v2318, 0.0
        %v2856 = vmax.f32 %v2702, 0.0
        %v2857 = vmax.f32 %v2704, 0.0
        %v2858 = vmax.f32 %v2322, 0.0
        %v2859 = vmax.f32 %v2324, 0.0
        %v2860 = vmax.f32 %v2708, 0.0
        %v2861 = vmax.f32 %v2710, 0.0
        %v2862 = vmax.f32 %v2326, 0.0
        %v2863 = vmax.f32 %v2328, 0.0
        %v2864 = vmax.f32 %v2712, 0.0
        %v2865 = vmax.f32 %v2714, 0.0
        %v2866 = vmax.f32 %v2332, 0.0
        %v2867 = vmax.f32 %v2334, 0.0
        %v2868 = vmax.f32 %v2718, 0.0
        %v2869 = vmax.f32 %v2720, 0.0
        %v2870 = vmax.f32 %v2336, 0.0
        %v2871 = vmax.f32 %v2338, 0.0
        %v2872 = vmax.f32 %v2722, 0.0
        %v2873 = vmax.f32 %v2724, 0.0
        %v2874 = vmax.f32 %v2342, 0.0
        %v2875 = vmax.f32 %v2344, 0.0
        %v2876 = vmax.f32 %v2728, 0.0
        %v2877 = vmax.f32 %v2730, 0.0
        %v2878 = vmax.f32 %v2346, 0.0
        %v2879 = vmax.f32 %v2348, 0.0
        %v2880 = vmax.f32 %v2732, 0.0
        %v2881 = vmax.f32 %v2734, 0.0
        %v2882 = vmax.f32 %v2352, 0.0
        %v2883 = vmax.f32 %v2354, 0.0
        %v2884 = vmax.f32 %v2738, 0.0
        %v2885 = vmax.f32 %v2740, 0.0
        %v2886 = vmax.f32 %v2356, 0.0
        %v2887 = vmax.f32 %v2358, 0.0
        %v2888 = vmax.f32 %v2742, 0.0
        %v2889 = vmax.f32 %v2744, 0.0
        %v2890 = vmax.f32 %v2362, 0.0
        %v2891 = vmax.f32 %v2364, 0.0
        %v2892 = vmax.f32 %v2748, 0.0
        %v2893 = vmax.f32 %v2750, 0.0
        %v2894 = vmax.f32 %v2366, 0.0
        %v2895 = vmax.f32 %v2368, 0.0
        %v2896 = vmax.f32 %v2752, 0.0
        %v2897 = vmax.f32 %v2754, 0.0
        %v2898 = vmax.f32 %v2372, 0.0
        %v2899 = vmax.f32 %v2374, 0.0
        %v2900 = vmax.f32 %v2758, 0.0
        %v2901 = vmax.f32 %v2760, 0.0
        %v2902 = vmax.f32 %v2376, 0.0
        %v2903 = vmax.f32 %v2378, 0.0
        %v2904 = vmax.f32 %v2762, 0.0
        %v2905 = vmax.f32 %v2764, 0.0
        %v2906 = vmax.f32 %v2382, 0.0
        %v2907 = vmax.f32 %v2384, 0.0
        %v2908 = vmax.f32 %v2768, 0.0
        %v2909 = vmax.f32 %v2770, 0.0
        %v2910 = vmax.f32 %v2386, 0.0
        %v2911 = vmax.f32 %v2388, 0.0
        %v2912 = vmax.f32 %v2772, 0.0
        %v2913 = vmax.f32 %v2774, 0.0
        %v2914 = vmax.f32 %v2392, 0.0
        %v2915 = vmax.f32 %v2394, 0.0
        %v2916 = vmax.f32 %v2778, 0.0
        %v2917 = vmax.f32 %v2780, 0.0
        %v2918 = vmax.f32 %v2396, 0.0
        %v2919 = vmax.f32 %v2398, 0.0
        %v2920 = vmax.f32 %v2782, 0.0
        %v2921 = vmax.f32 %v2784, 0.0
        %v2922 = vmax.f32 %v2402, 0.0
        %v2923 = vmax.f32 %v2404, 0.0
        %v2924 = vmax.f32 %v2788, 0.0
        %v2925 = vmax.f32 %v2790, 0.0
        %v2926 = vmax.f32 %v2406, 0.0
        %v2927 = vmax.f32 %v2408, 0.0
        %v2928 = vmax.f32 %v2792, 0.0
        %v2929 = vmax.f32 %v2794, 0.0
        %v2930 = vmax.f32 %v2412, 0.0
        %v2931 = vmax.f32 %v2414, 0.0
        %v2932 = vmax.f32 %v2798, 0.0
        %v2933 = vmax.f32 %v2800, 0.0
        %v2934 = vmax.f32 %v2416, 0.0
        %v2935 = vmax.f32 %v2418, 0.0
        %v2936 = vmax.f32 %v2802, 0.0
        %v2937 = vmax.f32 %v2804, 0.0
        %v2938 = vmax.f32 %v2422, 0.0
        %v2939 = vmax.f32 %v2424, 0.0
        %v2940 = vmax.f32 %v2808, 0.0
        %v2941 = vmax.f32 %v2810, 0.0
        %v2942 = vmax.f32 %v2426, 0.0
        %v2943 = vmax.f32 %v2428, 0.0
        %v2944 = vmax.f32 %v2812, 0.0
        %v2945 = vmax.f32 %v2814, 0.0
        %v2946 = vmax.f32 %v2432, 0.0
        %v2947 = vmax.f32 %v2434, 0.0
        %v2948 = vmax.f32 %v2818, 0.0
        %v2949 = vmax.f32 %v2820, 0.0
        %v2950 = vmax.f32 %v2436, 0.0
        %v2951 = vmax.f32 %v2438, 0.0
        %v2952 = vmax.f32 %v2822, 0.0
        %v2953 = vmax.f32 %v2824, 0.0
        %v2954 = vpack.c.bf16 %v2830, %v2826
        %v2955 = vpack.c.bf16 %v2831, %v2827
        %v2956 = vpack.c.bf16 %v2832, %v2828
        %v2957 = vpack.c.bf16 %v2833, %v2829
        %v2958 = vpack.c.bf16 %v2838, %v2834
        %v2959 = vpack.c.bf16 %v2839, %v2835
        %v2960 = vpack.c.bf16 %v2840, %v2836
        %v2961 = vpack.c.bf16 %v2841, %v2837
        %v2962 = vpack.c.bf16 %v2846, %v2842
        %v2963 = vpack.c.bf16 %v2847, %v2843
        %v2964 = vpack.c.bf16 %v2848, %v2844
        %v2965 = vpack.c.bf16 %v2849, %v2845
        %v2966 = vpack.c.bf16 %v2854, %v2850
        %v2967 = vpack.c.bf16 %v2855, %v2851
        %v2968 = vpack.c.bf16 %v2856, %v2852
        %v2969 = vpack.c.bf16 %v2857, %v2853
        %v2970 = vpack.c.bf16 %v2862, %v2858
        %v2971 = vpack.c.bf16 %v2863, %v2859
        %v2972 = vpack.c.bf16 %v2864, %v2860
        %v2973 = vpack.c.bf16 %v2865, %v2861
        %v2974 = vpack.c.bf16 %v2870, %v2866
        %v2975 = vpack.c.bf16 %v2871, %v2867
        %v2976 = vpack.c.bf16 %v2872, %v2868
        %v2977 = vpack.c.bf16 %v2873, %v2869
        %v2978 = vpack.c.bf16 %v2878, %v2874
        %v2979 = vpack.c.bf16 %v2879, %v2875
        %v2980 = vpack.c.bf16 %v2880, %v2876
        %v2981 = vpack.c.bf16 %v2881, %v2877
        %v2982 = vpack.c.bf16 %v2886, %v2882
        %v2983 = vpack.c.bf16 %v2887, %v2883
        %v2984 = vpack.c.bf16 %v2888, %v2884
        %v2985 = vpack.c.bf16 %v2889, %v2885
        %v2986 = vpack.c.bf16 %v2894, %v2890
        %v2987 = vpack.c.bf16 %v2895, %v2891
        %v2988 = vpack.c.bf16 %v2896, %v2892
        %v2989 = vpack.c.bf16 %v2897, %v2893
        %v2990 = vpack.c.bf16 %v2902, %v2898
        %v2991 = vpack.c.bf16 %v2903, %v2899
        %v2992 = vpack.c.bf16 %v2904, %v2900
        %v2993 = vpack.c.bf16 %v2905, %v2901
        %v2994 = vpack.c.bf16 %v2910, %v2906
        %v2995 = vpack.c.bf16 %v2911, %v2907
        %v2996 = vpack.c.bf16 %v2912, %v2908
        %v2997 = vpack.c.bf16 %v2913, %v2909
        %v2998 = vpack.c.bf16 %v2918, %v2914
        %v2999 = vpack.c.bf16 %v2919, %v2915
        %v3000 = vpack.c.bf16 %v2920, %v2916
        %v3001 = vpack.c.bf16 %v2921, %v2917
        %v3002 = vpack.c.bf16 %v2926, %v2922
        %v3003 = vpack.c.bf16 %v2927, %v2923
        %v3004 = vpack.c.bf16 %v2928, %v2924
        %v3005 = vpack.c.bf16 %v2929, %v2925
        %v3006 = vpack.c.bf16 %v2934, %v2930
        %v3007 = vpack.c.bf16 %v2935, %v2931
        %v3008 = vpack.c.bf16 %v2936, %v2932
        %v3009 = vpack.c.bf16 %v2937, %v2933
        %v3010 = vpack.c.bf16 %v2942, %v2938
        %v3011 = vpack.c.bf16 %v2943, %v2939
        %v3012 = vpack.c.bf16 %v2944, %v2940
        %v3013 = vpack.c.bf16 %v2945, %v2941
        %v3014 = vpack.c.bf16 %v2950, %v2946
        %v3015 = vpack.c.bf16 %v2951, %v2947
        %v3016 = vpack.c.bf16 %v2952, %v2948
        %v3017 = vpack.c.bf16 %v2953, %v2949
        %v3018 = vld [vmem:[#allocation8] sm:$0xf]
        %v3019 = vld [vmem:[#allocation8 + $0x4] sm:$0xf]
        %v3020 = vld [vmem:[#allocation8 + $0x8] sm:$0xf]
        %v3021 = vld [vmem:[#allocation8 + $0xc] sm:$0xf]
        %v3022 = vld [vmem:[#allocation8 + $0x10] sm:$0xf]
        %v3023 = vld [vmem:[#allocation8 + $0x14] sm:$0xf]
        %v3024 = vld [vmem:[#allocation8 + $0x18] sm:$0xf]
        %v3025 = vld [vmem:[#allocation8 + $0x1c] sm:$0xf]
        %v3026 = vld [vmem:[#allocation8 + $0x20] sm:$0xf]
        %v3027 = vld [vmem:[#allocation8 + $0x24] sm:$0xf]
        %v3028 = vld [vmem:[#allocation8 + $0x28] sm:$0xf]
        %v3029 = vld [vmem:[#allocation8 + $0x2c] sm:$0xf]
        %v3030 = vld [vmem:[#allocation8 + $0x30] sm:$0xf]
        %v3031 = vld [vmem:[#allocation8 + $0x34] sm:$0xf]
        %v3032 = vld [vmem:[#allocation8 + $0x38] sm:$0xf]
        %v3033 = vld [vmem:[#allocation8 + $0x3c] sm:$0xf]
        %v3034 = vld [vmem:[#allocation8 + $0x40] sm:$0xf]
        %v3035 = vld [vmem:[#allocation8 + $0x44] sm:$0xf]
        %v3036 = vld [vmem:[#allocation8 + $0x48] sm:$0xf]
        %v3037 = vld [vmem:[#allocation8 + $0x4c] sm:$0xf]
        %v3038 = vld [vmem:[#allocation8 + $0x50] sm:$0xf]
        %v3039 = vld [vmem:[#allocation8 + $0x54] sm:$0xf]
        %v3040 = vld [vmem:[#allocation8 + $0x58] sm:$0xf]
        %v3041 = vld [vmem:[#allocation8 + $0x5c] sm:$0xf]
        %v3042 = vld [vmem:[#allocation8 + $0x60] sm:$0xf]
        %v3043 = vld [vmem:[#allocation8 + $0x64] sm:$0xf]
        %v3044 = vld [vmem:[#allocation8 + $0x68] sm:$0xf]
        %v3045 = vld [vmem:[#allocation8 + $0x6c] sm:$0xf]
        %v3046 = vld [vmem:[#allocation8 + $0x70] sm:$0xf]
        %v3047 = vld [vmem:[#allocation8 + $0x74] sm:$0xf]
        %v3048 = vld [vmem:[#allocation8 + $0x78] sm:$0xf]
        %v3049 = vld [vmem:[#allocation8 + $0x7c] sm:$0xf]
        %v3050 = vld [vmem:[#allocation8 + $0x80] sm:$0xf]
        %v3051 = vld [vmem:[#allocation8 + $0x84] sm:$0xf]
        %v3052 = vld [vmem:[#allocation8 + $0x88] sm:$0xf]
        %v3053 = vld [vmem:[#allocation8 + $0x8c] sm:$0xf]
        %v3054 = vld [vmem:[#allocation8 + $0x90] sm:$0xf]
        %v3055 = vld [vmem:[#allocation8 + $0x94] sm:$0xf]
        %v3056 = vld [vmem:[#allocation8 + $0x98] sm:$0xf]
        %v3057 = vld [vmem:[#allocation8 + $0x9c] sm:$0xf]
        %v3058 = vld [vmem:[#allocation8 + $0xa0] sm:$0xf]
        %v3059 = vld [vmem:[#allocation8 + $0xa4] sm:$0xf]
        %v3060 = vld [vmem:[#allocation8 + $0xa8] sm:$0xf]
        %v3061 = vld [vmem:[#allocation8 + $0xac] sm:$0xf]
        %v3062 = vld [vmem:[#allocation8 + $0xb0] sm:$0xf]
        %v3063 = vld [vmem:[#allocation8 + $0xb4] sm:$0xf]
        %v3064 = vld [vmem:[#allocation8 + $0xb8] sm:$0xf]
        %v3065 = vld [vmem:[#allocation8 + $0xbc] sm:$0xf]
        %v3066 = vld [vmem:[#allocation8 + $0xc0] sm:$0xf]
        %v3067 = vld [vmem:[#allocation8 + $0xc4] sm:$0xf]
        %v3068 = vld [vmem:[#allocation8 + $0xc8] sm:$0xf]
        %v3069 = vld [vmem:[#allocation8 + $0xcc] sm:$0xf]
        %v3070 = vld [vmem:[#allocation8 + $0xd0] sm:$0xf]
        %v3071 = vld [vmem:[#allocation8 + $0xd4] sm:$0xf]
        %v3072 = vld [vmem:[#allocation8 + $0xd8] sm:$0xf]
        %v3073 = vld [vmem:[#allocation8 + $0xdc] sm:$0xf]
        %v3074 = vld [vmem:[#allocation8 + $0xe0] sm:$0xf]
        %v3075 = vld [vmem:[#allocation8 + $0xe4] sm:$0xf]
        %v3076 = vld [vmem:[#allocation8 + $0xe8] sm:$0xf]
        %v3077 = vld [vmem:[#allocation8 + $0xec] sm:$0xf]
        %v3078 = vld [vmem:[#allocation8 + $0xf0] sm:$0xf]
        %v3079 = vld [vmem:[#allocation8 + $0xf4] sm:$0xf]
        %v3080 = vld [vmem:[#allocation8 + $0xf8] sm:$0xf]
        %v3081 = vld [vmem:[#allocation8 + $0xfc] sm:$0xf]
        %v3082 = vld [vmem:[%s6] sm:$0x1]
        %v3084 = vlaneseq
        %v3085 = vshrl.u32 %v3084, 7
        %v3086 = vsub.s32 0, %v3085
        %v3087 = vrot.slane %v3082, %v3086
        %v3153 = vunpack.c.l.b16 %v3018
        %v3154 = vunpack.c.l.b16 %v3019
        %v3155 = vunpack.c.l.b16 %v3020
        %v3156 = vunpack.c.l.b16 %v3021
        %v3157 = vunpack.c.l.b16 %v3022
        %v3158 = vunpack.c.l.b16 %v3023
        %v3159 = vunpack.c.l.b16 %v3024
        %v3160 = vunpack.c.l.b16 %v3025
        %v3161 = vunpack.c.l.b16 %v3026
        %v3162 = vunpack.c.l.b16 %v3027
        %v3163 = vunpack.c.l.b16 %v3028
        %v3164 = vunpack.c.l.b16 %v3029
        %v3165 = vunpack.c.l.b16 %v3030
        %v3166 = vunpack.c.l.b16 %v3031
        %v3167 = vunpack.c.l.b16 %v3032
        %v3168 = vunpack.c.l.b16 %v3033
        %v3169 = vunpack.c.l.b16 %v3034
        %v3170 = vunpack.c.l.b16 %v3035
        %v3171 = vunpack.c.l.b16 %v3036
        %v3172 = vunpack.c.l.b16 %v3037
        %v3173 = vunpack.c.l.b16 %v3038
        %v3174 = vunpack.c.l.b16 %v3039
        %v3175 = vunpack.c.l.b16 %v3040
        %v3176 = vunpack.c.l.b16 %v3041
        %v3177 = vunpack.c.l.b16 %v3042
        %v3178 = vunpack.c.l.b16 %v3043
        %v3179 = vunpack.c.l.b16 %v3044
        %v3180 = vunpack.c.l.b16 %v3045
        %v3181 = vunpack.c.l.b16 %v3046
        %v3182 = vunpack.c.l.b16 %v3047
        %v3183 = vunpack.c.l.b16 %v3048
        %v3184 = vunpack.c.l.b16 %v3049
        %v3185 = vunpack.c.l.b16 %v3050
        %v3186 = vunpack.c.l.b16 %v3051
        %v3187 = vunpack.c.l.b16 %v3052
        %v3188 = vunpack.c.l.b16 %v3053
        %v3189 = vunpack.c.l.b16 %v3054
        %v3190 = vunpack.c.l.b16 %v3055
        %v3191 = vunpack.c.l.b16 %v3056
        %v3192 = vunpack.c.l.b16 %v3057
        %v3193 = vunpack.c.l.b16 %v3058
        %v3194 = vunpack.c.l.b16 %v3059
        %v3195 = vunpack.c.l.b16 %v3060
        %v3196 = vunpack.c.l.b16 %v3061
        %v3197 = vunpack.c.l.b16 %v3062
        %v3198 = vunpack.c.l.b16 %v3063
        %v3199 = vunpack.c.l.b16 %v3064
        %v3200 = vunpack.c.l.b16 %v3065
        %v3201 = vunpack.c.l.b16 %v3066
        %v3202 = vunpack.c.l.b16 %v3067
        %v3203 = vunpack.c.l.b16 %v3068
        %v3204 = vunpack.c.l.b16 %v3069
        %v3205 = vunpack.c.l.b16 %v3070
        %v3206 = vunpack.c.l.b16 %v3071
        %v3207 = vunpack.c.l.b16 %v3072
        %v3208 = vunpack.c.l.b16 %v3073
        %v3209 = vunpack.c.l.b16 %v3074
        %v3210 = vunpack.c.l.b16 %v3075
        %v3211 = vunpack.c.l.b16 %v3076
        %v3212 = vunpack.c.l.b16 %v3077
        %v3213 = vunpack.c.l.b16 %v3078
        %v3214 = vunpack.c.l.b16 %v3079
        %v3215 = vunpack.c.l.b16 %v3080
        %v3216 = vunpack.c.l.b16 %v3081
        %v3217 = vpack.c.b16 %v3154, %v3153
        %v3218 = vpack.c.b16 %v3156, %v3155
        %v3219 = vpack.c.b16 %v3158, %v3157
        %v3220 = vpack.c.b16 %v3160, %v3159
        %v3221 = vpack.c.b16 %v3162, %v3161
        %v3222 = vpack.c.b16 %v3164, %v3163
        %v3223 = vpack.c.b16 %v3166, %v3165
        %v3224 = vpack.c.b16 %v3168, %v3167
        %v3225 = vpack.c.b16 %v3170, %v3169
        %v3226 = vpack.c.b16 %v3172, %v3171
        %v3227 = vpack.c.b16 %v3174, %v3173
        %v3228 = vpack.c.b16 %v3176, %v3175
        %v3229 = vpack.c.b16 %v3178, %v3177
        %v3230 = vpack.c.b16 %v3180, %v3179
        %v3231 = vpack.c.b16 %v3182, %v3181
        %v3232 = vpack.c.b16 %v3184, %v3183
        %v3233 = vpack.c.b16 %v3186, %v3185
        %v3234 = vpack.c.b16 %v3188, %v3187
        %v3235 = vpack.c.b16 %v3190, %v3189
        %v3236 = vpack.c.b16 %v3192, %v3191
        %v3237 = vpack.c.b16 %v3194, %v3193
        %v3238 = vpack.c.b16 %v3196, %v3195
        %v3239 = vpack.c.b16 %v3198, %v3197
        %v3240 = vpack.c.b16 %v3200, %v3199
        %v3241 = vpack.c.b16 %v3202, %v3201
        %v3242 = vpack.c.b16 %v3204, %v3203
        %v3243 = vpack.c.b16 %v3206, %v3205
        %v3244 = vpack.c.b16 %v3208, %v3207
        %v3245 = vpack.c.b16 %v3210, %v3209
        %v3246 = vpack.c.b16 %v3212, %v3211
        %v3247 = vpack.c.b16 %v3214, %v3213
        %v3248 = vpack.c.b16 %v3216, %v3215
        %3281 = vmatprep.subr.bf16.mxu0 0
        %3282 = vmatpush1.bf16.msra.mxu0 %v3217
        %3283 = vmatprep.subr.bf16.mxu0 0
        %3284 = vmatpush1.bf16.msra.mxu0 %v3218
        %3285 = vmatprep.subr.bf16.mxu0 0
        %3286 = vmatpush1.bf16.msra.mxu0 %v3219
        %3287 = vmatprep.subr.bf16.mxu0 0
        %3288 = vmatpush1.bf16.msra.mxu0 %v3220
        %3289 = vmatprep.subr.bf16.mxu0 0
        %3290 = vmatpush1.bf16.msra.mxu0 %v3221
        %3291 = vmatprep.subr.bf16.mxu0 0
        %3292 = vmatpush1.bf16.msra.mxu0 %v3222
        %3293 = vmatprep.subr.bf16.mxu0 0
        %3294 = vmatpush1.bf16.msra.mxu0 %v3223
        %3295 = vmatprep.subr.bf16.mxu0 0
        %3296 = vmatpush1.bf16.msra.mxu0 %v3224
        %3297 = vmatprep.subr.bf16.mxu0 0
        %3298 = vmatpush1.bf16.msra.mxu0 %v3225
        %3299 = vmatprep.subr.bf16.mxu0 0
        %3300 = vmatpush1.bf16.msra.mxu0 %v3226
        %3301 = vmatprep.subr.bf16.mxu0 0
        %3302 = vmatpush1.bf16.msra.mxu0 %v3227
        %3303 = vmatprep.subr.bf16.mxu0 0
        %3304 = vmatpush1.bf16.msra.mxu0 %v3228
        %3305 = vmatprep.subr.bf16.mxu0 0
        %3306 = vmatpush1.bf16.msra.mxu0 %v3229
        %3307 = vmatprep.subr.bf16.mxu0 0
        %3308 = vmatpush1.bf16.msra.mxu0 %v3230
        %3309 = vmatprep.subr.bf16.mxu0 0
        %3310 = vmatpush1.bf16.msra.mxu0 %v3231
        %3311 = vmatprep.subr.bf16.mxu0 0
        %3312 = vmatpush1.bf16.msra.mxu0 %v3232
        %3313 = vmatprep.mubr.bf16.mxu0 %v2955
        %3314 = vmatmul.mubr.bf16.gmra.mrb[0].mxu0 %v2954
        %v3315 = vpop.f32.mrb[0].mxu0
        %v3316 = vadd.f32 %v3087, %v3315
        %v3317 = vpop.f32.mrb[0].mxu0
        %v3318 = vpop.f32.mrb[0].mxu0
        %v3319 = vadd.f32 %v3087, %v3318
        %v3320 = vpop.f32.mrb[0].mxu0
        %3321 = vmatprep.mubr.bf16.mxu0 %v2959
        %3322 = vmatmul.mubr.bf16.gmra.mrb[0].mxu0 %v2958
        %v3323 = vpop.f32.mrb[0].mxu0
        %v3324 = vadd.f32 %v3087, %v3323
        %v3325 = vpop.f32.mrb[0].mxu0
        %v3326 = vpop.f32.mrb[0].mxu0
        %v3327 = vadd.f32 %v3087, %v3326
        %v3328 = vpop.f32.mrb[0].mxu0
        %3329 = vmatprep.mubr.bf16.mxu0 %v2963
        %3330 = vmatmul.mubr.bf16.gmra.mrb[0].mxu0 %v2962
        %v3331 = vpop.f32.mrb[0].mxu0
        %v3332 = vadd.f32 %v3087, %v3331
        %v3333 = vpop.f32.mrb[0].mxu0
        %v3334 = vpop.f32.mrb[0].mxu0
        %v3335 = vadd.f32 %v3087, %v3334
        %v3336 = vpop.f32.mrb[0].mxu0
        %3337 = vmatprep.mubr.bf16.mxu0 %v2967
        %3338 = vmatmul.mubr.bf16.gmra.mrb[0].mxu0 %v2966
        %v3339 = vpop.f32.mrb[0].mxu0
        %v3340 = vadd.f32 %v3087, %v3339
        %v3341 = vpop.f32.mrb[0].mxu0
        %v3342 = vpop.f32.mrb[0].mxu0
        %v3343 = vadd.f32 %v3087, %v3342
        %v3344 = vpop.f32.mrb[0].mxu0
        %3345 = vmatprep.mubr.bf16.mxu0 %v2971
        %3346 = vmatmul.mubr.bf16.gmra.mrb[0].mxu0 %v2970
        %v3347 = vpop.f32.mrb[0].mxu0
        %v3348 = vadd.f32 %v3087, %v3347
        %v3349 = vpop.f32.mrb[0].mxu0
        %v3350 = vpop.f32.mrb[0].mxu0
        %v3351 = vadd.f32 %v3087, %v3350
        %v3352 = vpop.f32.mrb[0].mxu0
        %3353 = vmatprep.mubr.bf16.mxu0 %v2975
        %3354 = vmatmul.mubr.bf16.gmra.mrb[0].mxu0 %v2974
        %v3355 = vpop.f32.mrb[0].mxu0
        %v3356 = vadd.f32 %v3087, %v3355
        %v3357 = vpop.f32.mrb[0].mxu0
        %v3358 = vpop.f32.mrb[0].mxu0
        %v3359 = vadd.f32 %v3087, %v3358
        %v3360 = vpop.f32.mrb[0].mxu0
        %3361 = vmatprep.mubr.bf16.mxu0 %v2979
        %3362 = vmatmul.mubr.bf16.gmra.mrb[0].mxu0 %v2978
        %v3363 = vpop.f32.mrb[0].mxu0
        %v3364 = vadd.f32 %v3087, %v3363
        %v3365 = vpop.f32.mrb[0].mxu0
        %v3366 = vpop.f32.mrb[0].mxu0
        %v3367 = vadd.f32 %v3087, %v3366
        %v3368 = vpop.f32.mrb[0].mxu0
        %3369 = vmatprep.mubr.bf16.mxu0 %v2983
        %3370 = vmatmul.mubr.bf16.gmra.mrb[0].mxu0 %v2982
        %v3371 = vpop.f32.mrb[0].mxu0
        %v3372 = vadd.f32 %v3087, %v3371
        %v3373 = vpop.f32.mrb[0].mxu0
        %v3374 = vpop.f32.mrb[0].mxu0
        %v3375 = vadd.f32 %v3087, %v3374
        %v3376 = vpop.f32.mrb[0].mxu0
        %3377 = vmatprep.mubr.bf16.mxu0 %v2987
        %3378 = vmatmul.mubr.bf16.gmra.mrb[0].mxu0 %v2986
        %v3379 = vpop.f32.mrb[0].mxu0
        %v3380 = vadd.f32 %v3087, %v3379
        %v3381 = vpop.f32.mrb[0].mxu0
        %v3382 = vpop.f32.mrb[0].mxu0
        %v3383 = vadd.f32 %v3087, %v3382
        %v3384 = vpop.f32.mrb[0].mxu0
        %3385 = vmatprep.mubr.bf16.mxu0 %v2991
        %3386 = vmatmul.mubr.bf16.gmra.mrb[0].mxu0 %v2990
        %v3387 = vpop.f32.mrb[0].mxu0
        %v3388 = vadd.f32 %v3087, %v3387
        %v3389 = vpop.f32.mrb[0].mxu0
        %v3390 = vpop.f32.mrb[0].mxu0
        %v3391 = vadd.f32 %v3087, %v3390
        %v3392 = vpop.f32.mrb[0].mxu0
        %3393 = vmatprep.mubr.bf16.mxu0 %v2995
        %3394 = vmatmul.mubr.bf16.gmra.mrb[0].mxu0 %v2994
        %v3395 = vpop.f32.mrb[0].mxu0
        %v3396 = vadd.f32 %v3087, %v3395
        %v3397 = vpop.f32.mrb[0].mxu0
        %v3398 = vpop.f32.mrb[0].mxu0
        %v3399 = vadd.f32 %v3087, %v3398
        %v3400 = vpop.f32.mrb[0].mxu0
        %3401 = vmatprep.mubr.bf16.mxu0 %v2999
        %3402 = vmatmul.mubr.bf16.gmra.mrb[0].mxu0 %v2998
        %v3403 = vpop.f32.mrb[0].mxu0
        %v3404 = vadd.f32 %v3087, %v3403
        %v3405 = vpop.f32.mrb[0].mxu0
        %v3406 = vpop.f32.mrb[0].mxu0
        %v3407 = vadd.f32 %v3087, %v3406
        %v3408 = vpop.f32.mrb[0].mxu0
        %3409 = vmatprep.mubr.bf16.mxu0 %v3003
        %3410 = vmatmul.mubr.bf16.gmra.mrb[0].mxu0 %v3002
        %v3411 = vpop.f32.mrb[0].mxu0
        %v3412 = vadd.f32 %v3087, %v3411
        %v3413 = vpop.f32.mrb[0].mxu0
        %v3414 = vpop.f32.mrb[0].mxu0
        %v3415 = vadd.f32 %v3087, %v3414
        %v3416 = vpop.f32.mrb[0].mxu0
        %3417 = vmatprep.mubr.bf16.mxu0 %v3007
        %3418 = vmatmul.mubr.bf16.gmra.mrb[0].mxu0 %v3006
        %v3419 = vpop.f32.mrb[0].mxu0
        %v3420 = vadd.f32 %v3087, %v3419
        %v3421 = vpop.f32.mrb[0].mxu0
        %v3422 = vpop.f32.mrb[0].mxu0
        %v3423 = vadd.f32 %v3087, %v3422
        %v3424 = vpop.f32.mrb[0].mxu0
        %3425 = vmatprep.mubr.bf16.mxu0 %v3011
        %3426 = vmatmul.mubr.bf16.gmra.mrb[0].mxu0 %v3010
        %v3427 = vpop.f32.mrb[0].mxu0
        %v3428 = vadd.f32 %v3087, %v3427
        %v3429 = vpop.f32.mrb[0].mxu0
        %v3430 = vpop.f32.mrb[0].mxu0
        %v3431 = vadd.f32 %v3087, %v3430
        %v3432 = vpop.f32.mrb[0].mxu0
        %3433 = vmatprep.mubr.bf16.mxu0 %v3015
        %3434 = vmatmul.mubr.bf16.gmra.mrb[0].mxu0 %v3014
        %v3435 = vpop.f32.mrb[0].mxu0
        %v3436 = vadd.f32 %v3087, %v3435
        %v3437 = vpop.f32.mrb[0].mxu0
        %v3438 = vpop.f32.mrb[0].mxu0
        %v3439 = vadd.f32 %v3087, %v3438
        %v3440 = vpop.f32.mrb[0].mxu0
        %3441 = vdwg.mxu0
        %3442 = vmatprep.subr.bf16.mxu0 0
        %3443 = vmatpush1.bf16.msra.mxu0 %v3233
        %3444 = vmatprep.subr.bf16.mxu0 0
        %3445 = vmatpush1.bf16.msra.mxu0 %v3234
        %3446 = vmatprep.subr.bf16.mxu0 0
        %3447 = vmatpush1.bf16.msra.mxu0 %v3235
        %3448 = vmatprep.subr.bf16.mxu0 0
        %3449 = vmatpush1.bf16.msra.mxu0 %v3236
        %3450 = vmatprep.subr.bf16.mxu0 0
        %3451 = vmatpush1.bf16.msra.mxu0 %v3237
        %3452 = vmatprep.subr.bf16.mxu0 0
        %3453 = vmatpush1.bf16.msra.mxu0 %v3238
        %3454 = vmatprep.subr.bf16.mxu0 0
        %3455 = vmatpush1.bf16.msra.mxu0 %v3239
        %3456 = vmatprep.subr.bf16.mxu0 0
        %3457 = vmatpush1.bf16.msra.mxu0 %v3240
        %3458 = vmatprep.subr.bf16.mxu0 0
        %3459 = vmatpush1.bf16.msra.mxu0 %v3241
        %3460 = vmatprep.subr.bf16.mxu0 0
        %3461 = vmatpush1.bf16.msra.mxu0 %v3242
        %3462 = vmatprep.subr.bf16.mxu0 0
        %3463 = vmatpush1.bf16.msra.mxu0 %v3243
        %3464 = vmatprep.subr.bf16.mxu0 0
        %3465 = vmatpush1.bf16.msra.mxu0 %v3244
        %3466 = vmatprep.subr.bf16.mxu0 0
        %3467 = vmatpush1.bf16.msra.mxu0 %v3245
        %3468 = vmatprep.subr.bf16.mxu0 0
        %3469 = vmatpush1.bf16.msra.mxu0 %v3246
        %3470 = vmatprep.subr.bf16.mxu0 0
        %3471 = vmatpush1.bf16.msra.mxu0 %v3247
        %3472 = vmatprep.subr.bf16.mxu0 0
        %3473 = vmatpush1.bf16.msra.mxu0 %v3248
        %3474 = vmatprep.mubr.bf16.mxu0 %v2957
        %3475 = vmatmul.mubr.bf16.gmra.mrb[0].mxu0 %v2956
        %v3476 = vpop.f32.mrb[0].mxu0
        %v3477 = vadd.f32 %v3316, %v3476
        %v3478 = vpop.f32.mrb[0].mxu0
        %v3479 = vpop.f32.mrb[0].mxu0
        %v3480 = vadd.f32 %v3319, %v3479
        %v3481 = vpop.f32.mrb[0].mxu0
        %3482 = vmatprep.mubr.bf16.mxu0 %v2961
        %3483 = vmatmul.mubr.bf16.gmra.mrb[0].mxu0 %v2960
        %v3484 = vpop.f32.mrb[0].mxu0
        %v3485 = vadd.f32 %v3324, %v3484
        %v3486 = vpop.f32.mrb[0].mxu0
        %v3487 = vpop.f32.mrb[0].mxu0
        %v3488 = vadd.f32 %v3327, %v3487
        %v3489 = vpop.f32.mrb[0].mxu0
        %3490 = vmatprep.mubr.bf16.mxu0 %v2965
        %3491 = vmatmul.mubr.bf16.gmra.mrb[0].mxu0 %v2964
        %v3492 = vpop.f32.mrb[0].mxu0
        %v3493 = vadd.f32 %v3332, %v3492
        %v3494 = vpop.f32.mrb[0].mxu0
        %v3495 = vpop.f32.mrb[0].mxu0
        %v3496 = vadd.f32 %v3335, %v3495
        %v3497 = vpop.f32.mrb[0].mxu0
        %3498 = vmatprep.mubr.bf16.mxu0 %v2969
        %3499 = vmatmul.mubr.bf16.gmra.mrb[0].mxu0 %v2968
        %v3500 = vpop.f32.mrb[0].mxu0
        %v3501 = vadd.f32 %v3340, %v3500
        %v3502 = vpop.f32.mrb[0].mxu0
        %v3503 = vpop.f32.mrb[0].mxu0
        %v3504 = vadd.f32 %v3343, %v3503
        %v3505 = vpop.f32.mrb[0].mxu0
        %3506 = vmatprep.mubr.bf16.mxu0 %v2973
        %3507 = vmatmul.mubr.bf16.gmra.mrb[0].mxu0 %v2972
        %v3508 = vpop.f32.mrb[0].mxu0
        %v3509 = vadd.f32 %v3348, %v3508
        %v3510 = vpop.f32.mrb[0].mxu0
        %v3511 = vpop.f32.mrb[0].mxu0
        %v3512 = vadd.f32 %v3351, %v3511
        %v3513 = vpop.f32.mrb[0].mxu0
        %3514 = vmatprep.mubr.bf16.mxu0 %v2977
        %3515 = vmatmul.mubr.bf16.gmra.mrb[0].mxu0 %v2976
        %v3516 = vpop.f32.mrb[0].mxu0
        %v3517 = vadd.f32 %v3356, %v3516
        %v3518 = vpop.f32.mrb[0].mxu0
        %v3519 = vpop.f32.mrb[0].mxu0
        %v3520 = vadd.f32 %v3359, %v3519
        %v3521 = vpop.f32.mrb[0].mxu0
        %3522 = vmatprep.mubr.bf16.mxu0 %v2981
        %3523 = vmatmul.mubr.bf16.gmra.mrb[0].mxu0 %v2980
        %v3524 = vpop.f32.mrb[0].mxu0
        %v3525 = vadd.f32 %v3364, %v3524
        %v3526 = vpop.f32.mrb[0].mxu0
        %v3527 = vpop.f32.mrb[0].mxu0
        %v3528 = vadd.f32 %v3367, %v3527
        %v3529 = vpop.f32.mrb[0].mxu0
        %3530 = vmatprep.mubr.bf16.mxu0 %v2985
        %3531 = vmatmul.mubr.bf16.gmra.mrb[0].mxu0 %v2984
        %v3532 = vpop.f32.mrb[0].mxu0
        %v3533 = vadd.f32 %v3372, %v3532
        %v3534 = vpop.f32.mrb[0].mxu0
        %v3535 = vpop.f32.mrb[0].mxu0
        %v3536 = vadd.f32 %v3375, %v3535
        %v3537 = vpop.f32.mrb[0].mxu0
        %3538 = vmatprep.mubr.bf16.mxu0 %v2989
        %3539 = vmatmul.mubr.bf16.gmra.mrb[0].mxu0 %v2988
        %v3540 = vpop.f32.mrb[0].mxu0
        %v3541 = vadd.f32 %v3380, %v3540
        %v3542 = vpop.f32.mrb[0].mxu0
        %v3543 = vpop.f32.mrb[0].mxu0
        %v3544 = vadd.f32 %v3383, %v3543
        %v3545 = vpop.f32.mrb[0].mxu0
        %3546 = vmatprep.mubr.bf16.mxu0 %v2993
        %3547 = vmatmul.mubr.bf16.gmra.mrb[0].mxu0 %v2992
        %v3548 = vpop.f32.mrb[0].mxu0
        %v3549 = vadd.f32 %v3388, %v3548
        %v3550 = vpop.f32.mrb[0].mxu0
        %v3551 = vpop.f32.mrb[0].mxu0
        %v3552 = vadd.f32 %v3391, %v3551
        %v3553 = vpop.f32.mrb[0].mxu0
        %3554 = vmatprep.mubr.bf16.mxu0 %v2997
        %3555 = vmatmul.mubr.bf16.gmra.mrb[0].mxu0 %v2996
        %v3556 = vpop.f32.mrb[0].mxu0
        %v3557 = vadd.f32 %v3396, %v3556
        %v3558 = vpop.f32.mrb[0].mxu0
        %v3559 = vpop.f32.mrb[0].mxu0
        %v3560 = vadd.f32 %v3399, %v3559
        %v3561 = vpop.f32.mrb[0].mxu0
        %3562 = vmatprep.mubr.bf16.mxu0 %v3001
        %3563 = vmatmul.mubr.bf16.gmra.mrb[0].mxu0 %v3000
        %v3564 = vpop.f32.mrb[0].mxu0
        %v3565 = vadd.f32 %v3404, %v3564
        %v3566 = vpop.f32.mrb[0].mxu0
        %v3567 = vpop.f32.mrb[0].mxu0
        %v3568 = vadd.f32 %v3407, %v3567
        %v3569 = vpop.f32.mrb[0].mxu0
        %3570 = vmatprep.mubr.bf16.mxu0 %v3005
        %3571 = vmatmul.mubr.bf16.gmra.mrb[0].mxu0 %v3004
        %v3572 = vpop.f32.mrb[0].mxu0
        %v3573 = vadd.f32 %v3412, %v3572
        %v3574 = vpop.f32.mrb[0].mxu0
        %v3575 = vpop.f32.mrb[0].mxu0
        %v3576 = vadd.f32 %v3415, %v3575
        %v3577 = vpop.f32.mrb[0].mxu0
        %3578 = vmatprep.mubr.bf16.mxu0 %v3009
        %3579 = vmatmul.mubr.bf16.gmra.mrb[0].mxu0 %v3008
        %v3580 = vpop.f32.mrb[0].mxu0
        %v3581 = vadd.f32 %v3420, %v3580
        %v3582 = vpop.f32.mrb[0].mxu0
        %v3583 = vpop.f32.mrb[0].mxu0
        %v3584 = vadd.f32 %v3423, %v3583
        %v3585 = vpop.f32.mrb[0].mxu0
        %3586 = vmatprep.mubr.bf16.mxu0 %v3013
        %3587 = vmatmul.mubr.bf16.gmra.mrb[0].mxu0 %v3012
        %v3588 = vpop.f32.mrb[0].mxu0
        %v3589 = vadd.f32 %v3428, %v3588
        %v3590 = vpop.f32.mrb[0].mxu0
        %v3591 = vpop.f32.mrb[0].mxu0
        %v3592 = vadd.f32 %v3431, %v3591
        %v3593 = vpop.f32.mrb[0].mxu0
        %3594 = vmatprep.mubr.bf16.mxu0 %v3017
        %3595 = vmatmul.mubr.bf16.gmra.mrb[0].mxu0 %v3016
        %v3596 = vpop.f32.mrb[0].mxu0
        %v3597 = vadd.f32 %v3436, %v3596
        %v3598 = vpop.f32.mrb[0].mxu0
        %v3599 = vpop.f32.mrb[0].mxu0
        %v3600 = vadd.f32 %v3439, %v3599
        %v3601 = vpop.f32.mrb[0].mxu0
        %3602 = vdwg.mxu0
        %3603 = vst [vmem:[%s340] sm:$0xff] %v3477
        %3604 = vst [vmem:[%s340 + $0x8] sm:$0xff] %v3480
        %3605 = vst [vmem:[%s340 + $0x10] sm:$0xff] %v3485
        %3606 = vst [vmem:[%s340 + $0x18] sm:$0xff] %v3488
        %3607 = vst [vmem:[%s340 + $0x20] sm:$0xff] %v3493
        %3608 = vst [vmem:[%s340 + $0x28] sm:$0xff] %v3496
        %3609 = vst [vmem:[%s340 + $0x30] sm:$0xff] %v3501
        %3610 = vst [vmem:[%s340 + $0x38] sm:$0xff] %v3504
        %3611 = vst [vmem:[%s340 + $0x40] sm:$0xff] %v3509
        %3612 = vst [vmem:[%s340 + $0x48] sm:$0xff] %v3512
        %3613 = vst [vmem:[%s340 + $0x50] sm:$0xff] %v3517
        %3614 = vst [vmem:[%s340 + $0x58] sm:$0xff] %v3520
        %3615 = vst [vmem:[%s340 + $0x60] sm:$0xff] %v3525
        %3616 = vst [vmem:[%s340 + $0x68] sm:$0xff] %v3528
        %3617 = vst [vmem:[%s340 + $0x70] sm:$0xff] %v3533
        %3618 = vst [vmem:[%s340 + $0x78] sm:$0xff] %v3536
        %3619 = vst [vmem:[%s340 + $0x80] sm:$0xff] %v3541
        %3620 = vst [vmem:[%s340 + $0x88] sm:$0xff] %v3544
        %3621 = vst [vmem:[%s340 + $0x90] sm:$0xff] %v3549
        %3622 = vst [vmem:[%s340 + $0x98] sm:$0xff] %v3552
        %3623 = vst [vmem:[%s340 + $0xa0] sm:$0xff] %v3557
        %3624 = vst [vmem:[%s340 + $0xa8] sm:$0xff] %v3560
        %3625 = vst [vmem:[%s340 + $0xb0] sm:$0xff] %v3565
        %3626 = vst [vmem:[%s340 + $0xb8] sm:$0xff] %v3568
        %3627 = vst [vmem:[%s340 + $0xc0] sm:$0xff] %v3573
        %3628 = vst [vmem:[%s340 + $0xc8] sm:$0xff] %v3576
        %3629 = vst [vmem:[%s340 + $0xd0] sm:$0xff] %v3581
        %3630 = vst [vmem:[%s340 + $0xd8] sm:$0xff] %v3584
        %3631 = vst [vmem:[%s340 + $0xe0] sm:$0xff] %v3589
        %3632 = vst [vmem:[%s340 + $0xe8] sm:$0xff] %v3592
        %3633 = vst [vmem:[%s340 + $0xf0] sm:$0xff] %v3597
        %3634 = vst [vmem:[%s340 + $0xf8] sm:$0xff] %v3600
        %s3635 = sand.u32 %s186, 1
        %s3636 = scalar_lea.sflag [#allocation4], %s3635
        %s3637 = sand.u32 %s186, 1
        %s3638 = smul.addr %s3637, 256
        %s3639 = scalar_lea.vmem [#allocation10], %s3638
        // Predicated region
        $region65: #{tpu_custom_call.1} parent=47 // pred_check
          %p3640 = pneg %p196
        $region66: #{tpu_custom_call.1} parent=47 // pred_check_branch
          %3642 = sbr.rel (%p3640) target = $region68
        $region67: #{tpu_custom_call.1} parent=47 // pred_region
          %s3643 = smul.u32 32, %s26
          %s3645 = ssub.s32 4096, 4096
          %3646 = vsyncadd %s3636, %s3645
          %s3647 = smul.addr %s3643, 128
          %s3648 = scalar_lea.hbm %s7, %s3647
          %s3649 = sshll.u32 %s3639, 4
          %s3650 = int_to_ptr.vmem [resolvable:$true] %s3649
          %3655 = dma.vmem_to_hbm [thread:$0]  %s3650, 4096, %s3648, %s3636, 128, 128, 8
        $region68: #{tpu_custom_call.1} parent=47 // pred_fallthru
          _
      $region48: #{tpu_custom_call.1} parent=5 // pred_fallthru
        _
      %p3656 = scmp.le.s32.totalorder 2, %s21
      // Predicated region
      $region69: #{tpu_custom_call.1} parent=5 // pred_check
        %p3657 = pneg %p3656
      $region70: #{tpu_custom_call.1} parent=5 // pred_check_branch
        %3659 = sbr.rel (%p3657) target = $region72
      $region71: #{tpu_custom_call.1} parent=5 // pred_region
        %s3660 = ssub.s32 %s21, 2
        // Predicated region
        $region73: #{tpu_custom_call.1} parent=71 // pred_check
          %p3661 = pneg %p202
        $region74: #{tpu_custom_call.1} parent=71 // pred_check_branch
          %3663 = sbr.rel (%p3661) target = $region76
        $region75: #{tpu_custom_call.1} parent=71 // pred_region
          %s3664 = sand.u32 %s187, 1
          %s3665 = scalar_lea.sflag [#allocation4], %s3664
          %s3666 = sand.u32 %s187, 1
          %s3667 = smul.addr %s3666, 256
          %s3668 = scalar_lea.vmem [#allocation10], %s3667
          %3669 = dma.done %s3665, 4096
        $region76: #{tpu_custom_call.1} parent=71 // pred_fallthru
          _
      $region72: #{tpu_custom_call.1} parent=5 // pred_fallthru
        _
    $region6: #{tpu_custom_call.1} parent=1 // loop_footer
      %s25 = sadd.s32 1, %s21
    $region7: #{tpu_custom_call.1} parent=1 // loop_footer_branch
      %20 = sbr.rel target = $region3
    $region8: #{tpu_custom_call.1} parent=1 // loop_exit
      _
    %3670 = vsyncpa [#allocation3], 1
    %s3671 = scalar_lea.sflag [#allocation3], 1
    %3672 = vsyncpa %s3671, 1
    %3673 = vsyncpa [#allocation6], 1
    %3674 = vsyncpa [#allocation9], 1
    %3675 = vsyncpa [#allocation4], 1
    %s3676 = scalar_lea.sflag [#allocation4], 1
    %3677 = vsyncpa %s3676, 1

</llo_original>
